<compile_context>
chip_gen: v5e
topology: v5e:2x2
jax: 0.10.0
libtpu: 0.0.40
codegen_flags: <defaults>
</compile_context>

<pallas_src>
import functools
import math

import jax
import jax.numpy as jnp
from jax.experimental import pallas as pl
from jax.experimental.pallas import tpu as pltpu


# ---------------------------------------------------------------------------
# in-kernel math helpers
# ---------------------------------------------------------------------------
def _gelu_exact(x):
    # nn.GELU() default = exact erf formulation
    return 0.5 * x * (1.0 + jax.lax.erf(x * (1.0 / math.sqrt(2.0))))


# ---------------------------------------------------------------------------
# Pallas kernel: full ResidualMB forward for one batch element (NHWC tile)
# ---------------------------------------------------------------------------
def residual_mb_kernel(*refs, has_shortcut_proj):
    if has_shortcut_proj:
        (x_ref, w1_ref, s1_ref, b1_ref, wdw_ref, s2_ref, b2_ref,
         w2_ref, s3_ref, b3_ref, wmain_ref, out_ref) = refs
    else:
        (x_ref, w1_ref, s1_ref, b1_ref, wdw_ref, s2_ref, b2_ref,
         w2_ref, s3_ref, b3_ref, out_ref) = refs
        wmain_ref = None

    x = x_ref[0].astype(jnp.float32)                      # [H, W, Cin]
    H, W, Cin = x.shape
    x2d = x.reshape(H * W, Cin)                           # channels stay on lanes
    x_bf = x2d.astype(jnp.bfloat16)

    # --- 1x1 expand conv -> BN -> GELU  (bf16 MXU matmul, f32 accumulate) ----
    h = jnp.dot(x_bf, w1_ref[...].astype(jnp.bfloat16),
                preferred_element_type=jnp.float32)       # [HW, Cmid] f32
    h = _gelu_exact(h * s1_ref[0] + b1_ref[0])

    Cmid = h.shape[-1]
    hs = h.reshape(H, W, Cmid)

    # --- depthwise 3x3, stride 1, padding 1 (9 shifted VPU MACs, f32) --------
    zr = jnp.zeros((1, W, Cmid), jnp.float32)
    hp = jnp.concatenate([zr, hs, zr], axis=0)            # [H+2, W,   Cmid]
    zc = jnp.zeros((H + 2, 1, Cmid), jnp.float32)
    hp = jnp.concatenate([zc, hp, zc], axis=1)            # [H+2, W+2, Cmid]
    acc = jnp.zeros((H, W, Cmid), jnp.float32)
    for dy in range(3):                                   # static unroll: 9 taps
        for dx in range(3):
            acc = acc + hp[dy:dy + H, dx:dx + W, :] * wdw_ref[dy, dx, :]
    acc = _gelu_exact(acc * s2_ref[0] + b2_ref[0])

    # --- 1x1 project conv -> BN (afternorm) ----------------------------------
    a_bf = acc.reshape(H * W, Cmid).astype(jnp.bfloat16)
    y = jnp.dot(a_bf, w2_ref[...].astype(jnp.bfloat16),
                preferred_element_type=jnp.float32)       # [HW, Cout] f32
    y = y * s3_ref[0] + b3_ref[0]

    # --- shortcut branch (DropPath(p=0) on the net branch == identity) -------
    if has_shortcut_proj:
        sc = jnp.dot(x_bf, wmain_ref[...].astype(jnp.bfloat16),
                     preferred_element_type=jnp.float32)  # [HW, Cout]
    else:
        sc = x2d                                          # Cin == Cout
    out = sc + y
    out_ref[0] = out.reshape(H, W, out.shape[-1]).astype(out_ref.dtype)


# ---------------------------------------------------------------------------
# host wrapper: NCHW in / NCHW out (PyTorch convention), NHWC inside
# ---------------------------------------------------------------------------
def residual_mb(x_nchw, params):
    N, Cin, H, W = x_nchw.shape
    Cout = params["w2"].shape[1]
    has_proj = "wmain" in params

    x = jnp.transpose(x_nchw, (0, 2, 3, 1)).astype(jnp.float32)   # NHWC

    weight_args = [params["w1"], params["s1"], params["b1"],
                   params["wdw"], params["s2"], params["b2"],
                   params["w2"], params["s3"], params["b3"]]
    if has_proj:
        weight_args.append(params["wmain"])

    kernel = functools.partial(residual_mb_kernel, has_shortcut_proj=has_proj)

    # grid-invariant weights: whole-array VMEM residents (no per-step double buffering)
    weight_specs = [pl.BlockSpec(memory_space=pltpu.MemorySpace.VMEM)
                    for _ in weight_args]

    grid_spec = pltpu.PrefetchScalarGridSpec(
        num_scalar_prefetch=0,
        grid=(N,),
        in_specs=[pl.BlockSpec((1, H, W, Cin), lambda b: (b, 0, 0, 0))] + weight_specs,
        out_specs=pl.BlockSpec((1, H, W, Cout), lambda b: (b, 0, 0, 0)),
    )

    y_nhwc = pl.pallas_call(
        kernel,
        out_shape=jax.ShapeDtypeStruct((N, H, W, Cout), jnp.float32),
        grid_spec=grid_spec,
        compiler_params=pltpu.CompilerParams(
            dimension_semantics=("parallel",),
            vmem_limit_bytes=32 * 1024 * 1024,
        ),
    )(x, *weight_args)

    return jnp.transpose(y_nhwc, (0, 3, 1, 2))            # back to NCHW


# ---------------------------------------------------------------------------
# pure-JAX reference (same math, same bf16 matmul inputs / f32 accumulation)
# ---------------------------------------------------------------------------
def residual_mb_ref(x_nchw, p):
    x = jnp.transpose(x_nchw, (0, 2, 3, 1)).astype(jnp.float32)   # NHWC
    N, H, W, Cin = x.shape
    bf = jnp.bfloat16
    xb = x.astype(bf)

    h = jnp.einsum("nhwc,cm->nhwm", xb, p["w1"].astype(bf),
                   preferred_element_type=jnp.float32)
    h = _gelu_exact(h * p["s1"][0] + p["b1"][0])

    hp = jnp.pad(h, ((0, 0), (1, 1), (1, 1), (0, 0)))
    acc = jnp.zeros_like(h)
    for dy in range(3):
        for dx in range(3):
            acc = acc + hp[:, dy:dy + H, dx:dx + W, :] * p["wdw"][dy, dx, :]
    acc = _gelu_exact(acc * p["s2"][0] + p["b2"][0])

    y = jnp.einsum("nhwm,mo->nhwo", acc.astype(bf), p["w2"].astype(bf),
                   preferred_element_type=jnp.float32)
    y = y * p["s3"][0] + p["b3"][0]

    if "wmain" in p:
        sc = jnp.einsum("nhwc,co->nhwo", xb, p["wmain"].astype(bf),
                        preferred_element_type=jnp.float32)
    else:
        sc = x
    return jnp.transpose(sc + y, (0, 3, 1, 2))


# ---------------------------------------------------------------------------
# deterministic synthetic parameters (conv weights pre-transposed, BN folded)
# ---------------------------------------------------------------------------
def init_params(key, dim_in, dim_out, mlp_ratio=4, eps=1e-5):
    cmid = int(dim_in * mlp_ratio)
    ks = jax.random.split(key, 7)
    f32 = jnp.float32

    def folded_bn(k, c):
        k1, k2, k3, k4 = jax.random.split(k, 4)
        gamma = 1.0 + 0.1 * jax.random.normal(k1, (c,), f32)
        beta = 0.1 * jax.random.normal(k2, (c,), f32)
        mean = 0.1 * jax.random.normal(k3, (c,), f32)
        var = (1.0 + 0.1 * jax.random.normal(k4, (c,), f32)) ** 2
        scale = gamma / jnp.sqrt(var + eps)
        bias = beta - mean * scale
        return scale.reshape(1, c).astype(f32), bias.reshape(1, c).astype(f32)

    s1, b1 = folded_bn(ks[0], cmid)
    s2, b2 = folded_bn(ks[1], cmid)
    s3, b3 = folded_bn(ks[2], dim_out)

    params = {
        # torch Conv2d 1x1 weight [out, in, 1, 1] stored as [in, out]
        "w1": (jax.random.normal(ks[3], (dim_in, cmid), f32) / math.sqrt(dim_in)),
        # torch depthwise weight [cmid, 1, 3, 3] stored as [3, 3, cmid]
        "wdw": (jax.random.normal(ks[4], (3, 3, cmid), f32) / 3.0),
        "w2": (jax.random.normal(ks[5], (cmid, dim_out), f32) / math.sqrt(cmid)),
        "s1": s1, "b1": b1, "s2": s2, "b2": b2, "s3": s3, "b3": b3,
    }
    if dim_in != dim_out:
        params["wmain"] = (jax.random.normal(ks[6], (dim_in, dim_out), f32)
                           / math.sqrt(dim_in))
    return params


if __name__ == "__main__":
    # small but representative: Cmid = 32*4 = 128 (lane-dense), shortcut 1x1 exercised
    dim_in, dim_out, mlp_ratio = 32, 64, 4
    N, H, W = 2, 16, 16

    key = jax.random.PRNGKey(0)
    kx, kp = jax.random.split(key)
    x = jax.random.normal(kx, (N, dim_in, H, W), dtype=jnp.float32)   # NCHW like PyTorch
    params = init_params(kp, dim_in, dim_out, mlp_ratio)

    y = residual_mb(x, params)
    jax.block_until_ready(y)

    ref = residual_mb_ref(x, params)
    assert y.shape == (N, dim_out, H, W)
    assert jnp.allclose(y, ref, atol=1e-3, rtol=1e-3), float(jnp.max(jnp.abs(y - ref)))

    print("KERNEL_OK")
</pallas_src>

<mosaic_0001>
module attributes {stable_mosaic.version = 11 : i64} {
  func.func @residual_mb_kernel(%arg0: i32, %arg1: memref<1x16x16x32xf32, #tpu.memory_space<vmem>>, %arg2: memref<32x128xf32, #tpu.memory_space<vmem>>, %arg3: memref<1x128xf32, #tpu.memory_space<vmem>>, %arg4: memref<1x128xf32, #tpu.memory_space<vmem>>, %arg5: memref<3x3x128xf32, #tpu.memory_space<vmem>>, %arg6: memref<1x128xf32, #tpu.memory_space<vmem>>, %arg7: memref<1x128xf32, #tpu.memory_space<vmem>>, %arg8: memref<128x64xf32, #tpu.memory_space<vmem>>, %arg9: memref<1x64xf32, #tpu.memory_space<vmem>>, %arg10: memref<1x64xf32, #tpu.memory_space<vmem>>, %arg11: memref<32x64xf32, #tpu.memory_space<vmem>>, %arg12: memref<1x16x16x64xf32, #tpu.memory_space<vmem>>) attributes {dimension_semantics = [#tpu.dimension_semantics<parallel>], iteration_bounds = array<i64: 2>, scalar_prefetch = 0 : i64, scratch_operands = 0 : i64, tpu.core_type = #tpu.core_type<tc>, window_params = [{transform_indices = @transform_0, window_bounds = array<i64: 1, 16, 16, 32>}, {pipeline_mode = #tpu.pipeline_mode<synchronous>, transform_indices = @transform_1, window_bounds = array<i64: 32, 128>}, {pipeline_mode = #tpu.pipeline_mode<synchronous>, transform_indices = @transform_2, window_bounds = array<i64: 1, 128>}, {pipeline_mode = #tpu.pipeline_mode<synchronous>, transform_indices = @transform_3, window_bounds = array<i64: 1, 128>}, {pipeline_mode = #tpu.pipeline_mode<synchronous>, transform_indices = @transform_4, window_bounds = array<i64: 3, 3, 128>}, {pipeline_mode = #tpu.pipeline_mode<synchronous>, transform_indices = @transform_5, window_bounds = array<i64: 1, 128>}, {pipeline_mode = #tpu.pipeline_mode<synchronous>, transform_indices = @transform_6, window_bounds = array<i64: 1, 128>}, {pipeline_mode = #tpu.pipeline_mode<synchronous>, transform_indices = @transform_7, window_bounds = array<i64: 128, 64>}, {pipeline_mode = #tpu.pipeline_mode<synchronous>, transform_indices = @transform_8, window_bounds = array<i64: 1, 64>}, {pipeline_mode = #tpu.pipeline_mode<synchronous>, transform_indices = @transform_9, window_bounds = array<i64: 1, 64>}, {pipeline_mode = #tpu.pipeline_mode<synchronous>, transform_indices = @transform_10, window_bounds = array<i64: 32, 64>}, {transform_indices = @transform_11, window_bounds = array<i64: 1, 16, 16, 64>}]} {
    %c0 = arith.constant 0 : index
    %c0_0 = arith.constant 0 : index
    %c0_1 = arith.constant 0 : index
    %c0_2 = arith.constant 0 : index
    %0 = vector.load %arg1[%c0, %c0_0, %c0_1, %c0_2] : memref<1x16x16x32xf32, #tpu.memory_space<vmem>>, vector<1x16x16x32xf32>
    %1 = vector.shape_cast %0 : vector<1x16x16x32xf32> to vector<16x16x32xf32>
    %2 = vector.shape_cast %1 : vector<16x16x32xf32> to vector<256x32xf32>
    %3 = arith.truncf %2 : vector<256x32xf32> to vector<256x32xbf16>
    %c0_3 = arith.constant 0 : index
    %c0_4 = arith.constant 0 : index
    %4 = vector.load %arg2[%c0_3, %c0_4] : memref<32x128xf32, #tpu.memory_space<vmem>>, vector<32x128xf32>
    %5 = arith.truncf %4 : vector<32x128xf32> to vector<32x128xbf16>
    %cst = arith.constant dense<0.000000e+00> : vector<256x128xf32>
    %6 = tpu.matmul %3, %5, %cst {dimension_numbers = #tpu.dot_dimension_numbers<[1], [0], [0], [1], [0, 0, 1, 1], [], []>} : vector<256x32xbf16>, vector<32x128xbf16>, vector<256x128xf32> -> vector<256x128xf32>
    %c0_5 = arith.constant 0 : index
    %c0_6 = arith.constant 0 : index
    %7 = vector.load %arg3[%c0_5, %c0_6] : memref<1x128xf32, #tpu.memory_space<vmem>>, vector<1x128xf32>
    %8 = vector.shape_cast %7 : vector<1x128xf32> to vector<128xf32>
    %9 = vector.shape_cast %8 : vector<128xf32> to vector<1x128xf32>
    %10 = vector.broadcast %9 : vector<1x128xf32> to vector<256x128xf32>
    %11 = arith.mulf %6, %10 : vector<256x128xf32>
    %c0_7 = arith.constant 0 : index
    %c0_8 = arith.constant 0 : index
    %12 = vector.load %arg4[%c0_7, %c0_8] : memref<1x128xf32, #tpu.memory_space<vmem>>, vector<1x128xf32>
    %13 = vector.shape_cast %12 : vector<1x128xf32> to vector<128xf32>
    %14 = vector.shape_cast %13 : vector<128xf32> to vector<1x128xf32>
    %15 = vector.broadcast %14 : vector<1x128xf32> to vector<256x128xf32>
    %16 = arith.addf %11, %15 : vector<256x128xf32>
    %cst_9 = arith.constant 5.000000e-01 : f32
    %17 = vector.broadcast %cst_9 : f32 to vector<256x128xf32>
    %18 = arith.mulf %17, %16 : vector<256x128xf32>
    %cst_10 = arith.constant 0.707106769 : f32
    %19 = vector.broadcast %cst_10 : f32 to vector<256x128xf32>
    %20 = arith.mulf %16, %19 : vector<256x128xf32>
    %21 = math.erf %20 : vector<256x128xf32>
    %cst_11 = arith.constant 1.000000e+00 : f32
    %22 = vector.broadcast %cst_11 : f32 to vector<256x128xf32>
    %23 = arith.addf %22, %21 : vector<256x128xf32>
    %24 = arith.mulf %18, %23 : vector<256x128xf32>
    %25 = vector.shape_cast %24 : vector<256x128xf32> to vector<16x16x128xf32>
    %cst_12 = arith.constant 0.000000e+00 : f32
    %26 = vector.broadcast %cst_12 : f32 to vector<1x16x128xf32>
    %27 = tpu.concatenate %26, %25, %26 in 0 : vector<1x16x128xf32>, vector<16x16x128xf32>, vector<1x16x128xf32> -> vector<18x16x128xf32>
    %cst_13 = arith.constant 0.000000e+00 : f32
    %28 = vector.broadcast %cst_13 : f32 to vector<18x1x128xf32>
    %29 = tpu.concatenate %28, %27, %28 in 1 : vector<18x1x128xf32>, vector<18x16x128xf32>, vector<18x1x128xf32> -> vector<18x18x128xf32>
    %cst_14 = arith.constant 0.000000e+00 : f32
    %30 = vector.broadcast %cst_14 : f32 to vector<16x16x128xf32>
    %31 = vector.extract_strided_slice %29 {offsets = [0, 0, 0], sizes = [16, 16, 128], strides = [1, 1, 1]} : vector<18x18x128xf32> to vector<16x16x128xf32>
    %c0_15 = arith.constant 0 : index
    %c0_16 = arith.constant 0 : index
    %c0_17 = arith.constant 0 : index
    %32 = vector.load %arg5[%c0_15, %c0_16, %c0_17] : memref<3x3x128xf32, #tpu.memory_space<vmem>>, vector<1x1x128xf32>
    %33 = vector.shape_cast %32 : vector<1x1x128xf32> to vector<128xf32>
    %34 = vector.shape_cast %33 : vector<128xf32> to vector<1x1x128xf32>
    %35 = vector.broadcast %34 : vector<1x1x128xf32> to vector<16x16x128xf32>
    %36 = arith.mulf %31, %35 : vector<16x16x128xf32>
    %37 = arith.addf %30, %36 : vector<16x16x128xf32>
    %38 = vector.extract_strided_slice %29 {offsets = [0, 1, 0], sizes = [16, 16, 128], strides = [1, 1, 1]} : vector<18x18x128xf32> to vector<16x16x128xf32>
    %c0_18 = arith.constant 0 : index
    %c1 = arith.constant 1 : index
    %c0_19 = arith.constant 0 : index
    %39 = vector.load %arg5[%c0_18, %c1, %c0_19] : memref<3x3x128xf32, #tpu.memory_space<vmem>>, vector<1x1x128xf32>
    %40 = vector.shape_cast %39 : vector<1x1x128xf32> to vector<128xf32>
    %41 = vector.shape_cast %40 : vector<128xf32> to vector<1x1x128xf32>
    %42 = vector.broadcast %41 : vector<1x1x128xf32> to vector<16x16x128xf32>
    %43 = arith.mulf %38, %42 : vector<16x16x128xf32>
    %44 = arith.addf %37, %43 : vector<16x16x128xf32>
    %45 = vector.extract_strided_slice %29 {offsets = [0, 2, 0], sizes = [16, 16, 128], strides = [1, 1, 1]} : vector<18x18x128xf32> to vector<16x16x128xf32>
    %c0_20 = arith.constant 0 : index
    %c2 = arith.constant 2 : index
    %c0_21 = arith.constant 0 : index
    %46 = vector.load %arg5[%c0_20, %c2, %c0_21] : memref<3x3x128xf32, #tpu.memory_space<vmem>>, vector<1x1x128xf32>
    %47 = vector.shape_cast %46 : vector<1x1x128xf32> to vector<128xf32>
    %48 = vector.shape_cast %47 : vector<128xf32> to vector<1x1x128xf32>
    %49 = vector.broadcast %48 : vector<1x1x128xf32> to vector<16x16x128xf32>
    %50 = arith.mulf %45, %49 : vector<16x16x128xf32>
    %51 = arith.addf %44, %50 : vector<16x16x128xf32>
    %52 = vector.extract_strided_slice %29 {offsets = [1, 0, 0], sizes = [16, 16, 128], strides = [1, 1, 1]} : vector<18x18x128xf32> to vector<16x16x128xf32>
    %c1_22 = arith.constant 1 : index
    %c0_23 = arith.constant 0 : index
    %c0_24 = arith.constant 0 : index
    %53 = vector.load %arg5[%c1_22, %c0_23, %c0_24] : memref<3x3x128xf32, #tpu.memory_space<vmem>>, vector<1x1x128xf32>
    %54 = vector.shape_cast %53 : vector<1x1x128xf32> to vector<128xf32>
    %55 = vector.shape_cast %54 : vector<128xf32> to vector<1x1x128xf32>
    %56 = vector.broadcast %55 : vector<1x1x128xf32> to vector<16x16x128xf32>
    %57 = arith.mulf %52, %56 : vector<16x16x128xf32>
    %58 = arith.addf %51, %57 : vector<16x16x128xf32>
    %59 = vector.extract_strided_slice %29 {offsets = [1, 1, 0], sizes = [16, 16, 128], strides = [1, 1, 1]} : vector<18x18x128xf32> to vector<16x16x128xf32>
    %c1_25 = arith.constant 1 : index
    %c1_26 = arith.constant 1 : index
    %c0_27 = arith.constant 0 : index
    %60 = vector.load %arg5[%c1_25, %c1_26, %c0_27] : memref<3x3x128xf32, #tpu.memory_space<vmem>>, vector<1x1x128xf32>
    %61 = vector.shape_cast %60 : vector<1x1x128xf32> to vector<128xf32>
    %62 = vector.shape_cast %61 : vector<128xf32> to vector<1x1x128xf32>
    %63 = vector.broadcast %62 : vector<1x1x128xf32> to vector<16x16x128xf32>
    %64 = arith.mulf %59, %63 : vector<16x16x128xf32>
    %65 = arith.addf %58, %64 : vector<16x16x128xf32>
    %66 = vector.extract_strided_slice %29 {offsets = [1, 2, 0], sizes = [16, 16, 128], strides = [1, 1, 1]} : vector<18x18x128xf32> to vector<16x16x128xf32>
    %c1_28 = arith.constant 1 : index
    %c2_29 = arith.constant 2 : index
    %c0_30 = arith.constant 0 : index
    %67 = vector.load %arg5[%c1_28, %c2_29, %c0_30] : memref<3x3x128xf32, #tpu.memory_space<vmem>>, vector<1x1x128xf32>
    %68 = vector.shape_cast %67 : vector<1x1x128xf32> to vector<128xf32>
    %69 = vector.shape_cast %68 : vector<128xf32> to vector<1x1x128xf32>
    %70 = vector.broadcast %69 : vector<1x1x128xf32> to vector<16x16x128xf32>
    %71 = arith.mulf %66, %70 : vector<16x16x128xf32>
    %72 = arith.addf %65, %71 : vector<16x16x128xf32>
    %73 = vector.extract_strided_slice %29 {offsets = [2, 0, 0], sizes = [16, 16, 128], strides = [1, 1, 1]} : vector<18x18x128xf32> to vector<16x16x128xf32>
    %c2_31 = arith.constant 2 : index
    %c0_32 = arith.constant 0 : index
    %c0_33 = arith.constant 0 : index
    %74 = vector.load %arg5[%c2_31, %c0_32, %c0_33] : memref<3x3x128xf32, #tpu.memory_space<vmem>>, vector<1x1x128xf32>
    %75 = vector.shape_cast %74 : vector<1x1x128xf32> to vector<128xf32>
    %76 = vector.shape_cast %75 : vector<128xf32> to vector<1x1x128xf32>
    %77 = vector.broadcast %76 : vector<1x1x128xf32> to vector<16x16x128xf32>
    %78 = arith.mulf %73, %77 : vector<16x16x128xf32>
    %79 = arith.addf %72, %78 : vector<16x16x128xf32>
    %80 = vector.extract_strided_slice %29 {offsets = [2, 1, 0], sizes = [16, 16, 128], strides = [1, 1, 1]} : vector<18x18x128xf32> to vector<16x16x128xf32>
    %c2_34 = arith.constant 2 : index
    %c1_35 = arith.constant 1 : index
    %c0_36 = arith.constant 0 : index
    %81 = vector.load %arg5[%c2_34, %c1_35, %c0_36] : memref<3x3x128xf32, #tpu.memory_space<vmem>>, vector<1x1x128xf32>
    %82 = vector.shape_cast %81 : vector<1x1x128xf32> to vector<128xf32>
    %83 = vector.shape_cast %82 : vector<128xf32> to vector<1x1x128xf32>
    %84 = vector.broadcast %83 : vector<1x1x128xf32> to vector<16x16x128xf32>
    %85 = arith.mulf %80, %84 : vector<16x16x128xf32>
    %86 = arith.addf %79, %85 : vector<16x16x128xf32>
    %87 = vector.extract_strided_slice %29 {offsets = [2, 2, 0], sizes = [16, 16, 128], strides = [1, 1, 1]} : vector<18x18x128xf32> to vector<16x16x128xf32>
    %c2_37 = arith.constant 2 : index
    %c2_38 = arith.constant 2 : index
    %c0_39 = arith.constant 0 : index
    %88 = vector.load %arg5[%c2_37, %c2_38, %c0_39] : memref<3x3x128xf32, #tpu.memory_space<vmem>>, vector<1x1x128xf32>
    %89 = vector.shape_cast %88 : vector<1x1x128xf32> to vector<128xf32>
    %90 = vector.shape_cast %89 : vector<128xf32> to vector<1x1x128xf32>
    %91 = vector.broadcast %90 : vector<1x1x128xf32> to vector<16x16x128xf32>
    %92 = arith.mulf %87, %91 : vector<16x16x128xf32>
    %93 = arith.addf %86, %92 : vector<16x16x128xf32>
    %c0_40 = arith.constant 0 : index
    %c0_41 = arith.constant 0 : index
    %94 = vector.load %arg6[%c0_40, %c0_41] : memref<1x128xf32, #tpu.memory_space<vmem>>, vector<1x128xf32>
    %95 = vector.shape_cast %94 : vector<1x128xf32> to vector<128xf32>
    %96 = vector.shape_cast %95 : vector<128xf32> to vector<1x1x128xf32>
    %97 = vector.broadcast %96 : vector<1x1x128xf32> to vector<16x16x128xf32>
    %98 = arith.mulf %93, %97 : vector<16x16x128xf32>
    %c0_42 = arith.constant 0 : index
    %c0_43 = arith.constant 0 : index
    %99 = vector.load %arg7[%c0_42, %c0_43] : memref<1x128xf32, #tpu.memory_space<vmem>>, vector<1x128xf32>
    %100 = vector.shape_cast %99 : vector<1x128xf32> to vector<128xf32>
    %101 = vector.shape_cast %100 : vector<128xf32> to vector<1x1x128xf32>
    %102 = vector.broadcast %101 : vector<1x1x128xf32> to vector<16x16x128xf32>
    %103 = arith.addf %98, %102 : vector<16x16x128xf32>
    %cst_44 = arith.constant 5.000000e-01 : f32
    %104 = vector.broadcast %cst_44 : f32 to vector<16x16x128xf32>
    %105 = arith.mulf %104, %103 : vector<16x16x128xf32>
    %cst_45 = arith.constant 0.707106769 : f32
    %106 = vector.broadcast %cst_45 : f32 to vector<16x16x128xf32>
    %107 = arith.mulf %103, %106 : vector<16x16x128xf32>
    %108 = math.erf %107 : vector<16x16x128xf32>
    %cst_46 = arith.constant 1.000000e+00 : f32
    %109 = vector.broadcast %cst_46 : f32 to vector<16x16x128xf32>
    %110 = arith.addf %109, %108 : vector<16x16x128xf32>
    %111 = arith.mulf %105, %110 : vector<16x16x128xf32>
    %112 = vector.shape_cast %111 : vector<16x16x128xf32> to vector<256x128xf32>
    %113 = arith.truncf %112 : vector<256x128xf32> to vector<256x128xbf16>
    %c0_47 = arith.constant 0 : index
    %c0_48 = arith.constant 0 : index
    %114 = vector.load %arg8[%c0_47, %c0_48] : memref<128x64xf32, #tpu.memory_space<vmem>>, vector<128x64xf32>
    %115 = arith.truncf %114 : vector<128x64xf32> to vector<128x64xbf16>
    %cst_49 = arith.constant dense<0.000000e+00> : vector<256x64xf32>
    %116 = tpu.matmul %113, %115, %cst_49 {dimension_numbers = #tpu.dot_dimension_numbers<[1], [0], [0], [1], [0, 0, 1, 1], [], []>} : vector<256x128xbf16>, vector<128x64xbf16>, vector<256x64xf32> -> vector<256x64xf32>
    %c0_50 = arith.constant 0 : index
    %c0_51 = arith.constant 0 : index
    %117 = vector.load %arg9[%c0_50, %c0_51] : memref<1x64xf32, #tpu.memory_space<vmem>>, vector<1x64xf32>
    %118 = vector.shape_cast %117 : vector<1x64xf32> to vector<64xf32>
    %119 = vector.shape_cast %118 : vector<64xf32> to vector<1x64xf32>
    %120 = vector.broadcast %119 : vector<1x64xf32> to vector<256x64xf32>
    %121 = arith.mulf %116, %120 : vector<256x64xf32>
    %c0_52 = arith.constant 0 : index
    %c0_53 = arith.constant 0 : index
    %122 = vector.load %arg10[%c0_52, %c0_53] : memref<1x64xf32, #tpu.memory_space<vmem>>, vector<1x64xf32>
    %123 = vector.shape_cast %122 : vector<1x64xf32> to vector<64xf32>
    %124 = vector.shape_cast %123 : vector<64xf32> to vector<1x64xf32>
    %125 = vector.broadcast %124 : vector<1x64xf32> to vector<256x64xf32>
    %126 = arith.addf %121, %125 : vector<256x64xf32>
    %c0_54 = arith.constant 0 : index
    %c0_55 = arith.constant 0 : index
    %127 = vector.load %arg11[%c0_54, %c0_55] : memref<32x64xf32, #tpu.memory_space<vmem>>, vector<32x64xf32>
    %128 = arith.truncf %127 : vector<32x64xf32> to vector<32x64xbf16>
    %cst_56 = arith.constant dense<0.000000e+00> : vector<256x64xf32>
    %129 = tpu.matmul %3, %128, %cst_56 {dimension_numbers = #tpu.dot_dimension_numbers<[1], [0], [0], [1], [0, 0, 1, 1], [], []>} : vector<256x32xbf16>, vector<32x64xbf16>, vector<256x64xf32> -> vector<256x64xf32>
    %130 = arith.addf %129, %126 : vector<256x64xf32>
    %131 = vector.shape_cast %130 : vector<256x64xf32> to vector<16x16x64xf32>
    %c0_57 = arith.constant 0 : index
    %c0_58 = arith.constant 0 : index
    %c0_59 = arith.constant 0 : index
    %c0_60 = arith.constant 0 : index
    %132 = vector.load %arg12[%c0_57, %c0_58, %c0_59, %c0_60] : memref<1x16x16x64xf32, #tpu.memory_space<vmem>>, vector<1x16x16x64xf32>
    %133 = vector.shape_cast %132 : vector<1x16x16x64xf32> to vector<16x16x64xf32>
    %134 = vector.shape_cast %131 : vector<16x16x64xf32> to vector<1x16x16x64xf32>
    tpu.vector_store %arg12[%c0_57, %c0_58, %c0_59, %c0_60], %134 {strides = array<i32>} : memref<1x16x16x64xf32, #tpu.memory_space<vmem>>, vector<1x16x16x64xf32>,
    return
  }
  func.func @transform_0(%arg0: i32) -> (i32, i32, i32, i32) {
    %c0_i32 = arith.constant 0 : i32
    %c0_i32_0 = arith.constant 0 : i32
    %c0_i32_1 = arith.constant 0 : i32
    %c0_i32_2 = arith.constant 0 : i32
    return %arg0, %c0_i32, %c0_i32_0, %c0_i32_1 : i32, i32, i32, i32
  }
  func.func @transform_1(%arg0: i32) -> (i32, i32) {
    %c0_i32 = arith.constant 0 : i32
    %c0_i32_0 = arith.constant 0 : i32
    %c0_i32_1 = arith.constant 0 : i32
    return %c0_i32, %c0_i32_0 : i32, i32
  }
  func.func @transform_2(%arg0: i32) -> (i32, i32) {
    %c0_i32 = arith.constant 0 : i32
    %c0_i32_0 = arith.constant 0 : i32
    %c0_i32_1 = arith.constant 0 : i32
    return %c0_i32, %c0_i32_0 : i32, i32
  }
  func.func @transform_3(%arg0: i32) -> (i32, i32) {
    %c0_i32 = arith.constant 0 : i32
    %c0_i32_0 = arith.constant 0 : i32
    %c0_i32_1 = arith.constant 0 : i32
    return %c0_i32, %c0_i32_0 : i32, i32
  }
  func.func @transform_4(%arg0: i32) -> (i32, i32, i32) {
    %c0_i32 = arith.constant 0 : i32
    %c0_i32_0 = arith.constant 0 : i32
    %c0_i32_1 = arith.constant 0 : i32
    %c0_i32_2 = arith.constant 0 : i32
    return %c0_i32, %c0_i32_0, %c0_i32_1 : i32, i32, i32
  }
  func.func @transform_5(%arg0: i32) -> (i32, i32) {
    %c0_i32 = arith.constant 0 : i32
    %c0_i32_0 = arith.constant 0 : i32
    %c0_i32_1 = arith.constant 0 : i32
    return %c0_i32, %c0_i32_0 : i32, i32
  }
  func.func @transform_6(%arg0: i32) -> (i32, i32) {
    %c0_i32 = arith.constant 0 : i32
    %c0_i32_0 = arith.constant 0 : i32
    %c0_i32_1 = arith.constant 0 : i32
    return %c0_i32, %c0_i32_0 : i32, i32
  }
  func.func @transform_7(%arg0: i32) -> (i32, i32) {
    %c0_i32 = arith.constant 0 : i32
    %c0_i32_0 = arith.constant 0 : i32
    %c0_i32_1 = arith.constant 0 : i32
    return %c0_i32, %c0_i32_0 : i32, i32
  }
  func.func @transform_8(%arg0: i32) -> (i32, i32) {
    %c0_i32 = arith.constant 0 : i32
    %c0_i32_0 = arith.constant 0 : i32
    %c0_i32_1 = arith.constant 0 : i32
    return %c0_i32, %c0_i32_0 : i32, i32
  }
  func.func @transform_9(%arg0: i32) -> (i32, i32) {
    %c0_i32 = arith.constant 0 : i32
    %c0_i32_0 = arith.constant 0 : i32
    %c0_i32_1 = arith.constant 0 : i32
    return %c0_i32, %c0_i32_0 : i32, i32
  }
  func.func @transform_10(%arg0: i32) -> (i32, i32) {
    %c0_i32 = arith.constant 0 : i32
    %c0_i32_0 = arith.constant 0 : i32
    %c0_i32_1 = arith.constant 0 : i32
    return %c0_i32, %c0_i32_0 : i32, i32
  }
  func.func @transform_11(%arg0: i32) -> (i32, i32, i32, i32) {
    %c0_i32 = arith.constant 0 : i32
    %c0_i32_0 = arith.constant 0 : i32
    %c0_i32_1 = arith.constant 0 : i32
    %c0_i32_2 = arith.constant 0 : i32
    return %arg0, %c0_i32, %c0_i32_0, %c0_i32_1 : i32, i32, i32, i32
  }
}

</mosaic_0001>

<llo_original>
// kernel: tpu_custom_call.1
$region0: #{tpu_custom_call.1}
  #allocation0 [shape = 'u32[]', space=smem, size = 0x4, offset = 0x4, fixed_abs, tag = 'smem constant byte address 0x4 - core index']
  #allocation1 [shape = 'u32[72,128]{1,0:T(1,128)}', space=vmem, size = 0x9000, scoped, tag = 'internal scratch']
  %s0 = inlined_call_operand.hbm [shape: f32[2,16,16,32], index: 0, kind: input, shape index: {}]
  %s1 = inlined_call_operand.vmem [shape: f32[32,128], index: 1, kind: input, shape index: {}]
  %s2 = inlined_call_operand.vmem [shape: f32[1,128], index: 2, kind: input, shape index: {}]
  %s3 = inlined_call_operand.vmem [shape: f32[1,128], index: 3, kind: input, shape index: {}]
  %s4 = inlined_call_operand.vmem [shape: f32[3,3,128], index: 4, kind: input, shape index: {}]
  %s5 = inlined_call_operand.vmem [shape: f32[1,128], index: 5, kind: input, shape index: {}]
  %s6 = inlined_call_operand.vmem [shape: f32[1,128], index: 6, kind: input, shape index: {}]
  %s7 = inlined_call_operand.vmem [shape: f32[128,64], index: 7, kind: input, shape index: {}]
  %s8 = inlined_call_operand.vmem [shape: f32[1,64], index: 8, kind: input, shape index: {}]
  %s9 = inlined_call_operand.vmem [shape: f32[1,64], index: 9, kind: input, shape index: {}]
  %s10 = inlined_call_operand.vmem [shape: f32[32,64], index: 10, kind: input, shape index: {}]
  %s11 = inlined_call_operand.hbm [shape: f32[2,16,16,64], index: 11, kind: output, shape index: {}]
  %s12 = sld [smem:[#allocation0]]
  $region81: #{tpu_custom_call.1} parent=0
    _
  %s14 = ssub.s32 1, %s12
  %s15 = scalar_select 0, %s14, %s12
  $region1: #{tpu_custom_call.1} parent=0
    #allocation2 [shape = 'u8[262144]{0}', space=vmem, size = 0x40000, scoped, tag = 'input window, operand 0']
    #allocation3 [shape = 's32[2]{0}', space=sflag, size = 0x8, scoped, tag = 'scoped memory for tpu_custom_call.1']
    #allocation4 [shape = 's32[2]{0}', space=sflag, size = 0x8, scoped, tag = 'scoped memory for tpu_custom_call.1']
    #allocation5 [shape = 'u8[262144]{0}', space=vmem, size = 0x40000, scoped, tag = 'output window, operand 0']
    %16 = vsyncpa [#allocation3], 0
    %s17 = scalar_lea.sflag [#allocation3], 1
    %18 = vsyncpa %s17, 0
    %19 = vsyncpa [#allocation4], 0
    %s20 = scalar_lea.sflag [#allocation4], 1
    %21 = vsyncpa %s20, 0
    loop: start=0, step=1, limit=4
    $region2: #{tpu_custom_call.1} parent=1 // loop_pre_header
      _
    $region3: #{tpu_custom_call.1} parent=1 // loop_header
      %s23 = sphi 0, %s27
      %p24 = scmp.ge.s32.totalorder %s23, 4
      %s33 = sphi 0, %s35
      %s36 = sphi 0, %s33
      %s37 = sphi 0, %s36
      %s53 = sphi 0, %s37
      %s57 = sphi 0, %s57
      %s59 = sphi 0, %s57
      %s60 = sphi 0, %s59
      %s74 = sphi 0, %s60
      %s78 = sphi 0, %s78
      %s80 = sphi 0, %s78
      %s81 = sphi 0, %s80
      %s95 = sphi 0, %s81
      %s99 = sphi 0, %s99
      %s101 = sphi 0, %s99
      %s102 = sphi 0, %s101
      %s116 = sphi 0, %s102
      %s120 = sphi 0, %s120
      %s122 = sphi 0, %s120
      %s123 = sphi 0, %s122
      %s137 = sphi 0, %s123
      %s141 = sphi 0, %s141
      %s143 = sphi 0, %s141
      %s144 = sphi 0, %s143
      %s158 = sphi 0, %s144
      %s162 = sphi 0, %s162
      %s164 = sphi 0, %s162
      %s165 = sphi 0, %s164
      %s179 = sphi 0, %s165
      %s183 = sphi 0, %s183
      %s185 = sphi 0, %s183
      %s186 = sphi 0, %s185
      %s200 = sphi 0, %s186
      %s204 = sphi 0, %s204
      %s206 = sphi 0, %s204
      %s207 = sphi 0, %s206
      %s221 = sphi 0, %s207
      %s225 = sphi 0, %s225
      %s227 = sphi 0, %s225
      %s228 = sphi 0, %s227
      %s242 = sphi 0, %s228
      %s246 = sphi 0, %s246
      %s248 = sphi 0, %s246
      %s249 = sphi 0, %s248
      %s263 = sphi 0, %s249
      %s269 = sphi 0, %s271
      %s272 = sphi 0, %s269
      %s273 = sphi 0, %s272
      %s289 = sphi 0, %s273
    $region4: #{tpu_custom_call.1} parent=1 // loop_header_branch
      %26 = sbr.rel (%p24) target = $region8
    $region5: #{tpu_custom_call.1} parent=1 // loop_body
      %s28 = ssub.s32 %s23, 1
      %s29 = ssub.s32 %s23, 2
      %s30 = sadd.s32 %s23, 1
      %s31 = ssub.s32 %s23, %s30
      %p32 = scmp.eq.s32.totalorder %s31, 0
      %s34 = sadd.s32 %s33, 1
      %s35 = scalar_select %p32, %s33, %s34
      %p38 = pneg %p32
      %p39 = scmp.eq.s32.totalorder %s23, 1
      %p40 = por %p38, %p39
      %p41 = scmp.ne.s32.totalorder %s33, %s36
      %p42 = scmp.eq.s32.totalorder %s23, 0
      %p43 = por %p41, %p42
      %p44 = scmp.ne.s32.totalorder %s33, %s36
      %p45 = scmp.eq.s32.totalorder %s28, 1
      %p46 = por %p44, %p45
      %p47 = scmp.ne.s32.totalorder %s36, %s37
      %p48 = scmp.eq.s32.totalorder %s28, 0
      %p49 = por %p47, %p48
      %p50 = scmp.ne.s32.totalorder %s36, %s37
      %p51 = scmp.eq.s32.totalorder %s29, 1
      %p52 = por %p50, %p51
      %p54 = scmp.ne.s32.totalorder %s37, %s53
      %p55 = scmp.eq.s32.totalorder %s29, 0
      %p56 = por %p54, %p55
      %s58 = sadd.s32 %s57, 1
      %p61 = scmp.eq.s32.totalorder %s23, 1
      %p62 = scmp.ne.s32.totalorder %s57, %s59
      %p63 = scmp.eq.s32.totalorder %s23, 0
      %p64 = por %p62, %p63
      %p65 = scmp.ne.s32.totalorder %s57, %s59
      %p66 = scmp.eq.s32.totalorder %s28, 1
      %p67 = por %p65, %p66
      %p68 = scmp.ne.s32.totalorder %s59, %s60
      %p69 = scmp.eq.s32.totalorder %s28, 0
      %p70 = por %p68, %p69
      %p71 = scmp.ne.s32.totalorder %s59, %s60
      %p72 = scmp.eq.s32.totalorder %s29, 1
      %p73 = por %p71, %p72
      %p75 = scmp.ne.s32.totalorder %s60, %s74
      %p76 = scmp.eq.s32.totalorder %s29, 0
      %p77 = por %p75, %p76
      %s79 = sadd.s32 %s78, 1
      %p82 = scmp.eq.s32.totalorder %s23, 1
      %p83 = scmp.ne.s32.totalorder %s78, %s80
      %p84 = scmp.eq.s32.totalorder %s23, 0
      %p85 = por %p83, %p84
      %p86 = scmp.ne.s32.totalorder %s78, %s80
      %p87 = scmp.eq.s32.totalorder %s28, 1
      %p88 = por %p86, %p87
      %p89 = scmp.ne.s32.totalorder %s80, %s81
      %p90 = scmp.eq.s32.totalorder %s28, 0
      %p91 = por %p89, %p90
      %p92 = scmp.ne.s32.totalorder %s80, %s81
      %p93 = scmp.eq.s32.totalorder %s29, 1
      %p94 = por %p92, %p93
      %p96 = scmp.ne.s32.totalorder %s81, %s95
      %p97 = scmp.eq.s32.totalorder %s29, 0
      %p98 = por %p96, %p97
      %s100 = sadd.s32 %s99, 1
      %p103 = scmp.eq.s32.totalorder %s23, 1
      %p104 = scmp.ne.s32.totalorder %s99, %s101
      %p105 = scmp.eq.s32.totalorder %s23, 0
      %p106 = por %p104, %p105
      %p107 = scmp.ne.s32.totalorder %s99, %s101
      %p108 = scmp.eq.s32.totalorder %s28, 1
      %p109 = por %p107, %p108
      %p110 = scmp.ne.s32.totalorder %s101, %s102
      %p111 = scmp.eq.s32.totalorder %s28, 0
      %p112 = por %p110, %p111
      %p113 = scmp.ne.s32.totalorder %s101, %s102
      %p114 = scmp.eq.s32.totalorder %s29, 1
      %p115 = por %p113, %p114
      %p117 = scmp.ne.s32.totalorder %s102, %s116
      %p118 = scmp.eq.s32.totalorder %s29, 0
      %p119 = por %p117, %p118
      %s121 = sadd.s32 %s120, 1
      %p124 = scmp.eq.s32.totalorder %s23, 1
      %p125 = scmp.ne.s32.totalorder %s120, %s122
      %p126 = scmp.eq.s32.totalorder %s23, 0
      %p127 = por %p125, %p126
      %p128 = scmp.ne.s32.totalorder %s120, %s122
      %p129 = scmp.eq.s32.totalorder %s28, 1
      %p130 = por %p128, %p129
      %p131 = scmp.ne.s32.totalorder %s122, %s123
      %p132 = scmp.eq.s32.totalorder %s28, 0
      %p133 = por %p131, %p132
      %p134 = scmp.ne.s32.totalorder %s122, %s123
      %p135 = scmp.eq.s32.totalorder %s29, 1
      %p136 = por %p134, %p135
      %p138 = scmp.ne.s32.totalorder %s123, %s137
      %p139 = scmp.eq.s32.totalorder %s29, 0
      %p140 = por %p138, %p139
      %s142 = sadd.s32 %s141, 1
      %p145 = scmp.eq.s32.totalorder %s23, 1
      %p146 = scmp.ne.s32.totalorder %s141, %s143
      %p147 = scmp.eq.s32.totalorder %s23, 0
      %p148 = por %p146, %p147
      %p149 = scmp.ne.s32.totalorder %s141, %s143
      %p150 = scmp.eq.s32.totalorder %s28, 1
      %p151 = por %p149, %p150
      %p152 = scmp.ne.s32.totalorder %s143, %s144
      %p153 = scmp.eq.s32.totalorder %s28, 0
      %p154 = por %p152, %p153
      %p155 = scmp.ne.s32.totalorder %s143, %s144
      %p156 = scmp.eq.s32.totalorder %s29, 1
      %p157 = por %p155, %p156
      %p159 = scmp.ne.s32.totalorder %s144, %s158
      %p160 = scmp.eq.s32.totalorder %s29, 0
      %p161 = por %p159, %p160
      %s163 = sadd.s32 %s162, 1
      %p166 = scmp.eq.s32.totalorder %s23, 1
      %p167 = scmp.ne.s32.totalorder %s162, %s164
      %p168 = scmp.eq.s32.totalorder %s23, 0
      %p169 = por %p167, %p168
      %p170 = scmp.ne.s32.totalorder %s162, %s164
      %p171 = scmp.eq.s32.totalorder %s28, 1
      %p172 = por %p170, %p171
      %p173 = scmp.ne.s32.totalorder %s164, %s165
      %p174 = scmp.eq.s32.totalorder %s28, 0
      %p175 = por %p173, %p174
      %p176 = scmp.ne.s32.totalorder %s164, %s165
      %p177 = scmp.eq.s32.totalorder %s29, 1
      %p178 = por %p176, %p177
      %p180 = scmp.ne.s32.totalorder %s165, %s179
      %p181 = scmp.eq.s32.totalorder %s29, 0
      %p182 = por %p180, %p181
      %s184 = sadd.s32 %s183, 1
      %p187 = scmp.eq.s32.totalorder %s23, 1
      %p188 = scmp.ne.s32.totalorder %s183, %s185
      %p189 = scmp.eq.s32.totalorder %s23, 0
      %p190 = por %p188, %p189
      %p191 = scmp.ne.s32.totalorder %s183, %s185
      %p192 = scmp.eq.s32.totalorder %s28, 1
      %p193 = por %p191, %p192
      %p194 = scmp.ne.s32.totalorder %s185, %s186
      %p195 = scmp.eq.s32.totalorder %s28, 0
      %p196 = por %p194, %p195
      %p197 = scmp.ne.s32.totalorder %s185, %s186
      %p198 = scmp.eq.s32.totalorder %s29, 1
      %p199 = por %p197, %p198
      %p201 = scmp.ne.s32.totalorder %s186, %s200
      %p202 = scmp.eq.s32.totalorder %s29, 0
      %p203 = por %p201, %p202
      %s205 = sadd.s32 %s204, 1
      %p208 = scmp.eq.s32.totalorder %s23, 1
      %p209 = scmp.ne.s32.totalorder %s204, %s206
      %p210 = scmp.eq.s32.totalorder %s23, 0
      %p211 = por %p209, %p210
      %p212 = scmp.ne.s32.totalorder %s204, %s206
      %p213 = scmp.eq.s32.totalorder %s28, 1
      %p214 = por %p212, %p213
      %p215 = scmp.ne.s32.totalorder %s206, %s207
      %p216 = scmp.eq.s32.totalorder %s28, 0
      %p217 = por %p215, %p216
      %p218 = scmp.ne.s32.totalorder %s206, %s207
      %p219 = scmp.eq.s32.totalorder %s29, 1
      %p220 = por %p218, %p219
      %p222 = scmp.ne.s32.totalorder %s207, %s221
      %p223 = scmp.eq.s32.totalorder %s29, 0
      %p224 = por %p222, %p223
      %s226 = sadd.s32 %s225, 1
      %p229 = scmp.eq.s32.totalorder %s23, 1
      %p230 = scmp.ne.s32.totalorder %s225, %s227
      %p231 = scmp.eq.s32.totalorder %s23, 0
      %p232 = por %p230, %p231
      %p233 = scmp.ne.s32.totalorder %s225, %s227
      %p234 = scmp.eq.s32.totalorder %s28, 1
      %p235 = por %p233, %p234
      %p236 = scmp.ne.s32.totalorder %s227, %s228
      %p237 = scmp.eq.s32.totalorder %s28, 0
      %p238 = por %p236, %p237
      %p239 = scmp.ne.s32.totalorder %s227, %s228
      %p240 = scmp.eq.s32.totalorder %s29, 1
      %p241 = por %p239, %p240
      %p243 = scmp.ne.s32.totalorder %s228, %s242
      %p244 = scmp.eq.s32.totalorder %s29, 0
      %p245 = por %p243, %p244
      %s247 = sadd.s32 %s246, 1
      %p250 = scmp.eq.s32.totalorder %s23, 1
      %p251 = scmp.ne.s32.totalorder %s246, %s248
      %p252 = scmp.eq.s32.totalorder %s23, 0
      %p253 = por %p251, %p252
      %p254 = scmp.ne.s32.totalorder %s246, %s248
      %p255 = scmp.eq.s32.totalorder %s28, 1
      %p256 = por %p254, %p255
      %p257 = scmp.ne.s32.totalorder %s248, %s249
      %p258 = scmp.eq.s32.totalorder %s28, 0
      %p259 = por %p257, %p258
      %p260 = scmp.ne.s32.totalorder %s248, %s249
      %p261 = scmp.eq.s32.totalorder %s29, 1
      %p262 = por %p260, %p261
      %p264 = scmp.ne.s32.totalorder %s249, %s263
      %p265 = scmp.eq.s32.totalorder %s29, 0
      %p266 = por %p264, %p265
      %s267 = ssub.s32 %s23, %s30
      %p268 = scmp.eq.s32.totalorder %s267, 0
      %s270 = sadd.s32 %s269, 1
      %s271 = scalar_select %p268, %s269, %s270
      %p274 = pneg %p268
      %p275 = scmp.eq.s32.totalorder %s23, 1
      %p276 = por %p274, %p275
      %p277 = scmp.ne.s32.totalorder %s269, %s272
      %p278 = scmp.eq.s32.totalorder %s23, 0
      %p279 = por %p277, %p278
      %p280 = scmp.ne.s32.totalorder %s269, %s272
      %p281 = scmp.eq.s32.totalorder %s28, 1
      %p282 = por %p280, %p281
      %p283 = scmp.ne.s32.totalorder %s272, %s273
      %p284 = scmp.eq.s32.totalorder %s28, 0
      %p285 = por %p283, %p284
      %p286 = scmp.ne.s32.totalorder %s272, %s273
      %p287 = scmp.eq.s32.totalorder %s29, 1
      %p288 = por %p286, %p287
      %p290 = scmp.ne.s32.totalorder %s273, %s289
      %p291 = scmp.eq.s32.totalorder %s29, 0
      %p292 = por %p290, %p291
      %p293 = scmp.le.s32.totalorder 1, %s23
      %p294 = scmp.lt.s32.totalorder %s23, 3
      %p295 = pnand %p293, %p294
      %p296 = pneg %p295
      // Predicated region
      $region9: #{tpu_custom_call.1} parent=5 // pred_check
        _
      $region10: #{tpu_custom_call.1} parent=5 // pred_check_branch
        %298 = sbr.rel (%p295) target = $region12
      $region11: #{tpu_custom_call.1} parent=5 // pred_region
        %s299 = ssub.s32 %s23, 1
        // Predicated region
        $region13: #{tpu_custom_call.1} parent=11 // pred_check
          %p300 = pneg %p70
        $region14: #{tpu_custom_call.1} parent=11 // pred_check_branch
          %302 = sbr.rel (%p300) target = $region16
        $region15: #{tpu_custom_call.1} parent=11 // pred_region
          _
        $region16: #{tpu_custom_call.1} parent=11 // pred_fallthru
          _
        // Predicated region
        $region17: #{tpu_custom_call.1} parent=11 // pred_check
          %p303 = pneg %p91
        $region18: #{tpu_custom_call.1} parent=11 // pred_check_branch
          %305 = sbr.rel (%p303) target = $region20
        $region19: #{tpu_custom_call.1} parent=11 // pred_region
          _
        $region20: #{tpu_custom_call.1} parent=11 // pred_fallthru
          _
        // Predicated region
        $region21: #{tpu_custom_call.1} parent=11 // pred_check
          %p306 = pneg %p112
        $region22: #{tpu_custom_call.1} parent=11 // pred_check_branch
          %308 = sbr.rel (%p306) target = $region24
        $region23: #{tpu_custom_call.1} parent=11 // pred_region
          _
        $region24: #{tpu_custom_call.1} parent=11 // pred_fallthru
          _
        // Predicated region
        $region25: #{tpu_custom_call.1} parent=11 // pred_check
          %p309 = pneg %p133
        $region26: #{tpu_custom_call.1} parent=11 // pred_check_branch
          %311 = sbr.rel (%p309) target = $region28
        $region27: #{tpu_custom_call.1} parent=11 // pred_region
          _
        $region28: #{tpu_custom_call.1} parent=11 // pred_fallthru
          _
        // Predicated region
        $region29: #{tpu_custom_call.1} parent=11 // pred_check
          %p312 = pneg %p154
        $region30: #{tpu_custom_call.1} parent=11 // pred_check_branch
          %314 = sbr.rel (%p312) target = $region32
        $region31: #{tpu_custom_call.1} parent=11 // pred_region
          _
        $region32: #{tpu_custom_call.1} parent=11 // pred_fallthru
          _
        // Predicated region
        $region33: #{tpu_custom_call.1} parent=11 // pred_check
          %p315 = pneg %p175
        $region34: #{tpu_custom_call.1} parent=11 // pred_check_branch
          %317 = sbr.rel (%p315) target = $region36
        $region35: #{tpu_custom_call.1} parent=11 // pred_region
          _
        $region36: #{tpu_custom_call.1} parent=11 // pred_fallthru
          _
        // Predicated region
        $region37: #{tpu_custom_call.1} parent=11 // pred_check
          %p318 = pneg %p196
        $region38: #{tpu_custom_call.1} parent=11 // pred_check_branch
          %320 = sbr.rel (%p318) target = $region40
        $region39: #{tpu_custom_call.1} parent=11 // pred_region
          _
        $region40: #{tpu_custom_call.1} parent=11 // pred_fallthru
          _
        // Predicated region
        $region41: #{tpu_custom_call.1} parent=11 // pred_check
          %p321 = pneg %p217
        $region42: #{tpu_custom_call.1} parent=11 // pred_check_branch
          %323 = sbr.rel (%p321) target = $region44
        $region43: #{tpu_custom_call.1} parent=11 // pred_region
          _
        $region44: #{tpu_custom_call.1} parent=11 // pred_fallthru
          _
        // Predicated region
        $region45: #{tpu_custom_call.1} parent=11 // pred_check
          %p324 = pneg %p238
        $region46: #{tpu_custom_call.1} parent=11 // pred_check_branch
          %326 = sbr.rel (%p324) target = $region48
        $region47: #{tpu_custom_call.1} parent=11 // pred_region
          _
        $region48: #{tpu_custom_call.1} parent=11 // pred_fallthru
          _
        // Predicated region
        $region49: #{tpu_custom_call.1} parent=11 // pred_check
          %p327 = pneg %p259
        $region50: #{tpu_custom_call.1} parent=11 // pred_check_branch
          %329 = sbr.rel (%p327) target = $region52
        $region51: #{tpu_custom_call.1} parent=11 // pred_region
          _
        $region52: #{tpu_custom_call.1} parent=11 // pred_fallthru
          _
      $region12: #{tpu_custom_call.1} parent=5 // pred_fallthru
        _
      %p330 = scmp.lt.s32.totalorder %s23, 2
      // Predicated region
      $region53: #{tpu_custom_call.1} parent=5 // pred_check
        %p331 = pneg %p330
      $region54: #{tpu_custom_call.1} parent=5 // pred_check_branch
        %333 = sbr.rel (%p331) target = $region56
      $region55: #{tpu_custom_call.1} parent=5 // pred_region
        // Predicated region
        $region57: #{tpu_custom_call.1} parent=55 // pred_check
          %p334 = pneg %p43
        $region58: #{tpu_custom_call.1} parent=55 // pred_check_branch
          %336 = sbr.rel (%p334) target = $region60
        $region59: #{tpu_custom_call.1} parent=55 // pred_region
          %s337 = sand.u32 %s33, 1
          %s338 = scalar_lea.sflag [#allocation3], %s337
          %s339 = sand.u32 %s33, 1
          %s340 = smul.addr %s339, 256
          %s341 = scalar_lea.vmem [#allocation2], %s340
          %343 = vsyncadd %s338, 0
          %s344 = smul.addr %s23, 32
          %s345 = smul.addr %s344, 8
          %s346 = scalar_lea.hbm %s0, %s345
          %s347 = sshll.u32 %s346, 4
          %s348 = int_to_ptr.hbm [resolvable:$true] %s347
          %s349 = sshll.u32 %s341, 4
          %s350 = int_to_ptr.vmem [resolvable:$true] %s349
          %355 = dma.hbm_to_vmem [thread:$0]  %s348, 4096, %s350, %s338, 128, 128, 8
        $region60: #{tpu_custom_call.1} parent=55 // pred_fallthru
          _
      $region56: #{tpu_custom_call.1} parent=5 // pred_fallthru
        _
      %p356 = scmp.le.s32.totalorder 1, %s23
      %p357 = scmp.lt.s32.totalorder %s23, 3
      %p358 = pnand %p356, %p357
      %p359 = pneg %p358
      // Predicated region
      $region61: #{tpu_custom_call.1} parent=5 // pred_check
        _
      $region62: #{tpu_custom_call.1} parent=5 // pred_check_branch
        %361 = sbr.rel (%p358) target = $region64
      $region63: #{tpu_custom_call.1} parent=5 // pred_region
        %s362 = ssub.s32 %s23, 1
        %s363 = sand.u32 %s36, 1
        %s364 = scalar_lea.sflag [#allocation3], %s363
        %s365 = sand.u32 %s36, 1
        %s366 = smul.addr %s365, 256
        %s367 = scalar_lea.vmem [#allocation2], %s366
        // Predicated region
        $region65: #{tpu_custom_call.1} parent=63 // pred_check
          %p368 = pneg %p49
        $region66: #{tpu_custom_call.1} parent=63 // pred_check_branch
          %370 = sbr.rel (%p368) target = $region68
        $region67: #{tpu_custom_call.1} parent=63 // pred_region
          %372 = dma.done %s364, 4096
        $region68: #{tpu_custom_call.1} parent=63 // pred_fallthru
          _
        %s373 = sand.u32 %s36, 1
        %s374 = scalar_lea.sflag [#allocation3], %s373
        %s375 = sand.u32 %s36, 1
        %s376 = smul.addr %s375, 256
        %s377 = scalar_lea.vmem [#allocation2], %s376
        %p378 = pneg %p49
        %p379 = pneg %p46
        %p380 = pneg %p70
        %p381 = pneg %p67
        %p382 = pneg %p91
        %p383 = pneg %p88
        %p384 = pneg %p112
        %p385 = pneg %p109
        %p386 = pneg %p133
        %p387 = pneg %p130
        %p388 = pneg %p154
        %p389 = pneg %p151
        %p390 = pneg %p175
        %p391 = pneg %p172
        %p392 = pneg %p196
        %p393 = pneg %p193
        %p394 = pneg %p217
        %p395 = pneg %p214
        %p396 = pneg %p238
        %p397 = pneg %p235
        %p398 = pneg %p259
        %p399 = pneg %p256
        %p400 = pneg %p285
        %p401 = pneg %p282
        %s402 = sand.u32 %s272, 1
        %s403 = scalar_lea.sflag [#allocation4], %s402
        %s404 = sand.u32 %s272, 1
        %s405 = smul.addr %s404, 256
        %s406 = scalar_lea.vmem [#allocation5], %s405
        %v408 = vld [vmem:[%s367] sm:$0xff]
        %v409 = vld [vmem:[%s367 + $0x8] sm:$0xff]
        %v410 = vld [vmem:[%s367 + $0x10] sm:$0xff]
        %v411 = vld [vmem:[%s367 + $0x18] sm:$0xff]
        %v412 = vld [vmem:[%s367 + $0x20] sm:$0xff]
        %v413 = vld [vmem:[%s367 + $0x28] sm:$0xff]
        %v414 = vld [vmem:[%s367 + $0x30] sm:$0xff]
        %v415 = vld [vmem:[%s367 + $0x38] sm:$0xff]
        %v416 = vld [vmem:[%s367 + $0x40] sm:$0xff]
        %v417 = vld [vmem:[%s367 + $0x48] sm:$0xff]
        %v418 = vld [vmem:[%s367 + $0x50] sm:$0xff]
        %v419 = vld [vmem:[%s367 + $0x58] sm:$0xff]
        %v420 = vld [vmem:[%s367 + $0x60] sm:$0xff]
        %v421 = vld [vmem:[%s367 + $0x68] sm:$0xff]
        %v422 = vld [vmem:[%s367 + $0x70] sm:$0xff]
        %v423 = vld [vmem:[%s367 + $0x78] sm:$0xff]
        %v424 = vld [vmem:[%s367 + $0x80] sm:$0xff]
        %v425 = vld [vmem:[%s367 + $0x88] sm:$0xff]
        %v426 = vld [vmem:[%s367 + $0x90] sm:$0xff]
        %v427 = vld [vmem:[%s367 + $0x98] sm:$0xff]
        %v428 = vld [vmem:[%s367 + $0xa0] sm:$0xff]
        %v429 = vld [vmem:[%s367 + $0xa8] sm:$0xff]
        %v430 = vld [vmem:[%s367 + $0xb0] sm:$0xff]
        %v431 = vld [vmem:[%s367 + $0xb8] sm:$0xff]
        %v432 = vld [vmem:[%s367 + $0xc0] sm:$0xff]
        %v433 = vld [vmem:[%s367 + $0xc8] sm:$0xff]
        %v434 = vld [vmem:[%s367 + $0xd0] sm:$0xff]
        %v435 = vld [vmem:[%s367 + $0xd8] sm:$0xff]
        %v436 = vld [vmem:[%s367 + $0xe0] sm:$0xff]
        %v437 = vld [vmem:[%s367 + $0xe8] sm:$0xff]
        %v438 = vld [vmem:[%s367 + $0xf0] sm:$0xff]
        %v439 = vld [vmem:[%s367 + $0xf8] sm:$0xff]
        %v440 = vpack.c.bf16 %v409, %v408
        %v441 = vpack.c.bf16 %v411, %v410
        %v442 = vpack.c.bf16 %v413, %v412
        %v443 = vpack.c.bf16 %v415, %v414
        %v444 = vpack.c.bf16 %v417, %v416
        %v445 = vpack.c.bf16 %v419, %v418
        %v446 = vpack.c.bf16 %v421, %v420
        %v447 = vpack.c.bf16 %v423, %v422
        %v448 = vpack.c.bf16 %v425, %v424
        %v449 = vpack.c.bf16 %v427, %v426
        %v450 = vpack.c.bf16 %v429, %v428
        %v451 = vpack.c.bf16 %v431, %v430
        %v452 = vpack.c.bf16 %v433, %v432
        %v453 = vpack.c.bf16 %v435, %v434
        %v454 = vpack.c.bf16 %v437, %v436
        %v455 = vpack.c.bf16 %v439, %v438
        %v456 = vld [vmem:[%s1] sm:$0xff]
        %v457 = vld [vmem:[%s1 + $0x8] sm:$0xff]
        %v458 = vld [vmem:[%s1 + $0x10] sm:$0xff]
        %v459 = vld [vmem:[%s1 + $0x18] sm:$0xff]
        %v460 = vpack.c.bf16 %v457, %v456
        %v461 = vpack.c.bf16 %v459, %v458
        %vm462 = vcmask 261120
        %v464 = vsel %vm462, %v440, 0
        %v467 = vsel %vm462, %v441, 0
        %v470 = vsel %vm462, %v442, 0
        %v473 = vsel %vm462, %v443, 0
        %v476 = vsel %vm462, %v444, 0
        %v479 = vsel %vm462, %v445, 0
        %v482 = vsel %vm462, %v446, 0
        %v485 = vsel %vm462, %v447, 0
        %v488 = vsel %vm462, %v448, 0
        %v491 = vsel %vm462, %v449, 0
        %v494 = vsel %vm462, %v450, 0
        %v497 = vsel %vm462, %v451, 0
        %v500 = vsel %vm462, %v452, 0
        %v503 = vsel %vm462, %v453, 0
        %v506 = vsel %vm462, %v454, 0
        %v509 = vsel %vm462, %v455, 0
        %511 = vmatpush.bf16.msra.mxu0 0
        %512 = vmatpush.bf16.msra.mxu0 0
        %513 = vmatpush.bf16.msra.mxu0 0
        %514 = vmatpush.bf16.msra.mxu0 0
        %515 = vmatpush.bf16.msra.mxu0 0
        %516 = vmatpush.bf16.msra.mxu0 0
        %517 = vmatpush.bf16.msra.mxu0 %v461
        %518 = vmatpush.bf16.msra.mxu0 %v460
        %519 = vmatmul.bf16.gmra.mxu0 %v464
        %v520 = vpop.f32.mrf.mxu0
        %v521 = vadd.f32 0.0, %v520
        %v522 = vpop.f32.mrf.mxu0
        %v523 = vadd.f32 0.0, %v522
        %524 = vmatmul.bf16.gmra.mxu0 %v467
        %v525 = vpop.f32.mrf.mxu0
        %v526 = vadd.f32 0.0, %v525
        %v527 = vpop.f32.mrf.mxu0
        %v528 = vadd.f32 0.0, %v527
        %529 = vmatmul.bf16.gmra.mxu0 %v470
        %v530 = vpop.f32.mrf.mxu0
        %v531 = vadd.f32 0.0, %v530
        %v532 = vpop.f32.mrf.mxu0
        %v533 = vadd.f32 0.0, %v532
        %534 = vmatmul.bf16.gmra.mxu0 %v473
        %v535 = vpop.f32.mrf.mxu0
        %v536 = vadd.f32 0.0, %v535
        %v537 = vpop.f32.mrf.mxu0
        %v538 = vadd.f32 0.0, %v537
        %539 = vmatmul.bf16.gmra.mxu0 %v476
        %v540 = vpop.f32.mrf.mxu0
        %v541 = vadd.f32 0.0, %v540
        %v542 = vpop.f32.mrf.mxu0
        %v543 = vadd.f32 0.0, %v542
        %544 = vmatmul.bf16.gmra.mxu0 %v479
        %v545 = vpop.f32.mrf.mxu0
        %v546 = vadd.f32 0.0, %v545
        %v547 = vpop.f32.mrf.mxu0
        %v548 = vadd.f32 0.0, %v547
        %549 = vmatmul.bf16.gmra.mxu0 %v482
        %v550 = vpop.f32.mrf.mxu0
        %v551 = vadd.f32 0.0, %v550
        %v552 = vpop.f32.mrf.mxu0
        %v553 = vadd.f32 0.0, %v552
        %554 = vmatmul.bf16.gmra.mxu0 %v485
        %v555 = vpop.f32.mrf.mxu0
        %v556 = vadd.f32 0.0, %v555
        %v557 = vpop.f32.mrf.mxu0
        %v558 = vadd.f32 0.0, %v557
        %559 = vmatmul.bf16.gmra.mxu0 %v488
        %v560 = vpop.f32.mrf.mxu0
        %v561 = vadd.f32 0.0, %v560
        %v562 = vpop.f32.mrf.mxu0
        %v563 = vadd.f32 0.0, %v562
        %564 = vmatmul.bf16.gmra.mxu0 %v491
        %v565 = vpop.f32.mrf.mxu0
        %v566 = vadd.f32 0.0, %v565
        %v567 = vpop.f32.mrf.mxu0
        %v568 = vadd.f32 0.0, %v567
        %569 = vmatmul.bf16.gmra.mxu0 %v494
        %v570 = vpop.f32.mrf.mxu0
        %v571 = vadd.f32 0.0, %v570
        %v572 = vpop.f32.mrf.mxu0
        %v573 = vadd.f32 0.0, %v572
        %574 = vmatmul.bf16.gmra.mxu0 %v497
        %v575 = vpop.f32.mrf.mxu0
        %v576 = vadd.f32 0.0, %v575
        %v577 = vpop.f32.mrf.mxu0
        %v578 = vadd.f32 0.0, %v577
        %579 = vmatmul.bf16.gmra.mxu0 %v500
        %v580 = vpop.f32.mrf.mxu0
        %v581 = vadd.f32 0.0, %v580
        %v582 = vpop.f32.mrf.mxu0
        %v583 = vadd.f32 0.0, %v582
        %584 = vmatmul.bf16.gmra.mxu0 %v503
        %v585 = vpop.f32.mrf.mxu0
        %v586 = vadd.f32 0.0, %v585
        %v587 = vpop.f32.mrf.mxu0
        %v588 = vadd.f32 0.0, %v587
        %589 = vmatmul.bf16.gmra.mxu0 %v506
        %v590 = vpop.f32.mrf.mxu0
        %v591 = vadd.f32 0.0, %v590
        %v592 = vpop.f32.mrf.mxu0
        %v593 = vadd.f32 0.0, %v592
        %594 = vmatmul.bf16.gmra.mxu0 %v509
        %v595 = vpop.f32.mrf.mxu0
        %v596 = vadd.f32 0.0, %v595
        %v597 = vpop.f32.mrf.mxu0
        %v598 = vadd.f32 0.0, %v597
        %599 = vdwg.mxu0
        %v600 = vld [vmem:[%s2] sm:$0x1]
        %v602 = vperm.slane %v600, 0
        %v604 = vmul.f32 %v521, %v602
        %v605 = vmul.f32 %v523, %v602
        %v606 = vmul.f32 %v526, %v602
        %v607 = vmul.f32 %v528, %v602
        %v608 = vmul.f32 %v531, %v602
        %v609 = vmul.f32 %v533, %v602
        %v610 = vmul.f32 %v536, %v602
        %v611 = vmul.f32 %v538, %v602
        %v612 = vmul.f32 %v541, %v602
        %v613 = vmul.f32 %v543, %v602
        %v614 = vmul.f32 %v546, %v602
        %v615 = vmul.f32 %v548, %v602
        %v616 = vmul.f32 %v551, %v602
        %v617 = vmul.f32 %v553, %v602
        %v618 = vmul.f32 %v556, %v602
        %v619 = vmul.f32 %v558, %v602
        %v620 = vmul.f32 %v561, %v602
        %v621 = vmul.f32 %v563, %v602
        %v622 = vmul.f32 %v566, %v602
        %v623 = vmul.f32 %v568, %v602
        %v624 = vmul.f32 %v571, %v602
        %v625 = vmul.f32 %v573, %v602
        %v626 = vmul.f32 %v576, %v602
        %v627 = vmul.f32 %v578, %v602
        %v628 = vmul.f32 %v581, %v602
        %v629 = vmul.f32 %v583, %v602
        %v630 = vmul.f32 %v586, %v602
        %v631 = vmul.f32 %v588, %v602
        %v632 = vmul.f32 %v591, %v602
        %v633 = vmul.f32 %v593, %v602
        %v634 = vmul.f32 %v596, %v602
        %v635 = vmul.f32 %v598, %v602
        %v636 = vld [vmem:[%s3] sm:$0x1]
        %v638 = vperm.slane %v636, 0
        %v640 = vadd.f32 %v604, %v638
        %v641 = vadd.f32 %v605, %v638
        %v642 = vadd.f32 %v606, %v638
        %v643 = vadd.f32 %v607, %v638
        %v644 = vadd.f32 %v608, %v638
        %v645 = vadd.f32 %v609, %v638
        %v646 = vadd.f32 %v610, %v638
        %v647 = vadd.f32 %v611, %v638
        %v648 = vadd.f32 %v612, %v638
        %v649 = vadd.f32 %v613, %v638
        %v650 = vadd.f32 %v614, %v638
        %v651 = vadd.f32 %v615, %v638
        %v652 = vadd.f32 %v616, %v638
        %v653 = vadd.f32 %v617, %v638
        %v654 = vadd.f32 %v618, %v638
        %v655 = vadd.f32 %v619, %v638
        %v656 = vadd.f32 %v620, %v638
        %v657 = vadd.f32 %v621, %v638
        %v658 = vadd.f32 %v622, %v638
        %v659 = vadd.f32 %v623, %v638
        %v660 = vadd.f32 %v624, %v638
        %v661 = vadd.f32 %v625, %v638
        %v662 = vadd.f32 %v626, %v638
        %v663 = vadd.f32 %v627, %v638
        %v664 = vadd.f32 %v628, %v638
        %v665 = vadd.f32 %v629, %v638
        %v666 = vadd.f32 %v630, %v638
        %v667 = vadd.f32 %v631, %v638
        %v668 = vadd.f32 %v632, %v638
        %v669 = vadd.f32 %v633, %v638
        %v670 = vadd.f32 %v634, %v638
        %v671 = vadd.f32 %v635, %v638
        %v672 = vmul.f32 %v640, 0.5
        %v673 = vmul.f32 %v641, 0.5
        %v674 = vmul.f32 %v642, 0.5
        %v675 = vmul.f32 %v643, 0.5
        %v676 = vmul.f32 %v644, 0.5
        %v677 = vmul.f32 %v645, 0.5
        %v678 = vmul.f32 %v646, 0.5
        %v679 = vmul.f32 %v647, 0.5
        %v680 = vmul.f32 %v648, 0.5
        %v681 = vmul.f32 %v649, 0.5
        %v682 = vmul.f32 %v650, 0.5
        %v683 = vmul.f32 %v651, 0.5
        %v684 = vmul.f32 %v652, 0.5
        %v685 = vmul.f32 %v653, 0.5
        %v686 = vmul.f32 %v654, 0.5
        %v687 = vmul.f32 %v655, 0.5
        %v688 = vmul.f32 %v656, 0.5
        %v689 = vmul.f32 %v657, 0.5
        %v690 = vmul.f32 %v658, 0.5
        %v691 = vmul.f32 %v659, 0.5
        %v692 = vmul.f32 %v660, 0.5
        %v693 = vmul.f32 %v661, 0.5
        %v694 = vmul.f32 %v662, 0.5
        %v695 = vmul.f32 %v663, 0.5
        %v696 = vmul.f32 %v664, 0.5
        %v697 = vmul.f32 %v665, 0.5
        %v698 = vmul.f32 %v666, 0.5
        %v699 = vmul.f32 %v667, 0.5
        %v700 = vmul.f32 %v668, 0.5
        %v701 = vmul.f32 %v669, 0.5
        %v702 = vmul.f32 %v670, 0.5
        %v703 = vmul.f32 %v671, 0.5
        %v704 = vmul.f32 %v640, 0.70710677
        %v705 = vmul.f32 %v641, 0.70710677
        %v706 = vmul.f32 %v642, 0.70710677
        %v707 = vmul.f32 %v643, 0.70710677
        %v708 = vmul.f32 %v644, 0.70710677
        %v709 = vmul.f32 %v645, 0.70710677
        %v710 = vmul.f32 %v646, 0.70710677
        %v711 = vmul.f32 %v647, 0.70710677
        %v712 = vmul.f32 %v648, 0.70710677
        %v713 = vmul.f32 %v649, 0.70710677
        %v714 = vmul.f32 %v650, 0.70710677
        %v715 = vmul.f32 %v651, 0.70710677
        %v716 = vmul.f32 %v652, 0.70710677
        %v717 = vmul.f32 %v653, 0.70710677
        %v718 = vmul.f32 %v654, 0.70710677
        %v719 = vmul.f32 %v655, 0.70710677
        %v720 = vmul.f32 %v656, 0.70710677
        %v721 = vmul.f32 %v657, 0.70710677
        %v722 = vmul.f32 %v658, 0.70710677
        %v723 = vmul.f32 %v659, 0.70710677
        %v724 = vmul.f32 %v660, 0.70710677
        %v725 = vmul.f32 %v661, 0.70710677
        %v726 = vmul.f32 %v662, 0.70710677
        %v727 = vmul.f32 %v663, 0.70710677
        %v728 = vmul.f32 %v664, 0.70710677
        %v729 = vmul.f32 %v665, 0.70710677
        %v730 = vmul.f32 %v666, 0.70710677
        %v731 = vmul.f32 %v667, 0.70710677
        %v732 = vmul.f32 %v668, 0.70710677
        %v733 = vmul.f32 %v669, 0.70710677
        %v734 = vmul.f32 %v670, 0.70710677
        %v735 = vmul.f32 %v671, 0.70710677
        %v736 = vmul.f32 %v704, %v704
        %v737 = vmin.f32 16.0, %v736
        %v738 = vmul.f32 %v737, 2.1237322e-06
        %v739 = vadd.f32 %v738, 0.00028619796
        %v740 = vmul.f32 %v737, %v739
        %v741 = vadd.f32 %v740, 0.0036580483
        %v742 = vmul.f32 %v737, %v741
        %v743 = vadd.f32 %v742, 0.05243302
        %v744 = vmul.f32 %v737, %v743
        %v745 = vadd.f32 %v744, 0.18741608
        %v746 = vmul.f32 %v737, %v745
        %v747 = vadd.f32 %v746, 1.1283791
        %v748 = vmul.f32 %v704, %v747
        %v749 = vmul.f32 %v737, 3.8918573e-05
        %v750 = vadd.f32 %v749, 0.001143296
        %v751 = vmul.f32 %v737, %v750
        %v752 = vadd.f32 %v751, 0.014752088
        %v753 = vmul.f32 %v737, %v752
        %v754 = vadd.f32 %v753, 0.112945676
        %v755 = vmul.f32 %v737, %v754
        %v756 = vadd.f32 %v755, 0.4994258
        %v757 = vmul.f32 %v737, %v756
        %v758 = vadd.f32 %v757, 1.0
        %v759 = vrcp.pop %v758
        %v760 = vmul.f32 %v758, %v759
        %v761 = vsub.f32 1.0, %v760
        %v762 = vmul.f32 %v759, %v761
        %v763 = vadd.f32 %v759, %v762
        %vm764 = vweird.f32 %v758
        %vm765 = vweird.f32 %v759
        %vm766 = vmor %vm764, %vm765
        %v767 = vsel %vm766, %v759, %v763
        %v768 = vand.u32 2147483647, %v758
        %vm769 = vcmp.eq.f32.partialorder %v768, 8.507059e+37
        %v770 = vand.u32 %v758, 2147483648
        %v771 = vor.u32 1.1754944e-38, %v770
        %v772 = vsel %vm769, %v771, %v767
        %v773 = vmul.f32 %v748, %v772
        %v774 = vmin.f32 %v773, 1.0
        %v775 = vmax.f32 %v774, -1.0
        %v776 = vmul.f32 %v705, %v705
        %v777 = vmin.f32 16.0, %v776
        %v778 = vmul.f32 %v777, 2.1237322e-06
        %v779 = vadd.f32 %v778, 0.00028619796
        %v780 = vmul.f32 %v777, %v779
        %v781 = vadd.f32 %v780, 0.0036580483
        %v782 = vmul.f32 %v777, %v781
        %v783 = vadd.f32 %v782, 0.05243302
        %v784 = vmul.f32 %v777, %v783
        %v785 = vadd.f32 %v784, 0.18741608
        %v786 = vmul.f32 %v777, %v785
        %v787 = vadd.f32 %v786, 1.1283791
        %v788 = vmul.f32 %v705, %v787
        %v789 = vmul.f32 %v777, 3.8918573e-05
        %v790 = vadd.f32 %v789, 0.001143296
        %v791 = vmul.f32 %v777, %v790
        %v792 = vadd.f32 %v791, 0.014752088
        %v793 = vmul.f32 %v777, %v792
        %v794 = vadd.f32 %v793, 0.112945676
        %v795 = vmul.f32 %v777, %v794
        %v796 = vadd.f32 %v795, 0.4994258
        %v797 = vmul.f32 %v777, %v796
        %v798 = vadd.f32 %v797, 1.0
        %v799 = vrcp.pop %v798
        %v800 = vmul.f32 %v798, %v799
        %v801 = vsub.f32 1.0, %v800
        %v802 = vmul.f32 %v799, %v801
        %v803 = vadd.f32 %v799, %v802
        %vm804 = vweird.f32 %v798
        %vm805 = vweird.f32 %v799
        %vm806 = vmor %vm804, %vm805
        %v807 = vsel %vm806, %v799, %v803
        %v808 = vand.u32 2147483647, %v798
        %vm809 = vcmp.eq.f32.partialorder %v808, 8.507059e+37
        %v810 = vand.u32 %v798, 2147483648
        %v811 = vor.u32 1.1754944e-38, %v810
        %v812 = vsel %vm809, %v811, %v807
        %v813 = vmul.f32 %v788, %v812
        %v814 = vmin.f32 %v813, 1.0
        %v815 = vmax.f32 %v814, -1.0
        %v816 = vmul.f32 %v706, %v706
        %v817 = vmin.f32 16.0, %v816
        %v818 = vmul.f32 %v817, 2.1237322e-06
        %v819 = vadd.f32 %v818, 0.00028619796
        %v820 = vmul.f32 %v817, %v819
        %v821 = vadd.f32 %v820, 0.0036580483
        %v822 = vmul.f32 %v817, %v821
        %v823 = vadd.f32 %v822, 0.05243302
        %v824 = vmul.f32 %v817, %v823
        %v825 = vadd.f32 %v824, 0.18741608
        %v826 = vmul.f32 %v817, %v825
        %v827 = vadd.f32 %v826, 1.1283791
        %v828 = vmul.f32 %v706, %v827
        %v829 = vmul.f32 %v817, 3.8918573e-05
        %v830 = vadd.f32 %v829, 0.001143296
        %v831 = vmul.f32 %v817, %v830
        %v832 = vadd.f32 %v831, 0.014752088
        %v833 = vmul.f32 %v817, %v832
        %v834 = vadd.f32 %v833, 0.112945676
        %v835 = vmul.f32 %v817, %v834
        %v836 = vadd.f32 %v835, 0.4994258
        %v837 = vmul.f32 %v817, %v836
        %v838 = vadd.f32 %v837, 1.0
        %v839 = vrcp.pop %v838
        %v840 = vmul.f32 %v838, %v839
        %v841 = vsub.f32 1.0, %v840
        %v842 = vmul.f32 %v839, %v841
        %v843 = vadd.f32 %v839, %v842
        %vm844 = vweird.f32 %v838
        %vm845 = vweird.f32 %v839
        %vm846 = vmor %vm844, %vm845
        %v847 = vsel %vm846, %v839, %v843
        %v848 = vand.u32 2147483647, %v838
        %vm849 = vcmp.eq.f32.partialorder %v848, 8.507059e+37
        %v850 = vand.u32 %v838, 2147483648
        %v851 = vor.u32 1.1754944e-38, %v850
        %v852 = vsel %vm849, %v851, %v847
        %v853 = vmul.f32 %v828, %v852
        %v854 = vmin.f32 %v853, 1.0
        %v855 = vmax.f32 %v854, -1.0
        %v856 = vmul.f32 %v707, %v707
        %v857 = vmin.f32 16.0, %v856
        %v858 = vmul.f32 %v857, 2.1237322e-06
        %v859 = vadd.f32 %v858, 0.00028619796
        %v860 = vmul.f32 %v857, %v859
        %v861 = vadd.f32 %v860, 0.0036580483
        %v862 = vmul.f32 %v857, %v861
        %v863 = vadd.f32 %v862, 0.05243302
        %v864 = vmul.f32 %v857, %v863
        %v865 = vadd.f32 %v864, 0.18741608
        %v866 = vmul.f32 %v857, %v865
        %v867 = vadd.f32 %v866, 1.1283791
        %v868 = vmul.f32 %v707, %v867
        %v869 = vmul.f32 %v857, 3.8918573e-05
        %v870 = vadd.f32 %v869, 0.001143296
        %v871 = vmul.f32 %v857, %v870
        %v872 = vadd.f32 %v871, 0.014752088
        %v873 = vmul.f32 %v857, %v872
        %v874 = vadd.f32 %v873, 0.112945676
        %v875 = vmul.f32 %v857, %v874
        %v876 = vadd.f32 %v875, 0.4994258
        %v877 = vmul.f32 %v857, %v876
        %v878 = vadd.f32 %v877, 1.0
        %v879 = vrcp.pop %v878
        %v880 = vmul.f32 %v878, %v879
        %v881 = vsub.f32 1.0, %v880
        %v882 = vmul.f32 %v879, %v881
        %v883 = vadd.f32 %v879, %v882
        %vm884 = vweird.f32 %v878
        %vm885 = vweird.f32 %v879
        %vm886 = vmor %vm884, %vm885
        %v887 = vsel %vm886, %v879, %v883
        %v888 = vand.u32 2147483647, %v878
        %vm889 = vcmp.eq.f32.partialorder %v888, 8.507059e+37
        %v890 = vand.u32 %v878, 2147483648
        %v891 = vor.u32 1.1754944e-38, %v890
        %v892 = vsel %vm889, %v891, %v887
        %v893 = vmul.f32 %v868, %v892
        %v894 = vmin.f32 %v893, 1.0
        %v895 = vmax.f32 %v894, -1.0
        %v896 = vmul.f32 %v708, %v708
        %v897 = vmin.f32 16.0, %v896
        %v898 = vmul.f32 %v897, 2.1237322e-06
        %v899 = vadd.f32 %v898, 0.00028619796
        %v900 = vmul.f32 %v897, %v899
        %v901 = vadd.f32 %v900, 0.0036580483
        %v902 = vmul.f32 %v897, %v901
        %v903 = vadd.f32 %v902, 0.05243302
        %v904 = vmul.f32 %v897, %v903
        %v905 = vadd.f32 %v904, 0.18741608
        %v906 = vmul.f32 %v897, %v905
        %v907 = vadd.f32 %v906, 1.1283791
        %v908 = vmul.f32 %v708, %v907
        %v909 = vmul.f32 %v897, 3.8918573e-05
        %v910 = vadd.f32 %v909, 0.001143296
        %v911 = vmul.f32 %v897, %v910
        %v912 = vadd.f32 %v911, 0.014752088
        %v913 = vmul.f32 %v897, %v912
        %v914 = vadd.f32 %v913, 0.112945676
        %v915 = vmul.f32 %v897, %v914
        %v916 = vadd.f32 %v915, 0.4994258
        %v917 = vmul.f32 %v897, %v916
        %v918 = vadd.f32 %v917, 1.0
        %v919 = vrcp.pop %v918
        %v920 = vmul.f32 %v918, %v919
        %v921 = vsub.f32 1.0, %v920
        %v922 = vmul.f32 %v919, %v921
        %v923 = vadd.f32 %v919, %v922
        %vm924 = vweird.f32 %v918
        %vm925 = vweird.f32 %v919
        %vm926 = vmor %vm924, %vm925
        %v927 = vsel %vm926, %v919, %v923
        %v928 = vand.u32 2147483647, %v918
        %vm929 = vcmp.eq.f32.partialorder %v928, 8.507059e+37
        %v930 = vand.u32 %v918, 2147483648
        %v931 = vor.u32 1.1754944e-38, %v930
        %v932 = vsel %vm929, %v931, %v927
        %v933 = vmul.f32 %v908, %v932
        %v934 = vmin.f32 %v933, 1.0
        %v935 = vmax.f32 %v934, -1.0
        %v936 = vmul.f32 %v709, %v709
        %v937 = vmin.f32 16.0, %v936
        %v938 = vmul.f32 %v937, 2.1237322e-06
        %v939 = vadd.f32 %v938, 0.00028619796
        %v940 = vmul.f32 %v937, %v939
        %v941 = vadd.f32 %v940, 0.0036580483
        %v942 = vmul.f32 %v937, %v941
        %v943 = vadd.f32 %v942, 0.05243302
        %v944 = vmul.f32 %v937, %v943
        %v945 = vadd.f32 %v944, 0.18741608
        %v946 = vmul.f32 %v937, %v945
        %v947 = vadd.f32 %v946, 1.1283791
        %v948 = vmul.f32 %v709, %v947
        %v949 = vmul.f32 %v937, 3.8918573e-05
        %v950 = vadd.f32 %v949, 0.001143296
        %v951 = vmul.f32 %v937, %v950
        %v952 = vadd.f32 %v951, 0.014752088
        %v953 = vmul.f32 %v937, %v952
        %v954 = vadd.f32 %v953, 0.112945676
        %v955 = vmul.f32 %v937, %v954
        %v956 = vadd.f32 %v955, 0.4994258
        %v957 = vmul.f32 %v937, %v956
        %v958 = vadd.f32 %v957, 1.0
        %v959 = vrcp.pop %v958
        %v960 = vmul.f32 %v958, %v959
        %v961 = vsub.f32 1.0, %v960
        %v962 = vmul.f32 %v959, %v961
        %v963 = vadd.f32 %v959, %v962
        %vm964 = vweird.f32 %v958
        %vm965 = vweird.f32 %v959
        %vm966 = vmor %vm964, %vm965
        %v967 = vsel %vm966, %v959, %v963
        %v968 = vand.u32 2147483647, %v958
        %vm969 = vcmp.eq.f32.partialorder %v968, 8.507059e+37
        %v970 = vand.u32 %v958, 2147483648
        %v971 = vor.u32 1.1754944e-38, %v970
        %v972 = vsel %vm969, %v971, %v967
        %v973 = vmul.f32 %v948, %v972
        %v974 = vmin.f32 %v973, 1.0
        %v975 = vmax.f32 %v974, -1.0
        %v976 = vmul.f32 %v710, %v710
        %v977 = vmin.f32 16.0, %v976
        %v978 = vmul.f32 %v977, 2.1237322e-06
        %v979 = vadd.f32 %v978, 0.00028619796
        %v980 = vmul.f32 %v977, %v979
        %v981 = vadd.f32 %v980, 0.0036580483
        %v982 = vmul.f32 %v977, %v981
        %v983 = vadd.f32 %v982, 0.05243302
        %v984 = vmul.f32 %v977, %v983
        %v985 = vadd.f32 %v984, 0.18741608
        %v986 = vmul.f32 %v977, %v985
        %v987 = vadd.f32 %v986, 1.1283791
        %v988 = vmul.f32 %v710, %v987
        %v989 = vmul.f32 %v977, 3.8918573e-05
        %v990 = vadd.f32 %v989, 0.001143296
        %v991 = vmul.f32 %v977, %v990
        %v992 = vadd.f32 %v991, 0.014752088
        %v993 = vmul.f32 %v977, %v992
        %v994 = vadd.f32 %v993, 0.112945676
        %v995 = vmul.f32 %v977, %v994
        %v996 = vadd.f32 %v995, 0.4994258
        %v997 = vmul.f32 %v977, %v996
        %v998 = vadd.f32 %v997, 1.0
        %v999 = vrcp.pop %v998
        %v1000 = vmul.f32 %v998, %v999
        %v1001 = vsub.f32 1.0, %v1000
        %v1002 = vmul.f32 %v999, %v1001
        %v1003 = vadd.f32 %v999, %v1002
        %vm1004 = vweird.f32 %v998
        %vm1005 = vweird.f32 %v999
        %vm1006 = vmor %vm1004, %vm1005
        %v1007 = vsel %vm1006, %v999, %v1003
        %v1008 = vand.u32 2147483647, %v998
        %vm1009 = vcmp.eq.f32.partialorder %v1008, 8.507059e+37
        %v1010 = vand.u32 %v998, 2147483648
        %v1011 = vor.u32 1.1754944e-38, %v1010
        %v1012 = vsel %vm1009, %v1011, %v1007
        %v1013 = vmul.f32 %v988, %v1012
        %v1014 = vmin.f32 %v1013, 1.0
        %v1015 = vmax.f32 %v1014, -1.0
        %v1016 = vmul.f32 %v711, %v711
        %v1017 = vmin.f32 16.0, %v1016
        %v1018 = vmul.f32 %v1017, 2.1237322e-06
        %v1019 = vadd.f32 %v1018, 0.00028619796
        %v1020 = vmul.f32 %v1017, %v1019
        %v1021 = vadd.f32 %v1020, 0.0036580483
        %v1022 = vmul.f32 %v1017, %v1021
        %v1023 = vadd.f32 %v1022, 0.05243302
        %v1024 = vmul.f32 %v1017, %v1023
        %v1025 = vadd.f32 %v1024, 0.18741608
        %v1026 = vmul.f32 %v1017, %v1025
        %v1027 = vadd.f32 %v1026, 1.1283791
        %v1028 = vmul.f32 %v711, %v1027
        %v1029 = vmul.f32 %v1017, 3.8918573e-05
        %v1030 = vadd.f32 %v1029, 0.001143296
        %v1031 = vmul.f32 %v1017, %v1030
        %v1032 = vadd.f32 %v1031, 0.014752088
        %v1033 = vmul.f32 %v1017, %v1032
        %v1034 = vadd.f32 %v1033, 0.112945676
        %v1035 = vmul.f32 %v1017, %v1034
        %v1036 = vadd.f32 %v1035, 0.4994258
        %v1037 = vmul.f32 %v1017, %v1036
        %v1038 = vadd.f32 %v1037, 1.0
        %v1039 = vrcp.pop %v1038
        %v1040 = vmul.f32 %v1038, %v1039
        %v1041 = vsub.f32 1.0, %v1040
        %v1042 = vmul.f32 %v1039, %v1041
        %v1043 = vadd.f32 %v1039, %v1042
        %vm1044 = vweird.f32 %v1038
        %vm1045 = vweird.f32 %v1039
        %vm1046 = vmor %vm1044, %vm1045
        %v1047 = vsel %vm1046, %v1039, %v1043
        %v1048 = vand.u32 2147483647, %v1038
        %vm1049 = vcmp.eq.f32.partialorder %v1048, 8.507059e+37
        %v1050 = vand.u32 %v1038, 2147483648
        %v1051 = vor.u32 1.1754944e-38, %v1050
        %v1052 = vsel %vm1049, %v1051, %v1047
        %v1053 = vmul.f32 %v1028, %v1052
        %v1054 = vmin.f32 %v1053, 1.0
        %v1055 = vmax.f32 %v1054, -1.0
        %v1056 = vmul.f32 %v712, %v712
        %v1057 = vmin.f32 16.0, %v1056
        %v1058 = vmul.f32 %v1057, 2.1237322e-06
        %v1059 = vadd.f32 %v1058, 0.00028619796
        %v1060 = vmul.f32 %v1057, %v1059
        %v1061 = vadd.f32 %v1060, 0.0036580483
        %v1062 = vmul.f32 %v1057, %v1061
        %v1063 = vadd.f32 %v1062, 0.05243302
        %v1064 = vmul.f32 %v1057, %v1063
        %v1065 = vadd.f32 %v1064, 0.18741608
        %v1066 = vmul.f32 %v1057, %v1065
        %v1067 = vadd.f32 %v1066, 1.1283791
        %v1068 = vmul.f32 %v712, %v1067
        %v1069 = vmul.f32 %v1057, 3.8918573e-05
        %v1070 = vadd.f32 %v1069, 0.001143296
        %v1071 = vmul.f32 %v1057, %v1070
        %v1072 = vadd.f32 %v1071, 0.014752088
        %v1073 = vmul.f32 %v1057, %v1072
        %v1074 = vadd.f32 %v1073, 0.112945676
        %v1075 = vmul.f32 %v1057, %v1074
        %v1076 = vadd.f32 %v1075, 0.4994258
        %v1077 = vmul.f32 %v1057, %v1076
        %v1078 = vadd.f32 %v1077, 1.0
        %v1079 = vrcp.pop %v1078
        %v1080 = vmul.f32 %v1078, %v1079
        %v1081 = vsub.f32 1.0, %v1080
        %v1082 = vmul.f32 %v1079, %v1081
        %v1083 = vadd.f32 %v1079, %v1082
        %vm1084 = vweird.f32 %v1078
        %vm1085 = vweird.f32 %v1079
        %vm1086 = vmor %vm1084, %vm1085
        %v1087 = vsel %vm1086, %v1079, %v1083
        %v1088 = vand.u32 2147483647, %v1078
        %vm1089 = vcmp.eq.f32.partialorder %v1088, 8.507059e+37
        %v1090 = vand.u32 %v1078, 2147483648
        %v1091 = vor.u32 1.1754944e-38, %v1090
        %v1092 = vsel %vm1089, %v1091, %v1087
        %v1093 = vmul.f32 %v1068, %v1092
        %v1094 = vmin.f32 %v1093, 1.0
        %v1095 = vmax.f32 %v1094, -1.0
        %v1096 = vmul.f32 %v713, %v713
        %v1097 = vmin.f32 16.0, %v1096
        %v1098 = vmul.f32 %v1097, 2.1237322e-06
        %v1099 = vadd.f32 %v1098, 0.00028619796
        %v1100 = vmul.f32 %v1097, %v1099
        %v1101 = vadd.f32 %v1100, 0.0036580483
        %v1102 = vmul.f32 %v1097, %v1101
        %v1103 = vadd.f32 %v1102, 0.05243302
        %v1104 = vmul.f32 %v1097, %v1103
        %v1105 = vadd.f32 %v1104, 0.18741608
        %v1106 = vmul.f32 %v1097, %v1105
        %v1107 = vadd.f32 %v1106, 1.1283791
        %v1108 = vmul.f32 %v713, %v1107
        %v1109 = vmul.f32 %v1097, 3.8918573e-05
        %v1110 = vadd.f32 %v1109, 0.001143296
        %v1111 = vmul.f32 %v1097, %v1110
        %v1112 = vadd.f32 %v1111, 0.014752088
        %v1113 = vmul.f32 %v1097, %v1112
        %v1114 = vadd.f32 %v1113, 0.112945676
        %v1115 = vmul.f32 %v1097, %v1114
        %v1116 = vadd.f32 %v1115, 0.4994258
        %v1117 = vmul.f32 %v1097, %v1116
        %v1118 = vadd.f32 %v1117, 1.0
        %v1119 = vrcp.pop %v1118
        %v1120 = vmul.f32 %v1118, %v1119
        %v1121 = vsub.f32 1.0, %v1120
        %v1122 = vmul.f32 %v1119, %v1121
        %v1123 = vadd.f32 %v1119, %v1122
        %vm1124 = vweird.f32 %v1118
        %vm1125 = vweird.f32 %v1119
        %vm1126 = vmor %vm1124, %vm1125
        %v1127 = vsel %vm1126, %v1119, %v1123
        %v1128 = vand.u32 2147483647, %v1118
        %vm1129 = vcmp.eq.f32.partialorder %v1128, 8.507059e+37
        %v1130 = vand.u32 %v1118, 2147483648
        %v1131 = vor.u32 1.1754944e-38, %v1130
        %v1132 = vsel %vm1129, %v1131, %v1127
        %v1133 = vmul.f32 %v1108, %v1132
        %v1134 = vmin.f32 %v1133, 1.0
        %v1135 = vmax.f32 %v1134, -1.0
        %v1136 = vmul.f32 %v714, %v714
        %v1137 = vmin.f32 16.0, %v1136
        %v1138 = vmul.f32 %v1137, 2.1237322e-06
        %v1139 = vadd.f32 %v1138, 0.00028619796
        %v1140 = vmul.f32 %v1137, %v1139
        %v1141 = vadd.f32 %v1140, 0.0036580483
        %v1142 = vmul.f32 %v1137, %v1141
        %v1143 = vadd.f32 %v1142, 0.05243302
        %v1144 = vmul.f32 %v1137, %v1143
        %v1145 = vadd.f32 %v1144, 0.18741608
        %v1146 = vmul.f32 %v1137, %v1145
        %v1147 = vadd.f32 %v1146, 1.1283791
        %v1148 = vmul.f32 %v714, %v1147
        %v1149 = vmul.f32 %v1137, 3.8918573e-05
        %v1150 = vadd.f32 %v1149, 0.001143296
        %v1151 = vmul.f32 %v1137, %v1150
        %v1152 = vadd.f32 %v1151, 0.014752088
        %v1153 = vmul.f32 %v1137, %v1152
        %v1154 = vadd.f32 %v1153, 0.112945676
        %v1155 = vmul.f32 %v1137, %v1154
        %v1156 = vadd.f32 %v1155, 0.4994258
        %v1157 = vmul.f32 %v1137, %v1156
        %v1158 = vadd.f32 %v1157, 1.0
        %v1159 = vrcp.pop %v1158
        %v1160 = vmul.f32 %v1158, %v1159
        %v1161 = vsub.f32 1.0, %v1160
        %v1162 = vmul.f32 %v1159, %v1161
        %v1163 = vadd.f32 %v1159, %v1162
        %vm1164 = vweird.f32 %v1158
        %vm1165 = vweird.f32 %v1159
        %vm1166 = vmor %vm1164, %vm1165
        %v1167 = vsel %vm1166, %v1159, %v1163
        %v1168 = vand.u32 2147483647, %v1158
        %vm1169 = vcmp.eq.f32.partialorder %v1168, 8.507059e+37
        %v1170 = vand.u32 %v1158, 2147483648
        %v1171 = vor.u32 1.1754944e-38, %v1170
        %v1172 = vsel %vm1169, %v1171, %v1167
        %v1173 = vmul.f32 %v1148, %v1172
        %v1174 = vmin.f32 %v1173, 1.0
        %v1175 = vmax.f32 %v1174, -1.0
        %v1176 = vmul.f32 %v715, %v715
        %v1177 = vmin.f32 16.0, %v1176
        %v1178 = vmul.f32 %v1177, 2.1237322e-06
        %v1179 = vadd.f32 %v1178, 0.00028619796
        %v1180 = vmul.f32 %v1177, %v1179
        %v1181 = vadd.f32 %v1180, 0.0036580483
        %v1182 = vmul.f32 %v1177, %v1181
        %v1183 = vadd.f32 %v1182, 0.05243302
        %v1184 = vmul.f32 %v1177, %v1183
        %v1185 = vadd.f32 %v1184, 0.18741608
        %v1186 = vmul.f32 %v1177, %v1185
        %v1187 = vadd.f32 %v1186, 1.1283791
        %v1188 = vmul.f32 %v715, %v1187
        %v1189 = vmul.f32 %v1177, 3.8918573e-05
        %v1190 = vadd.f32 %v1189, 0.001143296
        %v1191 = vmul.f32 %v1177, %v1190
        %v1192 = vadd.f32 %v1191, 0.014752088
        %v1193 = vmul.f32 %v1177, %v1192
        %v1194 = vadd.f32 %v1193, 0.112945676
        %v1195 = vmul.f32 %v1177, %v1194
        %v1196 = vadd.f32 %v1195, 0.4994258
        %v1197 = vmul.f32 %v1177, %v1196
        %v1198 = vadd.f32 %v1197, 1.0
        %v1199 = vrcp.pop %v1198
        %v1200 = vmul.f32 %v1198, %v1199
        %v1201 = vsub.f32 1.0, %v1200
        %v1202 = vmul.f32 %v1199, %v1201
        %v1203 = vadd.f32 %v1199, %v1202
        %vm1204 = vweird.f32 %v1198
        %vm1205 = vweird.f32 %v1199
        %vm1206 = vmor %vm1204, %vm1205
        %v1207 = vsel %vm1206, %v1199, %v1203
        %v1208 = vand.u32 2147483647, %v1198
        %vm1209 = vcmp.eq.f32.partialorder %v1208, 8.507059e+37
        %v1210 = vand.u32 %v1198, 2147483648
        %v1211 = vor.u32 1.1754944e-38, %v1210
        %v1212 = vsel %vm1209, %v1211, %v1207
        %v1213 = vmul.f32 %v1188, %v1212
        %v1214 = vmin.f32 %v1213, 1.0
        %v1215 = vmax.f32 %v1214, -1.0
        %v1216 = vmul.f32 %v716, %v716
        %v1217 = vmin.f32 16.0, %v1216
        %v1218 = vmul.f32 %v1217, 2.1237322e-06
        %v1219 = vadd.f32 %v1218, 0.00028619796
        %v1220 = vmul.f32 %v1217, %v1219
        %v1221 = vadd.f32 %v1220, 0.0036580483
        %v1222 = vmul.f32 %v1217, %v1221
        %v1223 = vadd.f32 %v1222, 0.05243302
        %v1224 = vmul.f32 %v1217, %v1223
        %v1225 = vadd.f32 %v1224, 0.18741608
        %v1226 = vmul.f32 %v1217, %v1225
        %v1227 = vadd.f32 %v1226, 1.1283791
        %v1228 = vmul.f32 %v716, %v1227
        %v1229 = vmul.f32 %v1217, 3.8918573e-05
        %v1230 = vadd.f32 %v1229, 0.001143296
        %v1231 = vmul.f32 %v1217, %v1230
        %v1232 = vadd.f32 %v1231, 0.014752088
        %v1233 = vmul.f32 %v1217, %v1232
        %v1234 = vadd.f32 %v1233, 0.112945676
        %v1235 = vmul.f32 %v1217, %v1234
        %v1236 = vadd.f32 %v1235, 0.4994258
        %v1237 = vmul.f32 %v1217, %v1236
        %v1238 = vadd.f32 %v1237, 1.0
        %v1239 = vrcp.pop %v1238
        %v1240 = vmul.f32 %v1238, %v1239
        %v1241 = vsub.f32 1.0, %v1240
        %v1242 = vmul.f32 %v1239, %v1241
        %v1243 = vadd.f32 %v1239, %v1242
        %vm1244 = vweird.f32 %v1238
        %vm1245 = vweird.f32 %v1239
        %vm1246 = vmor %vm1244, %vm1245
        %v1247 = vsel %vm1246, %v1239, %v1243
        %v1248 = vand.u32 2147483647, %v1238
        %vm1249 = vcmp.eq.f32.partialorder %v1248, 8.507059e+37
        %v1250 = vand.u32 %v1238, 2147483648
        %v1251 = vor.u32 1.1754944e-38, %v1250
        %v1252 = vsel %vm1249, %v1251, %v1247
        %v1253 = vmul.f32 %v1228, %v1252
        %v1254 = vmin.f32 %v1253, 1.0
        %v1255 = vmax.f32 %v1254, -1.0
        %v1256 = vmul.f32 %v717, %v717
        %v1257 = vmin.f32 16.0, %v1256
        %v1258 = vmul.f32 %v1257, 2.1237322e-06
        %v1259 = vadd.f32 %v1258, 0.00028619796
        %v1260 = vmul.f32 %v1257, %v1259
        %v1261 = vadd.f32 %v1260, 0.0036580483
        %v1262 = vmul.f32 %v1257, %v1261
        %v1263 = vadd.f32 %v1262, 0.05243302
        %v1264 = vmul.f32 %v1257, %v1263
        %v1265 = vadd.f32 %v1264, 0.18741608
        %v1266 = vmul.f32 %v1257, %v1265
        %v1267 = vadd.f32 %v1266, 1.1283791
        %v1268 = vmul.f32 %v717, %v1267
        %v1269 = vmul.f32 %v1257, 3.8918573e-05
        %v1270 = vadd.f32 %v1269, 0.001143296
        %v1271 = vmul.f32 %v1257, %v1270
        %v1272 = vadd.f32 %v1271, 0.014752088
        %v1273 = vmul.f32 %v1257, %v1272
        %v1274 = vadd.f32 %v1273, 0.112945676
        %v1275 = vmul.f32 %v1257, %v1274
        %v1276 = vadd.f32 %v1275, 0.4994258
        %v1277 = vmul.f32 %v1257, %v1276
        %v1278 = vadd.f32 %v1277, 1.0
        %v1279 = vrcp.pop %v1278
        %v1280 = vmul.f32 %v1278, %v1279
        %v1281 = vsub.f32 1.0, %v1280
        %v1282 = vmul.f32 %v1279, %v1281
        %v1283 = vadd.f32 %v1279, %v1282
        %vm1284 = vweird.f32 %v1278
        %vm1285 = vweird.f32 %v1279
        %vm1286 = vmor %vm1284, %vm1285
        %v1287 = vsel %vm1286, %v1279, %v1283
        %v1288 = vand.u32 2147483647, %v1278
        %vm1289 = vcmp.eq.f32.partialorder %v1288, 8.507059e+37
        %v1290 = vand.u32 %v1278, 2147483648
        %v1291 = vor.u32 1.1754944e-38, %v1290
        %v1292 = vsel %vm1289, %v1291, %v1287
        %v1293 = vmul.f32 %v1268, %v1292
        %v1294 = vmin.f32 %v1293, 1.0
        %v1295 = vmax.f32 %v1294, -1.0
        %v1296 = vmul.f32 %v718, %v718
        %v1297 = vmin.f32 16.0, %v1296
        %v1298 = vmul.f32 %v1297, 2.1237322e-06
        %v1299 = vadd.f32 %v1298, 0.00028619796
        %v1300 = vmul.f32 %v1297, %v1299
        %v1301 = vadd.f32 %v1300, 0.0036580483
        %v1302 = vmul.f32 %v1297, %v1301
        %v1303 = vadd.f32 %v1302, 0.05243302
        %v1304 = vmul.f32 %v1297, %v1303
        %v1305 = vadd.f32 %v1304, 0.18741608
        %v1306 = vmul.f32 %v1297, %v1305
        %v1307 = vadd.f32 %v1306, 1.1283791
        %v1308 = vmul.f32 %v718, %v1307
        %v1309 = vmul.f32 %v1297, 3.8918573e-05
        %v1310 = vadd.f32 %v1309, 0.001143296
        %v1311 = vmul.f32 %v1297, %v1310
        %v1312 = vadd.f32 %v1311, 0.014752088
        %v1313 = vmul.f32 %v1297, %v1312
        %v1314 = vadd.f32 %v1313, 0.112945676
        %v1315 = vmul.f32 %v1297, %v1314
        %v1316 = vadd.f32 %v1315, 0.4994258
        %v1317 = vmul.f32 %v1297, %v1316
        %v1318 = vadd.f32 %v1317, 1.0
        %v1319 = vrcp.pop %v1318
        %v1320 = vmul.f32 %v1318, %v1319
        %v1321 = vsub.f32 1.0, %v1320
        %v1322 = vmul.f32 %v1319, %v1321
        %v1323 = vadd.f32 %v1319, %v1322
        %vm1324 = vweird.f32 %v1318
        %vm1325 = vweird.f32 %v1319
        %vm1326 = vmor %vm1324, %vm1325
        %v1327 = vsel %vm1326, %v1319, %v1323
        %v1328 = vand.u32 2147483647, %v1318
        %vm1329 = vcmp.eq.f32.partialorder %v1328, 8.507059e+37
        %v1330 = vand.u32 %v1318, 2147483648
        %v1331 = vor.u32 1.1754944e-38, %v1330
        %v1332 = vsel %vm1329, %v1331, %v1327
        %v1333 = vmul.f32 %v1308, %v1332
        %v1334 = vmin.f32 %v1333, 1.0
        %v1335 = vmax.f32 %v1334, -1.0
        %v1336 = vmul.f32 %v719, %v719
        %v1337 = vmin.f32 16.0, %v1336
        %v1338 = vmul.f32 %v1337, 2.1237322e-06
        %v1339 = vadd.f32 %v1338, 0.00028619796
        %v1340 = vmul.f32 %v1337, %v1339
        %v1341 = vadd.f32 %v1340, 0.0036580483
        %v1342 = vmul.f32 %v1337, %v1341
        %v1343 = vadd.f32 %v1342, 0.05243302
        %v1344 = vmul.f32 %v1337, %v1343
        %v1345 = vadd.f32 %v1344, 0.18741608
        %v1346 = vmul.f32 %v1337, %v1345
        %v1347 = vadd.f32 %v1346, 1.1283791
        %v1348 = vmul.f32 %v719, %v1347
        %v1349 = vmul.f32 %v1337, 3.8918573e-05
        %v1350 = vadd.f32 %v1349, 0.001143296
        %v1351 = vmul.f32 %v1337, %v1350
        %v1352 = vadd.f32 %v1351, 0.014752088
        %v1353 = vmul.f32 %v1337, %v1352
        %v1354 = vadd.f32 %v1353, 0.112945676
        %v1355 = vmul.f32 %v1337, %v1354
        %v1356 = vadd.f32 %v1355, 0.4994258
        %v1357 = vmul.f32 %v1337, %v1356
        %v1358 = vadd.f32 %v1357, 1.0
        %v1359 = vrcp.pop %v1358
        %v1360 = vmul.f32 %v1358, %v1359
        %v1361 = vsub.f32 1.0, %v1360
        %v1362 = vmul.f32 %v1359, %v1361
        %v1363 = vadd.f32 %v1359, %v1362
        %vm1364 = vweird.f32 %v1358
        %vm1365 = vweird.f32 %v1359
        %vm1366 = vmor %vm1364, %vm1365
        %v1367 = vsel %vm1366, %v1359, %v1363
        %v1368 = vand.u32 2147483647, %v1358
        %vm1369 = vcmp.eq.f32.partialorder %v1368, 8.507059e+37
        %v1370 = vand.u32 %v1358, 2147483648
        %v1371 = vor.u32 1.1754944e-38, %v1370
        %v1372 = vsel %vm1369, %v1371, %v1367
        %v1373 = vmul.f32 %v1348, %v1372
        %v1374 = vmin.f32 %v1373, 1.0
        %v1375 = vmax.f32 %v1374, -1.0
        %v1376 = vmul.f32 %v720, %v720
        %v1377 = vmin.f32 16.0, %v1376
        %v1378 = vmul.f32 %v1377, 2.1237322e-06
        %v1379 = vadd.f32 %v1378, 0.00028619796
        %v1380 = vmul.f32 %v1377, %v1379
        %v1381 = vadd.f32 %v1380, 0.0036580483
        %v1382 = vmul.f32 %v1377, %v1381
        %v1383 = vadd.f32 %v1382, 0.05243302
        %v1384 = vmul.f32 %v1377, %v1383
        %v1385 = vadd.f32 %v1384, 0.18741608
        %v1386 = vmul.f32 %v1377, %v1385
        %v1387 = vadd.f32 %v1386, 1.1283791
        %v1388 = vmul.f32 %v720, %v1387
        %v1389 = vmul.f32 %v1377, 3.8918573e-05
        %v1390 = vadd.f32 %v1389, 0.001143296
        %v1391 = vmul.f32 %v1377, %v1390
        %v1392 = vadd.f32 %v1391, 0.014752088
        %v1393 = vmul.f32 %v1377, %v1392
        %v1394 = vadd.f32 %v1393, 0.112945676
        %v1395 = vmul.f32 %v1377, %v1394
        %v1396 = vadd.f32 %v1395, 0.4994258
        %v1397 = vmul.f32 %v1377, %v1396
        %v1398 = vadd.f32 %v1397, 1.0
        %v1399 = vrcp.pop %v1398
        %v1400 = vmul.f32 %v1398, %v1399
        %v1401 = vsub.f32 1.0, %v1400
        %v1402 = vmul.f32 %v1399, %v1401
        %v1403 = vadd.f32 %v1399, %v1402
        %vm1404 = vweird.f32 %v1398
        %vm1405 = vweird.f32 %v1399
        %vm1406 = vmor %vm1404, %vm1405
        %v1407 = vsel %vm1406, %v1399, %v1403
        %v1408 = vand.u32 2147483647, %v1398
        %vm1409 = vcmp.eq.f32.partialorder %v1408, 8.507059e+37
        %v1410 = vand.u32 %v1398, 2147483648
        %v1411 = vor.u32 1.1754944e-38, %v1410
        %v1412 = vsel %vm1409, %v1411, %v1407
        %v1413 = vmul.f32 %v1388, %v1412
        %v1414 = vmin.f32 %v1413, 1.0
        %v1415 = vmax.f32 %v1414, -1.0
        %v1416 = vmul.f32 %v721, %v721
        %v1417 = vmin.f32 16.0, %v1416
        %v1418 = vmul.f32 %v1417, 2.1237322e-06
        %v1419 = vadd.f32 %v1418, 0.00028619796
        %v1420 = vmul.f32 %v1417, %v1419
        %v1421 = vadd.f32 %v1420, 0.0036580483
        %v1422 = vmul.f32 %v1417, %v1421
        %v1423 = vadd.f32 %v1422, 0.05243302
        %v1424 = vmul.f32 %v1417, %v1423
        %v1425 = vadd.f32 %v1424, 0.18741608
        %v1426 = vmul.f32 %v1417, %v1425
        %v1427 = vadd.f32 %v1426, 1.1283791
        %v1428 = vmul.f32 %v721, %v1427
        %v1429 = vmul.f32 %v1417, 3.8918573e-05
        %v1430 = vadd.f32 %v1429, 0.001143296
        %v1431 = vmul.f32 %v1417, %v1430
        %v1432 = vadd.f32 %v1431, 0.014752088
        %v1433 = vmul.f32 %v1417, %v1432
        %v1434 = vadd.f32 %v1433, 0.112945676
        %v1435 = vmul.f32 %v1417, %v1434
        %v1436 = vadd.f32 %v1435, 0.4994258
        %v1437 = vmul.f32 %v1417, %v1436
        %v1438 = vadd.f32 %v1437, 1.0
        %v1439 = vrcp.pop %v1438
        %v1440 = vmul.f32 %v1438, %v1439
        %v1441 = vsub.f32 1.0, %v1440
        %v1442 = vmul.f32 %v1439, %v1441
        %v1443 = vadd.f32 %v1439, %v1442
        %vm1444 = vweird.f32 %v1438
        %vm1445 = vweird.f32 %v1439
        %vm1446 = vmor %vm1444, %vm1445
        %v1447 = vsel %vm1446, %v1439, %v1443
        %v1448 = vand.u32 2147483647, %v1438
        %vm1449 = vcmp.eq.f32.partialorder %v1448, 8.507059e+37
        %v1450 = vand.u32 %v1438, 2147483648
        %v1451 = vor.u32 1.1754944e-38, %v1450
        %v1452 = vsel %vm1449, %v1451, %v1447
        %v1453 = vmul.f32 %v1428, %v1452
        %v1454 = vmin.f32 %v1453, 1.0
        %v1455 = vmax.f32 %v1454, -1.0
        %v1456 = vmul.f32 %v722, %v722
        %v1457 = vmin.f32 16.0, %v1456
        %v1458 = vmul.f32 %v1457, 2.1237322e-06
        %v1459 = vadd.f32 %v1458, 0.00028619796
        %v1460 = vmul.f32 %v1457, %v1459
        %v1461 = vadd.f32 %v1460, 0.0036580483
        %v1462 = vmul.f32 %v1457, %v1461
        %v1463 = vadd.f32 %v1462, 0.05243302
        %v1464 = vmul.f32 %v1457, %v1463
        %v1465 = vadd.f32 %v1464, 0.18741608
        %v1466 = vmul.f32 %v1457, %v1465
        %v1467 = vadd.f32 %v1466, 1.1283791
        %v1468 = vmul.f32 %v722, %v1467
        %v1469 = vmul.f32 %v1457, 3.8918573e-05
        %v1470 = vadd.f32 %v1469, 0.001143296
        %v1471 = vmul.f32 %v1457, %v1470
        %v1472 = vadd.f32 %v1471, 0.014752088
        %v1473 = vmul.f32 %v1457, %v1472
        %v1474 = vadd.f32 %v1473, 0.112945676
        %v1475 = vmul.f32 %v1457, %v1474
        %v1476 = vadd.f32 %v1475, 0.4994258
        %v1477 = vmul.f32 %v1457, %v1476
        %v1478 = vadd.f32 %v1477, 1.0
        %v1479 = vrcp.pop %v1478
        %v1480 = vmul.f32 %v1478, %v1479
        %v1481 = vsub.f32 1.0, %v1480
        %v1482 = vmul.f32 %v1479, %v1481
        %v1483 = vadd.f32 %v1479, %v1482
        %vm1484 = vweird.f32 %v1478
        %vm1485 = vweird.f32 %v1479
        %vm1486 = vmor %vm1484, %vm1485
        %v1487 = vsel %vm1486, %v1479, %v1483
        %v1488 = vand.u32 2147483647, %v1478
        %vm1489 = vcmp.eq.f32.partialorder %v1488, 8.507059e+37
        %v1490 = vand.u32 %v1478, 2147483648
        %v1491 = vor.u32 1.1754944e-38, %v1490
        %v1492 = vsel %vm1489, %v1491, %v1487
        %v1493 = vmul.f32 %v1468, %v1492
        %v1494 = vmin.f32 %v1493, 1.0
        %v1495 = vmax.f32 %v1494, -1.0
        %v1496 = vmul.f32 %v723, %v723
        %v1497 = vmin.f32 16.0, %v1496
        %v1498 = vmul.f32 %v1497, 2.1237322e-06
        %v1499 = vadd.f32 %v1498, 0.00028619796
        %v1500 = vmul.f32 %v1497, %v1499
        %v1501 = vadd.f32 %v1500, 0.0036580483
        %v1502 = vmul.f32 %v1497, %v1501
        %v1503 = vadd.f32 %v1502, 0.05243302
        %v1504 = vmul.f32 %v1497, %v1503
        %v1505 = vadd.f32 %v1504, 0.18741608
        %v1506 = vmul.f32 %v1497, %v1505
        %v1507 = vadd.f32 %v1506, 1.1283791
        %v1508 = vmul.f32 %v723, %v1507
        %v1509 = vmul.f32 %v1497, 3.8918573e-05
        %v1510 = vadd.f32 %v1509, 0.001143296
        %v1511 = vmul.f32 %v1497, %v1510
        %v1512 = vadd.f32 %v1511, 0.014752088
        %v1513 = vmul.f32 %v1497, %v1512
        %v1514 = vadd.f32 %v1513, 0.112945676
        %v1515 = vmul.f32 %v1497, %v1514
        %v1516 = vadd.f32 %v1515, 0.4994258
        %v1517 = vmul.f32 %v1497, %v1516
        %v1518 = vadd.f32 %v1517, 1.0
        %v1519 = vrcp.pop %v1518
        %v1520 = vmul.f32 %v1518, %v1519
        %v1521 = vsub.f32 1.0, %v1520
        %v1522 = vmul.f32 %v1519, %v1521
        %v1523 = vadd.f32 %v1519, %v1522
        %vm1524 = vweird.f32 %v1518
        %vm1525 = vweird.f32 %v1519
        %vm1526 = vmor %vm1524, %vm1525
        %v1527 = vsel %vm1526, %v1519, %v1523
        %v1528 = vand.u32 2147483647, %v1518
        %vm1529 = vcmp.eq.f32.partialorder %v1528, 8.507059e+37
        %v1530 = vand.u32 %v1518, 2147483648
        %v1531 = vor.u32 1.1754944e-38, %v1530
        %v1532 = vsel %vm1529, %v1531, %v1527
        %v1533 = vmul.f32 %v1508, %v1532
        %v1534 = vmin.f32 %v1533, 1.0
        %v1535 = vmax.f32 %v1534, -1.0
        %v1536 = vmul.f32 %v724, %v724
        %v1537 = vmin.f32 16.0, %v1536
        %v1538 = vmul.f32 %v1537, 2.1237322e-06
        %v1539 = vadd.f32 %v1538, 0.00028619796
        %v1540 = vmul.f32 %v1537, %v1539
        %v1541 = vadd.f32 %v1540, 0.0036580483
        %v1542 = vmul.f32 %v1537, %v1541
        %v1543 = vadd.f32 %v1542, 0.05243302
        %v1544 = vmul.f32 %v1537, %v1543
        %v1545 = vadd.f32 %v1544, 0.18741608
        %v1546 = vmul.f32 %v1537, %v1545
        %v1547 = vadd.f32 %v1546, 1.1283791
        %v1548 = vmul.f32 %v724, %v1547
        %v1549 = vmul.f32 %v1537, 3.8918573e-05
        %v1550 = vadd.f32 %v1549, 0.001143296
        %v1551 = vmul.f32 %v1537, %v1550
        %v1552 = vadd.f32 %v1551, 0.014752088
        %v1553 = vmul.f32 %v1537, %v1552
        %v1554 = vadd.f32 %v1553, 0.112945676
        %v1555 = vmul.f32 %v1537, %v1554
        %v1556 = vadd.f32 %v1555, 0.4994258
        %v1557 = vmul.f32 %v1537, %v1556
        %v1558 = vadd.f32 %v1557, 1.0
        %v1559 = vrcp.pop %v1558
        %v1560 = vmul.f32 %v1558, %v1559
        %v1561 = vsub.f32 1.0, %v1560
        %v1562 = vmul.f32 %v1559, %v1561
        %v1563 = vadd.f32 %v1559, %v1562
        %vm1564 = vweird.f32 %v1558
        %vm1565 = vweird.f32 %v1559
        %vm1566 = vmor %vm1564, %vm1565
        %v1567 = vsel %vm1566, %v1559, %v1563
        %v1568 = vand.u32 2147483647, %v1558
        %vm1569 = vcmp.eq.f32.partialorder %v1568, 8.507059e+37
        %v1570 = vand.u32 %v1558, 2147483648
        %v1571 = vor.u32 1.1754944e-38, %v1570
        %v1572 = vsel %vm1569, %v1571, %v1567
        %v1573 = vmul.f32 %v1548, %v1572
        %v1574 = vmin.f32 %v1573, 1.0
        %v1575 = vmax.f32 %v1574, -1.0
        %v1576 = vmul.f32 %v725, %v725
        %v1577 = vmin.f32 16.0, %v1576
        %v1578 = vmul.f32 %v1577, 2.1237322e-06
        %v1579 = vadd.f32 %v1578, 0.00028619796
        %v1580 = vmul.f32 %v1577, %v1579
        %v1581 = vadd.f32 %v1580, 0.0036580483
        %v1582 = vmul.f32 %v1577, %v1581
        %v1583 = vadd.f32 %v1582, 0.05243302
        %v1584 = vmul.f32 %v1577, %v1583
        %v1585 = vadd.f32 %v1584, 0.18741608
        %v1586 = vmul.f32 %v1577, %v1585
        %v1587 = vadd.f32 %v1586, 1.1283791
        %v1588 = vmul.f32 %v725, %v1587
        %v1589 = vmul.f32 %v1577, 3.8918573e-05
        %v1590 = vadd.f32 %v1589, 0.001143296
        %v1591 = vmul.f32 %v1577, %v1590
        %v1592 = vadd.f32 %v1591, 0.014752088
        %v1593 = vmul.f32 %v1577, %v1592
        %v1594 = vadd.f32 %v1593, 0.112945676
        %v1595 = vmul.f32 %v1577, %v1594
        %v1596 = vadd.f32 %v1595, 0.4994258
        %v1597 = vmul.f32 %v1577, %v1596
        %v1598 = vadd.f32 %v1597, 1.0
        %v1599 = vrcp.pop %v1598
        %v1600 = vmul.f32 %v1598, %v1599
        %v1601 = vsub.f32 1.0, %v1600
        %v1602 = vmul.f32 %v1599, %v1601
        %v1603 = vadd.f32 %v1599, %v1602
        %vm1604 = vweird.f32 %v1598
        %vm1605 = vweird.f32 %v1599
        %vm1606 = vmor %vm1604, %vm1605
        %v1607 = vsel %vm1606, %v1599, %v1603
        %v1608 = vand.u32 2147483647, %v1598
        %vm1609 = vcmp.eq.f32.partialorder %v1608, 8.507059e+37
        %v1610 = vand.u32 %v1598, 2147483648
        %v1611 = vor.u32 1.1754944e-38, %v1610
        %v1612 = vsel %vm1609, %v1611, %v1607
        %v1613 = vmul.f32 %v1588, %v1612
        %v1614 = vmin.f32 %v1613, 1.0
        %v1615 = vmax.f32 %v1614, -1.0
        %v1616 = vmul.f32 %v726, %v726
        %v1617 = vmin.f32 16.0, %v1616
        %v1618 = vmul.f32 %v1617, 2.1237322e-06
        %v1619 = vadd.f32 %v1618, 0.00028619796
        %v1620 = vmul.f32 %v1617, %v1619
        %v1621 = vadd.f32 %v1620, 0.0036580483
        %v1622 = vmul.f32 %v1617, %v1621
        %v1623 = vadd.f32 %v1622, 0.05243302
        %v1624 = vmul.f32 %v1617, %v1623
        %v1625 = vadd.f32 %v1624, 0.18741608
        %v1626 = vmul.f32 %v1617, %v1625
        %v1627 = vadd.f32 %v1626, 1.1283791
        %v1628 = vmul.f32 %v726, %v1627
        %v1629 = vmul.f32 %v1617, 3.8918573e-05
        %v1630 = vadd.f32 %v1629, 0.001143296
        %v1631 = vmul.f32 %v1617, %v1630
        %v1632 = vadd.f32 %v1631, 0.014752088
        %v1633 = vmul.f32 %v1617, %v1632
        %v1634 = vadd.f32 %v1633, 0.112945676
        %v1635 = vmul.f32 %v1617, %v1634
        %v1636 = vadd.f32 %v1635, 0.4994258
        %v1637 = vmul.f32 %v1617, %v1636
        %v1638 = vadd.f32 %v1637, 1.0
        %v1639 = vrcp.pop %v1638
        %v1640 = vmul.f32 %v1638, %v1639
        %v1641 = vsub.f32 1.0, %v1640
        %v1642 = vmul.f32 %v1639, %v1641
        %v1643 = vadd.f32 %v1639, %v1642
        %vm1644 = vweird.f32 %v1638
        %vm1645 = vweird.f32 %v1639
        %vm1646 = vmor %vm1644, %vm1645
        %v1647 = vsel %vm1646, %v1639, %v1643
        %v1648 = vand.u32 2147483647, %v1638
        %vm1649 = vcmp.eq.f32.partialorder %v1648, 8.507059e+37
        %v1650 = vand.u32 %v1638, 2147483648
        %v1651 = vor.u32 1.1754944e-38, %v1650
        %v1652 = vsel %vm1649, %v1651, %v1647
        %v1653 = vmul.f32 %v1628, %v1652
        %v1654 = vmin.f32 %v1653, 1.0
        %v1655 = vmax.f32 %v1654, -1.0
        %v1656 = vmul.f32 %v727, %v727
        %v1657 = vmin.f32 16.0, %v1656
        %v1658 = vmul.f32 %v1657, 2.1237322e-06
        %v1659 = vadd.f32 %v1658, 0.00028619796
        %v1660 = vmul.f32 %v1657, %v1659
        %v1661 = vadd.f32 %v1660, 0.0036580483
        %v1662 = vmul.f32 %v1657, %v1661
        %v1663 = vadd.f32 %v1662, 0.05243302
        %v1664 = vmul.f32 %v1657, %v1663
        %v1665 = vadd.f32 %v1664, 0.18741608
        %v1666 = vmul.f32 %v1657, %v1665
        %v1667 = vadd.f32 %v1666, 1.1283791
        %v1668 = vmul.f32 %v727, %v1667
        %v1669 = vmul.f32 %v1657, 3.8918573e-05
        %v1670 = vadd.f32 %v1669, 0.001143296
        %v1671 = vmul.f32 %v1657, %v1670
        %v1672 = vadd.f32 %v1671, 0.014752088
        %v1673 = vmul.f32 %v1657, %v1672
        %v1674 = vadd.f32 %v1673, 0.112945676
        %v1675 = vmul.f32 %v1657, %v1674
        %v1676 = vadd.f32 %v1675, 0.4994258
        %v1677 = vmul.f32 %v1657, %v1676
        %v1678 = vadd.f32 %v1677, 1.0
        %v1679 = vrcp.pop %v1678
        %v1680 = vmul.f32 %v1678, %v1679
        %v1681 = vsub.f32 1.0, %v1680
        %v1682 = vmul.f32 %v1679, %v1681
        %v1683 = vadd.f32 %v1679, %v1682
        %vm1684 = vweird.f32 %v1678
        %vm1685 = vweird.f32 %v1679
        %vm1686 = vmor %vm1684, %vm1685
        %v1687 = vsel %vm1686, %v1679, %v1683
        %v1688 = vand.u32 2147483647, %v1678
        %vm1689 = vcmp.eq.f32.partialorder %v1688, 8.507059e+37
        %v1690 = vand.u32 %v1678, 2147483648
        %v1691 = vor.u32 1.1754944e-38, %v1690
        %v1692 = vsel %vm1689, %v1691, %v1687
        %v1693 = vmul.f32 %v1668, %v1692
        %v1694 = vmin.f32 %v1693, 1.0
        %v1695 = vmax.f32 %v1694, -1.0
        %v1696 = vmul.f32 %v728, %v728
        %v1697 = vmin.f32 16.0, %v1696
        %v1698 = vmul.f32 %v1697, 2.1237322e-06
        %v1699 = vadd.f32 %v1698, 0.00028619796
        %v1700 = vmul.f32 %v1697, %v1699
        %v1701 = vadd.f32 %v1700, 0.0036580483
        %v1702 = vmul.f32 %v1697, %v1701
        %v1703 = vadd.f32 %v1702, 0.05243302
        %v1704 = vmul.f32 %v1697, %v1703
        %v1705 = vadd.f32 %v1704, 0.18741608
        %v1706 = vmul.f32 %v1697, %v1705
        %v1707 = vadd.f32 %v1706, 1.1283791
        %v1708 = vmul.f32 %v728, %v1707
        %v1709 = vmul.f32 %v1697, 3.8918573e-05
        %v1710 = vadd.f32 %v1709, 0.001143296
        %v1711 = vmul.f32 %v1697, %v1710
        %v1712 = vadd.f32 %v1711, 0.014752088
        %v1713 = vmul.f32 %v1697, %v1712
        %v1714 = vadd.f32 %v1713, 0.112945676
        %v1715 = vmul.f32 %v1697, %v1714
        %v1716 = vadd.f32 %v1715, 0.4994258
        %v1717 = vmul.f32 %v1697, %v1716
        %v1718 = vadd.f32 %v1717, 1.0
        %v1719 = vrcp.pop %v1718
        %v1720 = vmul.f32 %v1718, %v1719
        %v1721 = vsub.f32 1.0, %v1720
        %v1722 = vmul.f32 %v1719, %v1721
        %v1723 = vadd.f32 %v1719, %v1722
        %vm1724 = vweird.f32 %v1718
        %vm1725 = vweird.f32 %v1719
        %vm1726 = vmor %vm1724, %vm1725
        %v1727 = vsel %vm1726, %v1719, %v1723
        %v1728 = vand.u32 2147483647, %v1718
        %vm1729 = vcmp.eq.f32.partialorder %v1728, 8.507059e+37
        %v1730 = vand.u32 %v1718, 2147483648
        %v1731 = vor.u32 1.1754944e-38, %v1730
        %v1732 = vsel %vm1729, %v1731, %v1727
        %v1733 = vmul.f32 %v1708, %v1732
        %v1734 = vmin.f32 %v1733, 1.0
        %v1735 = vmax.f32 %v1734, -1.0
        %v1736 = vmul.f32 %v729, %v729
        %v1737 = vmin.f32 16.0, %v1736
        %v1738 = vmul.f32 %v1737, 2.1237322e-06
        %v1739 = vadd.f32 %v1738, 0.00028619796
        %v1740 = vmul.f32 %v1737, %v1739
        %v1741 = vadd.f32 %v1740, 0.0036580483
        %v1742 = vmul.f32 %v1737, %v1741
        %v1743 = vadd.f32 %v1742, 0.05243302
        %v1744 = vmul.f32 %v1737, %v1743
        %v1745 = vadd.f32 %v1744, 0.18741608
        %v1746 = vmul.f32 %v1737, %v1745
        %v1747 = vadd.f32 %v1746, 1.1283791
        %v1748 = vmul.f32 %v729, %v1747
        %v1749 = vmul.f32 %v1737, 3.8918573e-05
        %v1750 = vadd.f32 %v1749, 0.001143296
        %v1751 = vmul.f32 %v1737, %v1750
        %v1752 = vadd.f32 %v1751, 0.014752088
        %v1753 = vmul.f32 %v1737, %v1752
        %v1754 = vadd.f32 %v1753, 0.112945676
        %v1755 = vmul.f32 %v1737, %v1754
        %v1756 = vadd.f32 %v1755, 0.4994258
        %v1757 = vmul.f32 %v1737, %v1756
        %v1758 = vadd.f32 %v1757, 1.0
        %v1759 = vrcp.pop %v1758
        %v1760 = vmul.f32 %v1758, %v1759
        %v1761 = vsub.f32 1.0, %v1760
        %v1762 = vmul.f32 %v1759, %v1761
        %v1763 = vadd.f32 %v1759, %v1762
        %vm1764 = vweird.f32 %v1758
        %vm1765 = vweird.f32 %v1759
        %vm1766 = vmor %vm1764, %vm1765
        %v1767 = vsel %vm1766, %v1759, %v1763
        %v1768 = vand.u32 2147483647, %v1758
        %vm1769 = vcmp.eq.f32.partialorder %v1768, 8.507059e+37
        %v1770 = vand.u32 %v1758, 2147483648
        %v1771 = vor.u32 1.1754944e-38, %v1770
        %v1772 = vsel %vm1769, %v1771, %v1767
        %v1773 = vmul.f32 %v1748, %v1772
        %v1774 = vmin.f32 %v1773, 1.0
        %v1775 = vmax.f32 %v1774, -1.0
        %v1776 = vmul.f32 %v730, %v730
        %v1777 = vmin.f32 16.0, %v1776
        %v1778 = vmul.f32 %v1777, 2.1237322e-06
        %v1779 = vadd.f32 %v1778, 0.00028619796
        %v1780 = vmul.f32 %v1777, %v1779
        %v1781 = vadd.f32 %v1780, 0.0036580483
        %v1782 = vmul.f32 %v1777, %v1781
        %v1783 = vadd.f32 %v1782, 0.05243302
        %v1784 = vmul.f32 %v1777, %v1783
        %v1785 = vadd.f32 %v1784, 0.18741608
        %v1786 = vmul.f32 %v1777, %v1785
        %v1787 = vadd.f32 %v1786, 1.1283791
        %v1788 = vmul.f32 %v730, %v1787
        %v1789 = vmul.f32 %v1777, 3.8918573e-05
        %v1790 = vadd.f32 %v1789, 0.001143296
        %v1791 = vmul.f32 %v1777, %v1790
        %v1792 = vadd.f32 %v1791, 0.014752088
        %v1793 = vmul.f32 %v1777, %v1792
        %v1794 = vadd.f32 %v1793, 0.112945676
        %v1795 = vmul.f32 %v1777, %v1794
        %v1796 = vadd.f32 %v1795, 0.4994258
        %v1797 = vmul.f32 %v1777, %v1796
        %v1798 = vadd.f32 %v1797, 1.0
        %v1799 = vrcp.pop %v1798
        %v1800 = vmul.f32 %v1798, %v1799
        %v1801 = vsub.f32 1.0, %v1800
        %v1802 = vmul.f32 %v1799, %v1801
        %v1803 = vadd.f32 %v1799, %v1802
        %vm1804 = vweird.f32 %v1798
        %vm1805 = vweird.f32 %v1799
        %vm1806 = vmor %vm1804, %vm1805
        %v1807 = vsel %vm1806, %v1799, %v1803
        %v1808 = vand.u32 2147483647, %v1798
        %vm1809 = vcmp.eq.f32.partialorder %v1808, 8.507059e+37
        %v1810 = vand.u32 %v1798, 2147483648
        %v1811 = vor.u32 1.1754944e-38, %v1810
        %v1812 = vsel %vm1809, %v1811, %v1807
        %v1813 = vmul.f32 %v1788, %v1812
        %v1814 = vmin.f32 %v1813, 1.0
        %v1815 = vmax.f32 %v1814, -1.0
        %v1816 = vmul.f32 %v731, %v731
        %v1817 = vmin.f32 16.0, %v1816
        %v1818 = vmul.f32 %v1817, 2.1237322e-06
        %v1819 = vadd.f32 %v1818, 0.00028619796
        %v1820 = vmul.f32 %v1817, %v1819
        %v1821 = vadd.f32 %v1820, 0.0036580483
        %v1822 = vmul.f32 %v1817, %v1821
        %v1823 = vadd.f32 %v1822, 0.05243302
        %v1824 = vmul.f32 %v1817, %v1823
        %v1825 = vadd.f32 %v1824, 0.18741608
        %v1826 = vmul.f32 %v1817, %v1825
        %v1827 = vadd.f32 %v1826, 1.1283791
        %v1828 = vmul.f32 %v731, %v1827
        %v1829 = vmul.f32 %v1817, 3.8918573e-05
        %v1830 = vadd.f32 %v1829, 0.001143296
        %v1831 = vmul.f32 %v1817, %v1830
        %v1832 = vadd.f32 %v1831, 0.014752088
        %v1833 = vmul.f32 %v1817, %v1832
        %v1834 = vadd.f32 %v1833, 0.112945676
        %v1835 = vmul.f32 %v1817, %v1834
        %v1836 = vadd.f32 %v1835, 0.4994258
        %v1837 = vmul.f32 %v1817, %v1836
        %v1838 = vadd.f32 %v1837, 1.0
        %v1839 = vrcp.pop %v1838
        %v1840 = vmul.f32 %v1838, %v1839
        %v1841 = vsub.f32 1.0, %v1840
        %v1842 = vmul.f32 %v1839, %v1841
        %v1843 = vadd.f32 %v1839, %v1842
        %vm1844 = vweird.f32 %v1838
        %vm1845 = vweird.f32 %v1839
        %vm1846 = vmor %vm1844, %vm1845
        %v1847 = vsel %vm1846, %v1839, %v1843
        %v1848 = vand.u32 2147483647, %v1838
        %vm1849 = vcmp.eq.f32.partialorder %v1848, 8.507059e+37
        %v1850 = vand.u32 %v1838, 2147483648
        %v1851 = vor.u32 1.1754944e-38, %v1850
        %v1852 = vsel %vm1849, %v1851, %v1847
        %v1853 = vmul.f32 %v1828, %v1852
        %v1854 = vmin.f32 %v1853, 1.0
        %v1855 = vmax.f32 %v1854, -1.0
        %v1856 = vmul.f32 %v732, %v732
        %v1857 = vmin.f32 16.0, %v1856
        %v1858 = vmul.f32 %v1857, 2.1237322e-06
        %v1859 = vadd.f32 %v1858, 0.00028619796
        %v1860 = vmul.f32 %v1857, %v1859
        %v1861 = vadd.f32 %v1860, 0.0036580483
        %v1862 = vmul.f32 %v1857, %v1861
        %v1863 = vadd.f32 %v1862, 0.05243302
        %v1864 = vmul.f32 %v1857, %v1863
        %v1865 = vadd.f32 %v1864, 0.18741608
        %v1866 = vmul.f32 %v1857, %v1865
        %v1867 = vadd.f32 %v1866, 1.1283791
        %v1868 = vmul.f32 %v732, %v1867
        %v1869 = vmul.f32 %v1857, 3.8918573e-05
        %v1870 = vadd.f32 %v1869, 0.001143296
        %v1871 = vmul.f32 %v1857, %v1870
        %v1872 = vadd.f32 %v1871, 0.014752088
        %v1873 = vmul.f32 %v1857, %v1872
        %v1874 = vadd.f32 %v1873, 0.112945676
        %v1875 = vmul.f32 %v1857, %v1874
        %v1876 = vadd.f32 %v1875, 0.4994258
        %v1877 = vmul.f32 %v1857, %v1876
        %v1878 = vadd.f32 %v1877, 1.0
        %v1879 = vrcp.pop %v1878
        %v1880 = vmul.f32 %v1878, %v1879
        %v1881 = vsub.f32 1.0, %v1880
        %v1882 = vmul.f32 %v1879, %v1881
        %v1883 = vadd.f32 %v1879, %v1882
        %vm1884 = vweird.f32 %v1878
        %vm1885 = vweird.f32 %v1879
        %vm1886 = vmor %vm1884, %vm1885
        %v1887 = vsel %vm1886, %v1879, %v1883
        %v1888 = vand.u32 2147483647, %v1878
        %vm1889 = vcmp.eq.f32.partialorder %v1888, 8.507059e+37
        %v1890 = vand.u32 %v1878, 2147483648
        %v1891 = vor.u32 1.1754944e-38, %v1890
        %v1892 = vsel %vm1889, %v1891, %v1887
        %v1893 = vmul.f32 %v1868, %v1892
        %v1894 = vmin.f32 %v1893, 1.0
        %v1895 = vmax.f32 %v1894, -1.0
        %v1896 = vmul.f32 %v733, %v733
        %v1897 = vmin.f32 16.0, %v1896
        %v1898 = vmul.f32 %v1897, 2.1237322e-06
        %v1899 = vadd.f32 %v1898, 0.00028619796
        %v1900 = vmul.f32 %v1897, %v1899
        %v1901 = vadd.f32 %v1900, 0.0036580483
        %v1902 = vmul.f32 %v1897, %v1901
        %v1903 = vadd.f32 %v1902, 0.05243302
        %v1904 = vmul.f32 %v1897, %v1903
        %v1905 = vadd.f32 %v1904, 0.18741608
        %v1906 = vmul.f32 %v1897, %v1905
        %v1907 = vadd.f32 %v1906, 1.1283791
        %v1908 = vmul.f32 %v733, %v1907
        %v1909 = vmul.f32 %v1897, 3.8918573e-05
        %v1910 = vadd.f32 %v1909, 0.001143296
        %v1911 = vmul.f32 %v1897, %v1910
        %v1912 = vadd.f32 %v1911, 0.014752088
        %v1913 = vmul.f32 %v1897, %v1912
        %v1914 = vadd.f32 %v1913, 0.112945676
        %v1915 = vmul.f32 %v1897, %v1914
        %v1916 = vadd.f32 %v1915, 0.4994258
        %v1917 = vmul.f32 %v1897, %v1916
        %v1918 = vadd.f32 %v1917, 1.0
        %v1919 = vrcp.pop %v1918
        %v1920 = vmul.f32 %v1918, %v1919
        %v1921 = vsub.f32 1.0, %v1920
        %v1922 = vmul.f32 %v1919, %v1921
        %v1923 = vadd.f32 %v1919, %v1922
        %vm1924 = vweird.f32 %v1918
        %vm1925 = vweird.f32 %v1919
        %vm1926 = vmor %vm1924, %vm1925
        %v1927 = vsel %vm1926, %v1919, %v1923
        %v1928 = vand.u32 2147483647, %v1918
        %vm1929 = vcmp.eq.f32.partialorder %v1928, 8.507059e+37
        %v1930 = vand.u32 %v1918, 2147483648
        %v1931 = vor.u32 1.1754944e-38, %v1930
        %v1932 = vsel %vm1929, %v1931, %v1927
        %v1933 = vmul.f32 %v1908, %v1932
        %v1934 = vmin.f32 %v1933, 1.0
        %v1935 = vmax.f32 %v1934, -1.0
        %v1936 = vmul.f32 %v734, %v734
        %v1937 = vmin.f32 16.0, %v1936
        %v1938 = vmul.f32 %v1937, 2.1237322e-06
        %v1939 = vadd.f32 %v1938, 0.00028619796
        %v1940 = vmul.f32 %v1937, %v1939
        %v1941 = vadd.f32 %v1940, 0.0036580483
        %v1942 = vmul.f32 %v1937, %v1941
        %v1943 = vadd.f32 %v1942, 0.05243302
        %v1944 = vmul.f32 %v1937, %v1943
        %v1945 = vadd.f32 %v1944, 0.18741608
        %v1946 = vmul.f32 %v1937, %v1945
        %v1947 = vadd.f32 %v1946, 1.1283791
        %v1948 = vmul.f32 %v734, %v1947
        %v1949 = vmul.f32 %v1937, 3.8918573e-05
        %v1950 = vadd.f32 %v1949, 0.001143296
        %v1951 = vmul.f32 %v1937, %v1950
        %v1952 = vadd.f32 %v1951, 0.014752088
        %v1953 = vmul.f32 %v1937, %v1952
        %v1954 = vadd.f32 %v1953, 0.112945676
        %v1955 = vmul.f32 %v1937, %v1954
        %v1956 = vadd.f32 %v1955, 0.4994258
        %v1957 = vmul.f32 %v1937, %v1956
        %v1958 = vadd.f32 %v1957, 1.0
        %v1959 = vrcp.pop %v1958
        %v1960 = vmul.f32 %v1958, %v1959
        %v1961 = vsub.f32 1.0, %v1960
        %v1962 = vmul.f32 %v1959, %v1961
        %v1963 = vadd.f32 %v1959, %v1962
        %vm1964 = vweird.f32 %v1958
        %vm1965 = vweird.f32 %v1959
        %vm1966 = vmor %vm1964, %vm1965
        %v1967 = vsel %vm1966, %v1959, %v1963
        %v1968 = vand.u32 2147483647, %v1958
        %vm1969 = vcmp.eq.f32.partialorder %v1968, 8.507059e+37
        %v1970 = vand.u32 %v1958, 2147483648
        %v1971 = vor.u32 1.1754944e-38, %v1970
        %v1972 = vsel %vm1969, %v1971, %v1967
        %v1973 = vmul.f32 %v1948, %v1972
        %v1974 = vmin.f32 %v1973, 1.0
        %v1975 = vmax.f32 %v1974, -1.0
        %v1976 = vmul.f32 %v735, %v735
        %v1977 = vmin.f32 16.0, %v1976
        %v1978 = vmul.f32 %v1977, 2.1237322e-06
        %v1979 = vadd.f32 %v1978, 0.00028619796
        %v1980 = vmul.f32 %v1977, %v1979
        %v1981 = vadd.f32 %v1980, 0.0036580483
        %v1982 = vmul.f32 %v1977, %v1981
        %v1983 = vadd.f32 %v1982, 0.05243302
        %v1984 = vmul.f32 %v1977, %v1983
        %v1985 = vadd.f32 %v1984, 0.18741608
        %v1986 = vmul.f32 %v1977, %v1985
        %v1987 = vadd.f32 %v1986, 1.1283791
        %v1988 = vmul.f32 %v735, %v1987
        %v1989 = vmul.f32 %v1977, 3.8918573e-05
        %v1990 = vadd.f32 %v1989, 0.001143296
        %v1991 = vmul.f32 %v1977, %v1990
        %v1992 = vadd.f32 %v1991, 0.014752088
        %v1993 = vmul.f32 %v1977, %v1992
        %v1994 = vadd.f32 %v1993, 0.112945676
        %v1995 = vmul.f32 %v1977, %v1994
        %v1996 = vadd.f32 %v1995, 0.4994258
        %v1997 = vmul.f32 %v1977, %v1996
        %v1998 = vadd.f32 %v1997, 1.0
        %v1999 = vrcp.pop %v1998
        %v2000 = vmul.f32 %v1998, %v1999
        %v2001 = vsub.f32 1.0, %v2000
        %v2002 = vmul.f32 %v1999, %v2001
        %v2003 = vadd.f32 %v1999, %v2002
        %vm2004 = vweird.f32 %v1998
        %vm2005 = vweird.f32 %v1999
        %vm2006 = vmor %vm2004, %vm2005
        %v2007 = vsel %vm2006, %v1999, %v2003
        %v2008 = vand.u32 2147483647, %v1998
        %vm2009 = vcmp.eq.f32.partialorder %v2008, 8.507059e+37
        %v2010 = vand.u32 %v1998, 2147483648
        %v2011 = vor.u32 1.1754944e-38, %v2010
        %v2012 = vsel %vm2009, %v2011, %v2007
        %v2013 = vmul.f32 %v1988, %v2012
        %v2014 = vmin.f32 %v2013, 1.0
        %v2015 = vmax.f32 %v2014, -1.0
        %v2016 = vadd.f32 %v775, 1.0
        %v2017 = vadd.f32 %v815, 1.0
        %v2018 = vadd.f32 %v855, 1.0
        %v2019 = vadd.f32 %v895, 1.0
        %v2020 = vadd.f32 %v935, 1.0
        %v2021 = vadd.f32 %v975, 1.0
        %v2022 = vadd.f32 %v1015, 1.0
        %v2023 = vadd.f32 %v1055, 1.0
        %v2024 = vadd.f32 %v1095, 1.0
        %v2025 = vadd.f32 %v1135, 1.0
        %v2026 = vadd.f32 %v1175, 1.0
        %v2027 = vadd.f32 %v1215, 1.0
        %v2028 = vadd.f32 %v1255, 1.0
        %v2029 = vadd.f32 %v1295, 1.0
        %v2030 = vadd.f32 %v1335, 1.0
        %v2031 = vadd.f32 %v1375, 1.0
        %v2032 = vadd.f32 %v1415, 1.0
        %v2033 = vadd.f32 %v1455, 1.0
        %v2034 = vadd.f32 %v1495, 1.0
        %v2035 = vadd.f32 %v1535, 1.0
        %v2036 = vadd.f32 %v1575, 1.0
        %v2037 = vadd.f32 %v1615, 1.0
        %v2038 = vadd.f32 %v1655, 1.0
        %v2039 = vadd.f32 %v1695, 1.0
        %v2040 = vadd.f32 %v1735, 1.0
        %v2041 = vadd.f32 %v1775, 1.0
        %v2042 = vadd.f32 %v1815, 1.0
        %v2043 = vadd.f32 %v1855, 1.0
        %v2044 = vadd.f32 %v1895, 1.0
        %v2045 = vadd.f32 %v1935, 1.0
        %v2046 = vadd.f32 %v1975, 1.0
        %v2047 = vadd.f32 %v2015, 1.0
        %v2048 = vmul.f32 %v672, %v2016
        %v2049 = vmul.f32 %v673, %v2017
        %v2050 = vmul.f32 %v674, %v2018
        %v2051 = vmul.f32 %v675, %v2019
        %v2052 = vmul.f32 %v676, %v2020
        %v2053 = vmul.f32 %v677, %v2021
        %v2054 = vmul.f32 %v678, %v2022
        %v2055 = vmul.f32 %v679, %v2023
        %v2056 = vmul.f32 %v680, %v2024
        %v2057 = vmul.f32 %v681, %v2025
        %v2058 = vmul.f32 %v682, %v2026
        %v2059 = vmul.f32 %v683, %v2027
        %v2060 = vmul.f32 %v684, %v2028
        %v2061 = vmul.f32 %v685, %v2029
        %v2062 = vmul.f32 %v686, %v2030
        %v2063 = vmul.f32 %v687, %v2031
        %v2064 = vmul.f32 %v688, %v2032
        %v2065 = vmul.f32 %v689, %v2033
        %v2066 = vmul.f32 %v690, %v2034
        %v2067 = vmul.f32 %v691, %v2035
        %v2068 = vmul.f32 %v692, %v2036
        %v2069 = vmul.f32 %v693, %v2037
        %v2070 = vmul.f32 %v694, %v2038
        %v2071 = vmul.f32 %v695, %v2039
        %v2072 = vmul.f32 %v696, %v2040
        %v2073 = vmul.f32 %v697, %v2041
        %v2074 = vmul.f32 %v698, %v2042
        %v2075 = vmul.f32 %v699, %v2043
        %v2076 = vmul.f32 %v700, %v2044
        %v2077 = vmul.f32 %v701, %v2045
        %v2078 = vmul.f32 %v702, %v2046
        %v2079 = vmul.f32 %v703, %v2047
        %vm2113 = vcmask 1040384
        %v2114 = vrot.slane 0.0, 7
        %v2115 = vsel %vm2113, %v2114, %v2114
        %v2116 = vrot.slane %v2048, 7
        %v2117 = vrot.slane %v2049, 7
        %v2118 = vsel %vm2113, %v2116, %v2117
        %v2119 = vrot.slane %v2050, 7
        %v2120 = vrot.slane %v2051, 7
        %v2121 = vsel %vm2113, %v2119, %v2120
        %v2122 = vrot.slane %v2052, 7
        %v2123 = vrot.slane %v2053, 7
        %v2124 = vsel %vm2113, %v2122, %v2123
        %v2125 = vrot.slane %v2054, 7
        %v2126 = vrot.slane %v2055, 7
        %v2127 = vsel %vm2113, %v2125, %v2126
        %v2128 = vrot.slane %v2056, 7
        %v2129 = vrot.slane %v2057, 7
        %v2130 = vsel %vm2113, %v2128, %v2129
        %v2131 = vrot.slane %v2058, 7
        %v2132 = vrot.slane %v2059, 7
        %v2133 = vsel %vm2113, %v2131, %v2132
        %v2134 = vrot.slane %v2060, 7
        %v2135 = vrot.slane %v2061, 7
        %v2136 = vsel %vm2113, %v2134, %v2135
        %v2137 = vrot.slane %v2062, 7
        %v2138 = vrot.slane %v2063, 7
        %v2139 = vsel %vm2113, %v2137, %v2138
        %v2140 = vrot.slane %v2064, 7
        %v2141 = vrot.slane %v2065, 7
        %v2142 = vsel %vm2113, %v2140, %v2141
        %v2143 = vrot.slane %v2066, 7
        %v2144 = vrot.slane %v2067, 7
        %v2145 = vsel %vm2113, %v2143, %v2144
        %v2146 = vrot.slane %v2068, 7
        %v2147 = vrot.slane %v2069, 7
        %v2148 = vsel %vm2113, %v2146, %v2147
        %v2149 = vrot.slane %v2070, 7
        %v2150 = vrot.slane %v2071, 7
        %v2151 = vsel %vm2113, %v2149, %v2150
        %v2152 = vrot.slane %v2072, 7
        %v2153 = vrot.slane %v2073, 7
        %v2154 = vsel %vm2113, %v2152, %v2153
        %v2155 = vrot.slane %v2074, 7
        %v2156 = vrot.slane %v2075, 7
        %v2157 = vsel %vm2113, %v2155, %v2156
        %v2158 = vrot.slane %v2076, 7
        %v2159 = vrot.slane %v2077, 7
        %v2160 = vsel %vm2113, %v2158, %v2159
        %v2161 = vrot.slane %v2078, 7
        %v2162 = vrot.slane %v2079, 7
        %v2163 = vsel %vm2113, %v2161, %v2162
        %v2214 = vsel %vm2113, 0.0, %v2114
        %v2215 = vsel %vm2113, 0.0, %v2116
        %v2216 = vsel %vm2113, 0.0, %v2119
        %v2217 = vsel %vm2113, 0.0, %v2122
        %v2218 = vsel %vm2113, 0.0, %v2125
        %v2219 = vsel %vm2113, 0.0, %v2128
        %v2220 = vsel %vm2113, 0.0, %v2131
        %v2221 = vsel %vm2113, 0.0, %v2134
        %v2222 = vsel %vm2113, 0.0, %v2137
        %v2223 = vsel %vm2113, 0.0, %v2140
        %v2224 = vsel %vm2113, 0.0, %v2143
        %v2225 = vsel %vm2113, 0.0, %v2146
        %v2226 = vsel %vm2113, 0.0, %v2149
        %v2227 = vsel %vm2113, 0.0, %v2152
        %v2228 = vsel %vm2113, 0.0, %v2155
        %v2229 = vsel %vm2113, 0.0, %v2158
        %v2230 = vsel %vm2113, 0.0, %v2161
        %v2231 = vsel %vm2113, %v2114, 0.0
        %v2232 = vsel %vm2113, %v2117, 0.0
        %v2233 = vsel %vm2113, %v2120, 0.0
        %v2234 = vsel %vm2113, %v2123, 0.0
        %v2235 = vsel %vm2113, %v2126, 0.0
        %v2236 = vsel %vm2113, %v2129, 0.0
        %v2237 = vsel %vm2113, %v2132, 0.0
        %v2238 = vsel %vm2113, %v2135, 0.0
        %v2239 = vsel %vm2113, %v2138, 0.0
        %v2240 = vsel %vm2113, %v2141, 0.0
        %v2241 = vsel %vm2113, %v2144, 0.0
        %v2242 = vsel %vm2113, %v2147, 0.0
        %v2243 = vsel %vm2113, %v2150, 0.0
        %v2244 = vsel %vm2113, %v2153, 0.0
        %v2245 = vsel %vm2113, %v2156, 0.0
        %v2246 = vsel %vm2113, %v2159, 0.0
        %v2247 = vsel %vm2113, %v2162, 0.0
        %v2248 = vld [vmem:[%s4] sm:$0x1]
        %v2249 = vperm.slane %v2248, 0
        %v2250 = vmul.f32 %v2214, %v2249
        %v2251 = vmul.f32 %v2115, %v2249
        %v2252 = vmul.f32 %v2215, %v2249
        %v2253 = vmul.f32 %v2118, %v2249
        %v2254 = vmul.f32 %v2216, %v2249
        %v2255 = vmul.f32 %v2121, %v2249
        %v2256 = vmul.f32 %v2217, %v2249
        %v2257 = vmul.f32 %v2124, %v2249
        %v2258 = vmul.f32 %v2218, %v2249
        %v2259 = vmul.f32 %v2127, %v2249
        %v2260 = vmul.f32 %v2219, %v2249
        %v2261 = vmul.f32 %v2130, %v2249
        %v2262 = vmul.f32 %v2220, %v2249
        %v2263 = vmul.f32 %v2133, %v2249
        %v2264 = vmul.f32 %v2221, %v2249
        %v2265 = vmul.f32 %v2136, %v2249
        %v2266 = vmul.f32 %v2222, %v2249
        %v2267 = vmul.f32 %v2139, %v2249
        %v2268 = vmul.f32 %v2223, %v2249
        %v2269 = vmul.f32 %v2142, %v2249
        %v2270 = vmul.f32 %v2224, %v2249
        %v2271 = vmul.f32 %v2145, %v2249
        %v2272 = vmul.f32 %v2225, %v2249
        %v2273 = vmul.f32 %v2148, %v2249
        %v2274 = vmul.f32 %v2226, %v2249
        %v2275 = vmul.f32 %v2151, %v2249
        %v2276 = vmul.f32 %v2227, %v2249
        %v2277 = vmul.f32 %v2154, %v2249
        %v2278 = vmul.f32 %v2228, %v2249
        %v2279 = vmul.f32 %v2157, %v2249
        %v2280 = vmul.f32 %v2229, %v2249
        %v2281 = vmul.f32 %v2160, %v2249
        %v2282 = vadd.f32 %v2250, 0.0
        %v2283 = vadd.f32 %v2251, 0.0
        %v2284 = vadd.f32 %v2252, 0.0
        %v2285 = vadd.f32 %v2253, 0.0
        %v2286 = vadd.f32 %v2254, 0.0
        %v2287 = vadd.f32 %v2255, 0.0
        %v2288 = vadd.f32 %v2256, 0.0
        %v2289 = vadd.f32 %v2257, 0.0
        %v2290 = vadd.f32 %v2258, 0.0
        %v2291 = vadd.f32 %v2259, 0.0
        %v2292 = vadd.f32 %v2260, 0.0
        %v2293 = vadd.f32 %v2261, 0.0
        %v2294 = vadd.f32 %v2262, 0.0
        %v2295 = vadd.f32 %v2263, 0.0
        %v2296 = vadd.f32 %v2264, 0.0
        %v2297 = vadd.f32 %v2265, 0.0
        %v2298 = vadd.f32 %v2266, 0.0
        %v2299 = vadd.f32 %v2267, 0.0
        %v2300 = vadd.f32 %v2268, 0.0
        %v2301 = vadd.f32 %v2269, 0.0
        %v2302 = vadd.f32 %v2270, 0.0
        %v2303 = vadd.f32 %v2271, 0.0
        %v2304 = vadd.f32 %v2272, 0.0
        %v2305 = vadd.f32 %v2273, 0.0
        %v2306 = vadd.f32 %v2274, 0.0
        %v2307 = vadd.f32 %v2275, 0.0
        %v2308 = vadd.f32 %v2276, 0.0
        %v2309 = vadd.f32 %v2277, 0.0
        %v2310 = vadd.f32 %v2278, 0.0
        %v2311 = vadd.f32 %v2279, 0.0
        %v2312 = vadd.f32 %v2280, 0.0
        %v2313 = vadd.f32 %v2281, 0.0
        %v2314 = vld [vmem:[%s4 + $0x1] sm:$0x1]
        %v2315 = vperm.slane %v2314, 0
        %v2316 = vmul.f32 %v2214, %v2315
        %v2317 = vmul.f32 %v2115, %v2315
        %v2318 = vmul.f32 %v2231, %v2315
        %v2319 = vmul.f32 %v2215, %v2315
        %v2320 = vmul.f32 %v2118, %v2315
        %v2321 = vmul.f32 %v2232, %v2315
        %v2322 = vmul.f32 %v2216, %v2315
        %v2323 = vmul.f32 %v2121, %v2315
        %v2324 = vmul.f32 %v2233, %v2315
        %v2325 = vmul.f32 %v2217, %v2315
        %v2326 = vmul.f32 %v2124, %v2315
        %v2327 = vmul.f32 %v2234, %v2315
        %v2328 = vmul.f32 %v2218, %v2315
        %v2329 = vmul.f32 %v2127, %v2315
        %v2330 = vmul.f32 %v2235, %v2315
        %v2331 = vmul.f32 %v2219, %v2315
        %v2332 = vmul.f32 %v2130, %v2315
        %v2333 = vmul.f32 %v2236, %v2315
        %v2334 = vmul.f32 %v2220, %v2315
        %v2335 = vmul.f32 %v2133, %v2315
        %v2336 = vmul.f32 %v2237, %v2315
        %v2337 = vmul.f32 %v2221, %v2315
        %v2338 = vmul.f32 %v2136, %v2315
        %v2339 = vmul.f32 %v2238, %v2315
        %v2340 = vmul.f32 %v2222, %v2315
        %v2341 = vmul.f32 %v2139, %v2315
        %v2342 = vmul.f32 %v2239, %v2315
        %v2343 = vmul.f32 %v2223, %v2315
        %v2344 = vmul.f32 %v2142, %v2315
        %v2345 = vmul.f32 %v2240, %v2315
        %v2346 = vmul.f32 %v2224, %v2315
        %v2347 = vmul.f32 %v2145, %v2315
        %v2348 = vmul.f32 %v2241, %v2315
        %v2349 = vmul.f32 %v2225, %v2315
        %v2350 = vmul.f32 %v2148, %v2315
        %v2351 = vmul.f32 %v2242, %v2315
        %v2352 = vmul.f32 %v2226, %v2315
        %v2353 = vmul.f32 %v2151, %v2315
        %v2354 = vmul.f32 %v2243, %v2315
        %v2355 = vmul.f32 %v2227, %v2315
        %v2356 = vmul.f32 %v2154, %v2315
        %v2357 = vmul.f32 %v2244, %v2315
        %v2358 = vmul.f32 %v2228, %v2315
        %v2359 = vmul.f32 %v2157, %v2315
        %v2360 = vmul.f32 %v2245, %v2315
        %v2361 = vmul.f32 %v2229, %v2315
        %v2362 = vmul.f32 %v2160, %v2315
        %v2363 = vmul.f32 %v2246, %v2315
        %vm2412 = vcmask 1046528
        %v2413 = vrot.slane %v2316, 1
        %v2414 = vrot.slane %v2317, 1
        %v2415 = vsel %vm2412, %v2413, %v2414
        %v2416 = vrot.slane %v2318, 1
        %v2417 = vsel %vm2412, %v2414, %v2416
        %v2418 = vrot.slane %v2319, 1
        %v2419 = vrot.slane %v2320, 1
        %v2420 = vsel %vm2412, %v2418, %v2419
        %v2421 = vrot.slane %v2321, 1
        %v2422 = vsel %vm2412, %v2419, %v2421
        %v2423 = vrot.slane %v2322, 1
        %v2424 = vrot.slane %v2323, 1
        %v2425 = vsel %vm2412, %v2423, %v2424
        %v2426 = vrot.slane %v2324, 1
        %v2427 = vsel %vm2412, %v2424, %v2426
        %v2428 = vrot.slane %v2325, 1
        %v2429 = vrot.slane %v2326, 1
        %v2430 = vsel %vm2412, %v2428, %v2429
        %v2431 = vrot.slane %v2327, 1
        %v2432 = vsel %vm2412, %v2429, %v2431
        %v2433 = vrot.slane %v2328, 1
        %v2434 = vrot.slane %v2329, 1
        %v2435 = vsel %vm2412, %v2433, %v2434
        %v2436 = vrot.slane %v2330, 1
        %v2437 = vsel %vm2412, %v2434, %v2436
        %v2438 = vrot.slane %v2331, 1
        %v2439 = vrot.slane %v2332, 1
        %v2440 = vsel %vm2412, %v2438, %v2439
        %v2441 = vrot.slane %v2333, 1
        %v2442 = vsel %vm2412, %v2439, %v2441
        %v2443 = vrot.slane %v2334, 1
        %v2444 = vrot.slane %v2335, 1
        %v2445 = vsel %vm2412, %v2443, %v2444
        %v2446 = vrot.slane %v2336, 1
        %v2447 = vsel %vm2412, %v2444, %v2446
        %v2448 = vrot.slane %v2337, 1
        %v2449 = vrot.slane %v2338, 1
        %v2450 = vsel %vm2412, %v2448, %v2449
        %v2451 = vrot.slane %v2339, 1
        %v2452 = vsel %vm2412, %v2449, %v2451
        %v2453 = vrot.slane %v2340, 1
        %v2454 = vrot.slane %v2341, 1
        %v2455 = vsel %vm2412, %v2453, %v2454
        %v2456 = vrot.slane %v2342, 1
        %v2457 = vsel %vm2412, %v2454, %v2456
        %v2458 = vrot.slane %v2343, 1
        %v2459 = vrot.slane %v2344, 1
        %v2460 = vsel %vm2412, %v2458, %v2459
        %v2461 = vrot.slane %v2345, 1
        %v2462 = vsel %vm2412, %v2459, %v2461
        %v2463 = vrot.slane %v2346, 1
        %v2464 = vrot.slane %v2347, 1
        %v2465 = vsel %vm2412, %v2463, %v2464
        %v2466 = vrot.slane %v2348, 1
        %v2467 = vsel %vm2412, %v2464, %v2466
        %v2468 = vrot.slane %v2349, 1
        %v2469 = vrot.slane %v2350, 1
        %v2470 = vsel %vm2412, %v2468, %v2469
        %v2471 = vrot.slane %v2351, 1
        %v2472 = vsel %vm2412, %v2469, %v2471
        %v2473 = vrot.slane %v2352, 1
        %v2474 = vrot.slane %v2353, 1
        %v2475 = vsel %vm2412, %v2473, %v2474
        %v2476 = vrot.slane %v2354, 1
        %v2477 = vsel %vm2412, %v2474, %v2476
        %v2478 = vrot.slane %v2355, 1
        %v2479 = vrot.slane %v2356, 1
        %v2480 = vsel %vm2412, %v2478, %v2479
        %v2481 = vrot.slane %v2357, 1
        %v2482 = vsel %vm2412, %v2479, %v2481
        %v2483 = vrot.slane %v2358, 1
        %v2484 = vrot.slane %v2359, 1
        %v2485 = vsel %vm2412, %v2483, %v2484
        %v2486 = vrot.slane %v2360, 1
        %v2487 = vsel %vm2412, %v2484, %v2486
        %v2488 = vrot.slane %v2361, 1
        %v2489 = vrot.slane %v2362, 1
        %v2490 = vsel %vm2412, %v2488, %v2489
        %v2491 = vrot.slane %v2363, 1
        %v2492 = vsel %vm2412, %v2489, %v2491
        %v2525 = vadd.f32 %v2282, %v2415
        %v2526 = vadd.f32 %v2283, %v2417
        %v2527 = vadd.f32 %v2284, %v2420
        %v2528 = vadd.f32 %v2285, %v2422
        %v2529 = vadd.f32 %v2286, %v2425
        %v2530 = vadd.f32 %v2287, %v2427
        %v2531 = vadd.f32 %v2288, %v2430
        %v2532 = vadd.f32 %v2289, %v2432
        %v2533 = vadd.f32 %v2290, %v2435
        %v2534 = vadd.f32 %v2291, %v2437
        %v2535 = vadd.f32 %v2292, %v2440
        %v2536 = vadd.f32 %v2293, %v2442
        %v2537 = vadd.f32 %v2294, %v2445
        %v2538 = vadd.f32 %v2295, %v2447
        %v2539 = vadd.f32 %v2296, %v2450
        %v2540 = vadd.f32 %v2297, %v2452
        %v2541 = vadd.f32 %v2298, %v2455
        %v2542 = vadd.f32 %v2299, %v2457
        %v2543 = vadd.f32 %v2300, %v2460
        %v2544 = vadd.f32 %v2301, %v2462
        %v2545 = vadd.f32 %v2302, %v2465
        %v2546 = vadd.f32 %v2303, %v2467
        %v2547 = vadd.f32 %v2304, %v2470
        %v2548 = vadd.f32 %v2305, %v2472
        %v2549 = vadd.f32 %v2306, %v2475
        %v2550 = vadd.f32 %v2307, %v2477
        %v2551 = vadd.f32 %v2308, %v2480
        %v2552 = vadd.f32 %v2309, %v2482
        %v2553 = vadd.f32 %v2310, %v2485
        %v2554 = vadd.f32 %v2311, %v2487
        %v2555 = vadd.f32 %v2312, %v2490
        %v2556 = vadd.f32 %v2313, %v2492
        %v2557 = vld [vmem:[%s4 + $0x2] sm:$0x1]
        %v2558 = vperm.slane %v2557, 0
        %v2559 = vmul.f32 %v2214, %v2558
        %v2560 = vmul.f32 %v2115, %v2558
        %v2561 = vmul.f32 %v2231, %v2558
        %v2562 = vmul.f32 %v2215, %v2558
        %v2563 = vmul.f32 %v2118, %v2558
        %v2564 = vmul.f32 %v2232, %v2558
        %v2565 = vmul.f32 %v2216, %v2558
        %v2566 = vmul.f32 %v2121, %v2558
        %v2567 = vmul.f32 %v2233, %v2558
        %v2568 = vmul.f32 %v2217, %v2558
        %v2569 = vmul.f32 %v2124, %v2558
        %v2570 = vmul.f32 %v2234, %v2558
        %v2571 = vmul.f32 %v2218, %v2558
        %v2572 = vmul.f32 %v2127, %v2558
        %v2573 = vmul.f32 %v2235, %v2558
        %v2574 = vmul.f32 %v2219, %v2558
        %v2575 = vmul.f32 %v2130, %v2558
        %v2576 = vmul.f32 %v2236, %v2558
        %v2577 = vmul.f32 %v2220, %v2558
        %v2578 = vmul.f32 %v2133, %v2558
        %v2579 = vmul.f32 %v2237, %v2558
        %v2580 = vmul.f32 %v2221, %v2558
        %v2581 = vmul.f32 %v2136, %v2558
        %v2582 = vmul.f32 %v2238, %v2558
        %v2583 = vmul.f32 %v2222, %v2558
        %v2584 = vmul.f32 %v2139, %v2558
        %v2585 = vmul.f32 %v2239, %v2558
        %v2586 = vmul.f32 %v2223, %v2558
        %v2587 = vmul.f32 %v2142, %v2558
        %v2588 = vmul.f32 %v2240, %v2558
        %v2589 = vmul.f32 %v2224, %v2558
        %v2590 = vmul.f32 %v2145, %v2558
        %v2591 = vmul.f32 %v2241, %v2558
        %v2592 = vmul.f32 %v2225, %v2558
        %v2593 = vmul.f32 %v2148, %v2558
        %v2594 = vmul.f32 %v2242, %v2558
        %v2595 = vmul.f32 %v2226, %v2558
        %v2596 = vmul.f32 %v2151, %v2558
        %v2597 = vmul.f32 %v2243, %v2558
        %v2598 = vmul.f32 %v2227, %v2558
        %v2599 = vmul.f32 %v2154, %v2558
        %v2600 = vmul.f32 %v2244, %v2558
        %v2601 = vmul.f32 %v2228, %v2558
        %v2602 = vmul.f32 %v2157, %v2558
        %v2603 = vmul.f32 %v2245, %v2558
        %v2604 = vmul.f32 %v2229, %v2558
        %v2605 = vmul.f32 %v2160, %v2558
        %v2606 = vmul.f32 %v2246, %v2558
        %vm2655 = vcmask 1045504
        %v2656 = vrot.slane %v2559, 2
        %v2657 = vrot.slane %v2560, 2
        %v2658 = vsel %vm2655, %v2656, %v2657
        %v2659 = vrot.slane %v2561, 2
        %v2660 = vsel %vm2655, %v2657, %v2659
        %v2661 = vrot.slane %v2562, 2
        %v2662 = vrot.slane %v2563, 2
        %v2663 = vsel %vm2655, %v2661, %v2662
        %v2664 = vrot.slane %v2564, 2
        %v2665 = vsel %vm2655, %v2662, %v2664
        %v2666 = vrot.slane %v2565, 2
        %v2667 = vrot.slane %v2566, 2
        %v2668 = vsel %vm2655, %v2666, %v2667
        %v2669 = vrot.slane %v2567, 2
        %v2670 = vsel %vm2655, %v2667, %v2669
        %v2671 = vrot.slane %v2568, 2
        %v2672 = vrot.slane %v2569, 2
        %v2673 = vsel %vm2655, %v2671, %v2672
        %v2674 = vrot.slane %v2570, 2
        %v2675 = vsel %vm2655, %v2672, %v2674
        %v2676 = vrot.slane %v2571, 2
        %v2677 = vrot.slane %v2572, 2
        %v2678 = vsel %vm2655, %v2676, %v2677
        %v2679 = vrot.slane %v2573, 2
        %v2680 = vsel %vm2655, %v2677, %v2679
        %v2681 = vrot.slane %v2574, 2
        %v2682 = vrot.slane %v2575, 2
        %v2683 = vsel %vm2655, %v2681, %v2682
        %v2684 = vrot.slane %v2576, 2
        %v2685 = vsel %vm2655, %v2682, %v2684
        %v2686 = vrot.slane %v2577, 2
        %v2687 = vrot.slane %v2578, 2
        %v2688 = vsel %vm2655, %v2686, %v2687
        %v2689 = vrot.slane %v2579, 2
        %v2690 = vsel %vm2655, %v2687, %v2689
        %v2691 = vrot.slane %v2580, 2
        %v2692 = vrot.slane %v2581, 2
        %v2693 = vsel %vm2655, %v2691, %v2692
        %v2694 = vrot.slane %v2582, 2
        %v2695 = vsel %vm2655, %v2692, %v2694
        %v2696 = vrot.slane %v2583, 2
        %v2697 = vrot.slane %v2584, 2
        %v2698 = vsel %vm2655, %v2696, %v2697
        %v2699 = vrot.slane %v2585, 2
        %v2700 = vsel %vm2655, %v2697, %v2699
        %v2701 = vrot.slane %v2586, 2
        %v2702 = vrot.slane %v2587, 2
        %v2703 = vsel %vm2655, %v2701, %v2702
        %v2704 = vrot.slane %v2588, 2
        %v2705 = vsel %vm2655, %v2702, %v2704
        %v2706 = vrot.slane %v2589, 2
        %v2707 = vrot.slane %v2590, 2
        %v2708 = vsel %vm2655, %v2706, %v2707
        %v2709 = vrot.slane %v2591, 2
        %v2710 = vsel %vm2655, %v2707, %v2709
        %v2711 = vrot.slane %v2592, 2
        %v2712 = vrot.slane %v2593, 2
        %v2713 = vsel %vm2655, %v2711, %v2712
        %v2714 = vrot.slane %v2594, 2
        %v2715 = vsel %vm2655, %v2712, %v2714
        %v2716 = vrot.slane %v2595, 2
        %v2717 = vrot.slane %v2596, 2
        %v2718 = vsel %vm2655, %v2716, %v2717
        %v2719 = vrot.slane %v2597, 2
        %v2720 = vsel %vm2655, %v2717, %v2719
        %v2721 = vrot.slane %v2598, 2
        %v2722 = vrot.slane %v2599, 2
        %v2723 = vsel %vm2655, %v2721, %v2722
        %v2724 = vrot.slane %v2600, 2
        %v2725 = vsel %vm2655, %v2722, %v2724
        %v2726 = vrot.slane %v2601, 2
        %v2727 = vrot.slane %v2602, 2
        %v2728 = vsel %vm2655, %v2726, %v2727
        %v2729 = vrot.slane %v2603, 2
        %v2730 = vsel %vm2655, %v2727, %v2729
        %v2731 = vrot.slane %v2604, 2
        %v2732 = vrot.slane %v2605, 2
        %v2733 = vsel %vm2655, %v2731, %v2732
        %v2734 = vrot.slane %v2606, 2
        %v2735 = vsel %vm2655, %v2732, %v2734
        %v2768 = vadd.f32 %v2525, %v2658
        %v2769 = vadd.f32 %v2526, %v2660
        %v2770 = vadd.f32 %v2527, %v2663
        %v2771 = vadd.f32 %v2528, %v2665
        %v2772 = vadd.f32 %v2529, %v2668
        %v2773 = vadd.f32 %v2530, %v2670
        %v2774 = vadd.f32 %v2531, %v2673
        %v2775 = vadd.f32 %v2532, %v2675
        %v2776 = vadd.f32 %v2533, %v2678
        %v2777 = vadd.f32 %v2534, %v2680
        %v2778 = vadd.f32 %v2535, %v2683
        %v2779 = vadd.f32 %v2536, %v2685
        %v2780 = vadd.f32 %v2537, %v2688
        %v2781 = vadd.f32 %v2538, %v2690
        %v2782 = vadd.f32 %v2539, %v2693
        %v2783 = vadd.f32 %v2540, %v2695
        %v2784 = vadd.f32 %v2541, %v2698
        %v2785 = vadd.f32 %v2542, %v2700
        %v2786 = vadd.f32 %v2543, %v2703
        %v2787 = vadd.f32 %v2544, %v2705
        %v2788 = vadd.f32 %v2545, %v2708
        %v2789 = vadd.f32 %v2546, %v2710
        %v2790 = vadd.f32 %v2547, %v2713
        %v2791 = vadd.f32 %v2548, %v2715
        %v2792 = vadd.f32 %v2549, %v2718
        %v2793 = vadd.f32 %v2550, %v2720
        %v2794 = vadd.f32 %v2551, %v2723
        %v2795 = vadd.f32 %v2552, %v2725
        %v2796 = vadd.f32 %v2553, %v2728
        %v2797 = vadd.f32 %v2554, %v2730
        %v2798 = vadd.f32 %v2555, %v2733
        %v2799 = vadd.f32 %v2556, %v2735
        %s2800 = scalar_lea.vmem %s4, 4
        %v2801 = vld [vmem:[%s2800] sm:$0x1]
        %v2802 = vperm.slane %v2801, 0
        %v2803 = vmul.f32 %v2215, %v2802
        %v2804 = vmul.f32 %v2118, %v2802
        %v2805 = vmul.f32 %v2216, %v2802
        %v2806 = vmul.f32 %v2121, %v2802
        %v2807 = vmul.f32 %v2217, %v2802
        %v2808 = vmul.f32 %v2124, %v2802
        %v2809 = vmul.f32 %v2218, %v2802
        %v2810 = vmul.f32 %v2127, %v2802
        %v2811 = vmul.f32 %v2219, %v2802
        %v2812 = vmul.f32 %v2130, %v2802
        %v2813 = vmul.f32 %v2220, %v2802
        %v2814 = vmul.f32 %v2133, %v2802
        %v2815 = vmul.f32 %v2221, %v2802
        %v2816 = vmul.f32 %v2136, %v2802
        %v2817 = vmul.f32 %v2222, %v2802
        %v2818 = vmul.f32 %v2139, %v2802
        %v2819 = vmul.f32 %v2223, %v2802
        %v2820 = vmul.f32 %v2142, %v2802
        %v2821 = vmul.f32 %v2224, %v2802
        %v2822 = vmul.f32 %v2145, %v2802
        %v2823 = vmul.f32 %v2225, %v2802
        %v2824 = vmul.f32 %v2148, %v2802
        %v2825 = vmul.f32 %v2226, %v2802
        %v2826 = vmul.f32 %v2151, %v2802
        %v2827 = vmul.f32 %v2227, %v2802
        %v2828 = vmul.f32 %v2154, %v2802
        %v2829 = vmul.f32 %v2228, %v2802
        %v2830 = vmul.f32 %v2157, %v2802
        %v2831 = vmul.f32 %v2229, %v2802
        %v2832 = vmul.f32 %v2160, %v2802
        %v2833 = vmul.f32 %v2230, %v2802
        %v2834 = vmul.f32 %v2163, %v2802
        %v2835 = vadd.f32 %v2768, %v2803
        %v2836 = vadd.f32 %v2769, %v2804
        %v2837 = vadd.f32 %v2770, %v2805
        %v2838 = vadd.f32 %v2771, %v2806
        %v2839 = vadd.f32 %v2772, %v2807
        %v2840 = vadd.f32 %v2773, %v2808
        %v2841 = vadd.f32 %v2774, %v2809
        %v2842 = vadd.f32 %v2775, %v2810
        %v2843 = vadd.f32 %v2776, %v2811
        %v2844 = vadd.f32 %v2777, %v2812
        %v2845 = vadd.f32 %v2778, %v2813
        %v2846 = vadd.f32 %v2779, %v2814
        %v2847 = vadd.f32 %v2780, %v2815
        %v2848 = vadd.f32 %v2781, %v2816
        %v2849 = vadd.f32 %v2782, %v2817
        %v2850 = vadd.f32 %v2783, %v2818
        %v2851 = vadd.f32 %v2784, %v2819
        %v2852 = vadd.f32 %v2785, %v2820
        %v2853 = vadd.f32 %v2786, %v2821
        %v2854 = vadd.f32 %v2787, %v2822
        %v2855 = vadd.f32 %v2788, %v2823
        %v2856 = vadd.f32 %v2789, %v2824
        %v2857 = vadd.f32 %v2790, %v2825
        %v2858 = vadd.f32 %v2791, %v2826
        %v2859 = vadd.f32 %v2792, %v2827
        %v2860 = vadd.f32 %v2793, %v2828
        %v2861 = vadd.f32 %v2794, %v2829
        %v2862 = vadd.f32 %v2795, %v2830
        %v2863 = vadd.f32 %v2796, %v2831
        %v2864 = vadd.f32 %v2797, %v2832
        %v2865 = vadd.f32 %v2798, %v2833
        %v2866 = vadd.f32 %v2799, %v2834
        %v2867 = vld [vmem:[%s2800 + $0x1] sm:$0x1]
        %v2868 = vperm.slane %v2867, 0
        %v2869 = vmul.f32 %v2215, %v2868
        %v2870 = vmul.f32 %v2118, %v2868
        %v2871 = vmul.f32 %v2232, %v2868
        %v2872 = vmul.f32 %v2216, %v2868
        %v2873 = vmul.f32 %v2121, %v2868
        %v2874 = vmul.f32 %v2233, %v2868
        %v2875 = vmul.f32 %v2217, %v2868
        %v2876 = vmul.f32 %v2124, %v2868
        %v2877 = vmul.f32 %v2234, %v2868
        %v2878 = vmul.f32 %v2218, %v2868
        %v2879 = vmul.f32 %v2127, %v2868
        %v2880 = vmul.f32 %v2235, %v2868
        %v2881 = vmul.f32 %v2219, %v2868
        %v2882 = vmul.f32 %v2130, %v2868
        %v2883 = vmul.f32 %v2236, %v2868
        %v2884 = vmul.f32 %v2220, %v2868
        %v2885 = vmul.f32 %v2133, %v2868
        %v2886 = vmul.f32 %v2237, %v2868
        %v2887 = vmul.f32 %v2221, %v2868
        %v2888 = vmul.f32 %v2136, %v2868
        %v2889 = vmul.f32 %v2238, %v2868
        %v2890 = vmul.f32 %v2222, %v2868
        %v2891 = vmul.f32 %v2139, %v2868
        %v2892 = vmul.f32 %v2239, %v2868
        %v2893 = vmul.f32 %v2223, %v2868
        %v2894 = vmul.f32 %v2142, %v2868
        %v2895 = vmul.f32 %v2240, %v2868
        %v2896 = vmul.f32 %v2224, %v2868
        %v2897 = vmul.f32 %v2145, %v2868
        %v2898 = vmul.f32 %v2241, %v2868
        %v2899 = vmul.f32 %v2225, %v2868
        %v2900 = vmul.f32 %v2148, %v2868
        %v2901 = vmul.f32 %v2242, %v2868
        %v2902 = vmul.f32 %v2226, %v2868
        %v2903 = vmul.f32 %v2151, %v2868
        %v2904 = vmul.f32 %v2243, %v2868
        %v2905 = vmul.f32 %v2227, %v2868
        %v2906 = vmul.f32 %v2154, %v2868
        %v2907 = vmul.f32 %v2244, %v2868
        %v2908 = vmul.f32 %v2228, %v2868
        %v2909 = vmul.f32 %v2157, %v2868
        %v2910 = vmul.f32 %v2245, %v2868
        %v2911 = vmul.f32 %v2229, %v2868
        %v2912 = vmul.f32 %v2160, %v2868
        %v2913 = vmul.f32 %v2246, %v2868
        %v2914 = vmul.f32 %v2230, %v2868
        %v2915 = vmul.f32 %v2163, %v2868
        %v2916 = vmul.f32 %v2247, %v2868
        %v2965 = vrot.slane %v2869, 1
        %v2966 = vrot.slane %v2870, 1
        %v2967 = vsel %vm2412, %v2965, %v2966
        %v2968 = vrot.slane %v2871, 1
        %v2969 = vsel %vm2412, %v2966, %v2968
        %v2970 = vrot.slane %v2872, 1
        %v2971 = vrot.slane %v2873, 1
        %v2972 = vsel %vm2412, %v2970, %v2971
        %v2973 = vrot.slane %v2874, 1
        %v2974 = vsel %vm2412, %v2971, %v2973
        %v2975 = vrot.slane %v2875, 1
        %v2976 = vrot.slane %v2876, 1
        %v2977 = vsel %vm2412, %v2975, %v2976
        %v2978 = vrot.slane %v2877, 1
        %v2979 = vsel %vm2412, %v2976, %v2978
        %v2980 = vrot.slane %v2878, 1
        %v2981 = vrot.slane %v2879, 1
        %v2982 = vsel %vm2412, %v2980, %v2981
        %v2983 = vrot.slane %v2880, 1
        %v2984 = vsel %vm2412, %v2981, %v2983
        %v2985 = vrot.slane %v2881, 1
        %v2986 = vrot.slane %v2882, 1
        %v2987 = vsel %vm2412, %v2985, %v2986
        %v2988 = vrot.slane %v2883, 1
        %v2989 = vsel %vm2412, %v2986, %v2988
        %v2990 = vrot.slane %v2884, 1
        %v2991 = vrot.slane %v2885, 1
        %v2992 = vsel %vm2412, %v2990, %v2991
        %v2993 = vrot.slane %v2886, 1
        %v2994 = vsel %vm2412, %v2991, %v2993
        %v2995 = vrot.slane %v2887, 1
        %v2996 = vrot.slane %v2888, 1
        %v2997 = vsel %vm2412, %v2995, %v2996
        %v2998 = vrot.slane %v2889, 1
        %v2999 = vsel %vm2412, %v2996, %v2998
        %v3000 = vrot.slane %v2890, 1
        %v3001 = vrot.slane %v2891, 1
        %v3002 = vsel %vm2412, %v3000, %v3001
        %v3003 = vrot.slane %v2892, 1
        %v3004 = vsel %vm2412, %v3001, %v3003
        %v3005 = vrot.slane %v2893, 1
        %v3006 = vrot.slane %v2894, 1
        %v3007 = vsel %vm2412, %v3005, %v3006
        %v3008 = vrot.slane %v2895, 1
        %v3009 = vsel %vm2412, %v3006, %v3008
        %v3010 = vrot.slane %v2896, 1
        %v3011 = vrot.slane %v2897, 1
        %v3012 = vsel %vm2412, %v3010, %v3011
        %v3013 = vrot.slane %v2898, 1
        %v3014 = vsel %vm2412, %v3011, %v3013
        %v3015 = vrot.slane %v2899, 1
        %v3016 = vrot.slane %v2900, 1
        %v3017 = vsel %vm2412, %v3015, %v3016
        %v3018 = vrot.slane %v2901, 1
        %v3019 = vsel %vm2412, %v3016, %v3018
        %v3020 = vrot.slane %v2902, 1
        %v3021 = vrot.slane %v2903, 1
        %v3022 = vsel %vm2412, %v3020, %v3021
        %v3023 = vrot.slane %v2904, 1
        %v3024 = vsel %vm2412, %v3021, %v3023
        %v3025 = vrot.slane %v2905, 1
        %v3026 = vrot.slane %v2906, 1
        %v3027 = vsel %vm2412, %v3025, %v3026
        %v3028 = vrot.slane %v2907, 1
        %v3029 = vsel %vm2412, %v3026, %v3028
        %v3030 = vrot.slane %v2908, 1
        %v3031 = vrot.slane %v2909, 1
        %v3032 = vsel %vm2412, %v3030, %v3031
        %v3033 = vrot.slane %v2910, 1
        %v3034 = vsel %vm2412, %v3031, %v3033
        %v3035 = vrot.slane %v2911, 1
        %v3036 = vrot.slane %v2912, 1
        %v3037 = vsel %vm2412, %v3035, %v3036
        %v3038 = vrot.slane %v2913, 1
        %v3039 = vsel %vm2412, %v3036, %v3038
        %v3040 = vrot.slane %v2914, 1
        %v3041 = vrot.slane %v2915, 1
        %v3042 = vsel %vm2412, %v3040, %v3041
        %v3043 = vrot.slane %v2916, 1
        %v3044 = vsel %vm2412, %v3041, %v3043
        %v3077 = vadd.f32 %v2835, %v2967
        %v3078 = vadd.f32 %v2836, %v2969
        %v3079 = vadd.f32 %v2837, %v2972
        %v3080 = vadd.f32 %v2838, %v2974
        %v3081 = vadd.f32 %v2839, %v2977
        %v3082 = vadd.f32 %v2840, %v2979
        %v3083 = vadd.f32 %v2841, %v2982
        %v3084 = vadd.f32 %v2842, %v2984
        %v3085 = vadd.f32 %v2843, %v2987
        %v3086 = vadd.f32 %v2844, %v2989
        %v3087 = vadd.f32 %v2845, %v2992
        %v3088 = vadd.f32 %v2846, %v2994
        %v3089 = vadd.f32 %v2847, %v2997
        %v3090 = vadd.f32 %v2848, %v2999
        %v3091 = vadd.f32 %v2849, %v3002
        %v3092 = vadd.f32 %v2850, %v3004
        %v3093 = vadd.f32 %v2851, %v3007
        %v3094 = vadd.f32 %v2852, %v3009
        %v3095 = vadd.f32 %v2853, %v3012
        %v3096 = vadd.f32 %v2854, %v3014
        %v3097 = vadd.f32 %v2855, %v3017
        %v3098 = vadd.f32 %v2856, %v3019
        %v3099 = vadd.f32 %v2857, %v3022
        %v3100 = vadd.f32 %v2858, %v3024
        %v3101 = vadd.f32 %v2859, %v3027
        %v3102 = vadd.f32 %v2860, %v3029
        %v3103 = vadd.f32 %v2861, %v3032
        %v3104 = vadd.f32 %v2862, %v3034
        %v3105 = vadd.f32 %v2863, %v3037
        %v3106 = vadd.f32 %v2864, %v3039
        %v3107 = vadd.f32 %v2865, %v3042
        %v3108 = vadd.f32 %v2866, %v3044
        %v3109 = vld [vmem:[%s2800 + $0x2] sm:$0x1]
        %v3110 = vperm.slane %v3109, 0
        %v3111 = vmul.f32 %v2215, %v3110
        %v3112 = vmul.f32 %v2118, %v3110
        %v3113 = vmul.f32 %v2232, %v3110
        %v3114 = vmul.f32 %v2216, %v3110
        %v3115 = vmul.f32 %v2121, %v3110
        %v3116 = vmul.f32 %v2233, %v3110
        %v3117 = vmul.f32 %v2217, %v3110
        %v3118 = vmul.f32 %v2124, %v3110
        %v3119 = vmul.f32 %v2234, %v3110
        %v3120 = vmul.f32 %v2218, %v3110
        %v3121 = vmul.f32 %v2127, %v3110
        %v3122 = vmul.f32 %v2235, %v3110
        %v3123 = vmul.f32 %v2219, %v3110
        %v3124 = vmul.f32 %v2130, %v3110
        %v3125 = vmul.f32 %v2236, %v3110
        %v3126 = vmul.f32 %v2220, %v3110
        %v3127 = vmul.f32 %v2133, %v3110
        %v3128 = vmul.f32 %v2237, %v3110
        %v3129 = vmul.f32 %v2221, %v3110
        %v3130 = vmul.f32 %v2136, %v3110
        %v3131 = vmul.f32 %v2238, %v3110
        %v3132 = vmul.f32 %v2222, %v3110
        %v3133 = vmul.f32 %v2139, %v3110
        %v3134 = vmul.f32 %v2239, %v3110
        %v3135 = vmul.f32 %v2223, %v3110
        %v3136 = vmul.f32 %v2142, %v3110
        %v3137 = vmul.f32 %v2240, %v3110
        %v3138 = vmul.f32 %v2224, %v3110
        %v3139 = vmul.f32 %v2145, %v3110
        %v3140 = vmul.f32 %v2241, %v3110
        %v3141 = vmul.f32 %v2225, %v3110
        %v3142 = vmul.f32 %v2148, %v3110
        %v3143 = vmul.f32 %v2242, %v3110
        %v3144 = vmul.f32 %v2226, %v3110
        %v3145 = vmul.f32 %v2151, %v3110
        %v3146 = vmul.f32 %v2243, %v3110
        %v3147 = vmul.f32 %v2227, %v3110
        %v3148 = vmul.f32 %v2154, %v3110
        %v3149 = vmul.f32 %v2244, %v3110
        %v3150 = vmul.f32 %v2228, %v3110
        %v3151 = vmul.f32 %v2157, %v3110
        %v3152 = vmul.f32 %v2245, %v3110
        %v3153 = vmul.f32 %v2229, %v3110
        %v3154 = vmul.f32 %v2160, %v3110
        %v3155 = vmul.f32 %v2246, %v3110
        %v3156 = vmul.f32 %v2230, %v3110
        %v3157 = vmul.f32 %v2163, %v3110
        %v3158 = vmul.f32 %v2247, %v3110
        %v3207 = vrot.slane %v3111, 2
        %v3208 = vrot.slane %v3112, 2
        %v3209 = vsel %vm2655, %v3207, %v3208
        %v3210 = vrot.slane %v3113, 2
        %v3211 = vsel %vm2655, %v3208, %v3210
        %v3212 = vrot.slane %v3114, 2
        %v3213 = vrot.slane %v3115, 2
        %v3214 = vsel %vm2655, %v3212, %v3213
        %v3215 = vrot.slane %v3116, 2
        %v3216 = vsel %vm2655, %v3213, %v3215
        %v3217 = vrot.slane %v3117, 2
        %v3218 = vrot.slane %v3118, 2
        %v3219 = vsel %vm2655, %v3217, %v3218
        %v3220 = vrot.slane %v3119, 2
        %v3221 = vsel %vm2655, %v3218, %v3220
        %v3222 = vrot.slane %v3120, 2
        %v3223 = vrot.slane %v3121, 2
        %v3224 = vsel %vm2655, %v3222, %v3223
        %v3225 = vrot.slane %v3122, 2
        %v3226 = vsel %vm2655, %v3223, %v3225
        %v3227 = vrot.slane %v3123, 2
        %v3228 = vrot.slane %v3124, 2
        %v3229 = vsel %vm2655, %v3227, %v3228
        %v3230 = vrot.slane %v3125, 2
        %v3231 = vsel %vm2655, %v3228, %v3230
        %v3232 = vrot.slane %v3126, 2
        %v3233 = vrot.slane %v3127, 2
        %v3234 = vsel %vm2655, %v3232, %v3233
        %v3235 = vrot.slane %v3128, 2
        %v3236 = vsel %vm2655, %v3233, %v3235
        %v3237 = vrot.slane %v3129, 2
        %v3238 = vrot.slane %v3130, 2
        %v3239 = vsel %vm2655, %v3237, %v3238
        %v3240 = vrot.slane %v3131, 2
        %v3241 = vsel %vm2655, %v3238, %v3240
        %v3242 = vrot.slane %v3132, 2
        %v3243 = vrot.slane %v3133, 2
        %v3244 = vsel %vm2655, %v3242, %v3243
        %v3245 = vrot.slane %v3134, 2
        %v3246 = vsel %vm2655, %v3243, %v3245
        %v3247 = vrot.slane %v3135, 2
        %v3248 = vrot.slane %v3136, 2
        %v3249 = vsel %vm2655, %v3247, %v3248
        %v3250 = vrot.slane %v3137, 2
        %v3251 = vsel %vm2655, %v3248, %v3250
        %v3252 = vrot.slane %v3138, 2
        %v3253 = vrot.slane %v3139, 2
        %v3254 = vsel %vm2655, %v3252, %v3253
        %v3255 = vrot.slane %v3140, 2
        %v3256 = vsel %vm2655, %v3253, %v3255
        %v3257 = vrot.slane %v3141, 2
        %v3258 = vrot.slane %v3142, 2
        %v3259 = vsel %vm2655, %v3257, %v3258
        %v3260 = vrot.slane %v3143, 2
        %v3261 = vsel %vm2655, %v3258, %v3260
        %v3262 = vrot.slane %v3144, 2
        %v3263 = vrot.slane %v3145, 2
        %v3264 = vsel %vm2655, %v3262, %v3263
        %v3265 = vrot.slane %v3146, 2
        %v3266 = vsel %vm2655, %v3263, %v3265
        %v3267 = vrot.slane %v3147, 2
        %v3268 = vrot.slane %v3148, 2
        %v3269 = vsel %vm2655, %v3267, %v3268
        %v3270 = vrot.slane %v3149, 2
        %v3271 = vsel %vm2655, %v3268, %v3270
        %v3272 = vrot.slane %v3150, 2
        %v3273 = vrot.slane %v3151, 2
        %v3274 = vsel %vm2655, %v3272, %v3273
        %v3275 = vrot.slane %v3152, 2
        %v3276 = vsel %vm2655, %v3273, %v3275
        %v3277 = vrot.slane %v3153, 2
        %v3278 = vrot.slane %v3154, 2
        %v3279 = vsel %vm2655, %v3277, %v3278
        %v3280 = vrot.slane %v3155, 2
        %v3281 = vsel %vm2655, %v3278, %v3280
        %v3282 = vrot.slane %v3156, 2
        %v3283 = vrot.slane %v3157, 2
        %v3284 = vsel %vm2655, %v3282, %v3283
        %v3285 = vrot.slane %v3158, 2
        %v3286 = vsel %vm2655, %v3283, %v3285
        %v3319 = vadd.f32 %v3077, %v3209
        %v3320 = vadd.f32 %v3078, %v3211
        %v3321 = vadd.f32 %v3079, %v3214
        %v3322 = vadd.f32 %v3080, %v3216
        %v3323 = vadd.f32 %v3081, %v3219
        %v3324 = vadd.f32 %v3082, %v3221
        %v3325 = vadd.f32 %v3083, %v3224
        %v3326 = vadd.f32 %v3084, %v3226
        %v3327 = vadd.f32 %v3085, %v3229
        %v3328 = vadd.f32 %v3086, %v3231
        %v3329 = vadd.f32 %v3087, %v3234
        %v3330 = vadd.f32 %v3088, %v3236
        %v3331 = vadd.f32 %v3089, %v3239
        %v3332 = vadd.f32 %v3090, %v3241
        %v3333 = vadd.f32 %v3091, %v3244
        %v3334 = vadd.f32 %v3092, %v3246
        %v3335 = vadd.f32 %v3093, %v3249
        %v3336 = vadd.f32 %v3094, %v3251
        %v3337 = vadd.f32 %v3095, %v3254
        %v3338 = vadd.f32 %v3096, %v3256
        %v3339 = vadd.f32 %v3097, %v3259
        %v3340 = vadd.f32 %v3098, %v3261
        %v3341 = vadd.f32 %v3099, %v3264
        %v3342 = vadd.f32 %v3100, %v3266
        %v3343 = vadd.f32 %v3101, %v3269
        %v3344 = vadd.f32 %v3102, %v3271
        %v3345 = vadd.f32 %v3103, %v3274
        %v3346 = vadd.f32 %v3104, %v3276
        %v3347 = vadd.f32 %v3105, %v3279
        %v3348 = vadd.f32 %v3106, %v3281
        %v3349 = vadd.f32 %v3107, %v3284
        %v3350 = vadd.f32 %v3108, %v3286
        %s3351 = scalar_lea.vmem %s4, 8
        %v3352 = vld [vmem:[%s3351] sm:$0x1]
        %v3353 = vperm.slane %v3352, 0
        %v3354 = vmul.f32 %v2216, %v3353
        %v3355 = vmul.f32 %v2121, %v3353
        %v3356 = vmul.f32 %v2217, %v3353
        %v3357 = vmul.f32 %v2124, %v3353
        %v3358 = vmul.f32 %v2218, %v3353
        %v3359 = vmul.f32 %v2127, %v3353
        %v3360 = vmul.f32 %v2219, %v3353
        %v3361 = vmul.f32 %v2130, %v3353
        %v3362 = vmul.f32 %v2220, %v3353
        %v3363 = vmul.f32 %v2133, %v3353
        %v3364 = vmul.f32 %v2221, %v3353
        %v3365 = vmul.f32 %v2136, %v3353
        %v3366 = vmul.f32 %v2222, %v3353
        %v3367 = vmul.f32 %v2139, %v3353
        %v3368 = vmul.f32 %v2223, %v3353
        %v3369 = vmul.f32 %v2142, %v3353
        %v3370 = vmul.f32 %v2224, %v3353
        %v3371 = vmul.f32 %v2145, %v3353
        %v3372 = vmul.f32 %v2225, %v3353
        %v3373 = vmul.f32 %v2148, %v3353
        %v3374 = vmul.f32 %v2226, %v3353
        %v3375 = vmul.f32 %v2151, %v3353
        %v3376 = vmul.f32 %v2227, %v3353
        %v3377 = vmul.f32 %v2154, %v3353
        %v3378 = vmul.f32 %v2228, %v3353
        %v3379 = vmul.f32 %v2157, %v3353
        %v3380 = vmul.f32 %v2229, %v3353
        %v3381 = vmul.f32 %v2160, %v3353
        %v3382 = vmul.f32 %v2230, %v3353
        %v3383 = vmul.f32 %v2163, %v3353
        %v3384 = vmul.f32 %v2214, %v3353
        %v3385 = vmul.f32 %v2115, %v3353
        %v3386 = vadd.f32 %v3319, %v3354
        %v3387 = vadd.f32 %v3320, %v3355
        %v3388 = vadd.f32 %v3321, %v3356
        %v3389 = vadd.f32 %v3322, %v3357
        %v3390 = vadd.f32 %v3323, %v3358
        %v3391 = vadd.f32 %v3324, %v3359
        %v3392 = vadd.f32 %v3325, %v3360
        %v3393 = vadd.f32 %v3326, %v3361
        %v3394 = vadd.f32 %v3327, %v3362
        %v3395 = vadd.f32 %v3328, %v3363
        %v3396 = vadd.f32 %v3329, %v3364
        %v3397 = vadd.f32 %v3330, %v3365
        %v3398 = vadd.f32 %v3331, %v3366
        %v3399 = vadd.f32 %v3332, %v3367
        %v3400 = vadd.f32 %v3333, %v3368
        %v3401 = vadd.f32 %v3334, %v3369
        %v3402 = vadd.f32 %v3335, %v3370
        %v3403 = vadd.f32 %v3336, %v3371
        %v3404 = vadd.f32 %v3337, %v3372
        %v3405 = vadd.f32 %v3338, %v3373
        %v3406 = vadd.f32 %v3339, %v3374
        %v3407 = vadd.f32 %v3340, %v3375
        %v3408 = vadd.f32 %v3341, %v3376
        %v3409 = vadd.f32 %v3342, %v3377
        %v3410 = vadd.f32 %v3343, %v3378
        %v3411 = vadd.f32 %v3344, %v3379
        %v3412 = vadd.f32 %v3345, %v3380
        %v3413 = vadd.f32 %v3346, %v3381
        %v3414 = vadd.f32 %v3347, %v3382
        %v3415 = vadd.f32 %v3348, %v3383
        %v3416 = vadd.f32 %v3349, %v3384
        %v3417 = vadd.f32 %v3350, %v3385
        %v3418 = vld [vmem:[%s3351 + $0x1] sm:$0x1]
        %v3419 = vperm.slane %v3418, 0
        %v3420 = vmul.f32 %v2216, %v3419
        %v3421 = vmul.f32 %v2121, %v3419
        %v3422 = vmul.f32 %v2233, %v3419
        %v3423 = vmul.f32 %v2217, %v3419
        %v3424 = vmul.f32 %v2124, %v3419
        %v3425 = vmul.f32 %v2234, %v3419
        %v3426 = vmul.f32 %v2218, %v3419
        %v3427 = vmul.f32 %v2127, %v3419
        %v3428 = vmul.f32 %v2235, %v3419
        %v3429 = vmul.f32 %v2219, %v3419
        %v3430 = vmul.f32 %v2130, %v3419
        %v3431 = vmul.f32 %v2236, %v3419
        %v3432 = vmul.f32 %v2220, %v3419
        %v3433 = vmul.f32 %v2133, %v3419
        %v3434 = vmul.f32 %v2237, %v3419
        %v3435 = vmul.f32 %v2221, %v3419
        %v3436 = vmul.f32 %v2136, %v3419
        %v3437 = vmul.f32 %v2238, %v3419
        %v3438 = vmul.f32 %v2222, %v3419
        %v3439 = vmul.f32 %v2139, %v3419
        %v3440 = vmul.f32 %v2239, %v3419
        %v3441 = vmul.f32 %v2223, %v3419
        %v3442 = vmul.f32 %v2142, %v3419
        %v3443 = vmul.f32 %v2240, %v3419
        %v3444 = vmul.f32 %v2224, %v3419
        %v3445 = vmul.f32 %v2145, %v3419
        %v3446 = vmul.f32 %v2241, %v3419
        %v3447 = vmul.f32 %v2225, %v3419
        %v3448 = vmul.f32 %v2148, %v3419
        %v3449 = vmul.f32 %v2242, %v3419
        %v3450 = vmul.f32 %v2226, %v3419
        %v3451 = vmul.f32 %v2151, %v3419
        %v3452 = vmul.f32 %v2243, %v3419
        %v3453 = vmul.f32 %v2227, %v3419
        %v3454 = vmul.f32 %v2154, %v3419
        %v3455 = vmul.f32 %v2244, %v3419
        %v3456 = vmul.f32 %v2228, %v3419
        %v3457 = vmul.f32 %v2157, %v3419
        %v3458 = vmul.f32 %v2245, %v3419
        %v3459 = vmul.f32 %v2229, %v3419
        %v3460 = vmul.f32 %v2160, %v3419
        %v3461 = vmul.f32 %v2246, %v3419
        %v3462 = vmul.f32 %v2230, %v3419
        %v3463 = vmul.f32 %v2163, %v3419
        %v3464 = vmul.f32 %v2247, %v3419
        %v3465 = vmul.f32 %v2214, %v3419
        %v3466 = vmul.f32 %v2115, %v3419
        %v3467 = vmul.f32 %v2231, %v3419
        %v3516 = vrot.slane %v3420, 1
        %v3517 = vrot.slane %v3421, 1
        %v3518 = vsel %vm2412, %v3516, %v3517
        %v3519 = vrot.slane %v3422, 1
        %v3520 = vsel %vm2412, %v3517, %v3519
        %v3521 = vrot.slane %v3423, 1
        %v3522 = vrot.slane %v3424, 1
        %v3523 = vsel %vm2412, %v3521, %v3522
        %v3524 = vrot.slane %v3425, 1
        %v3525 = vsel %vm2412, %v3522, %v3524
        %v3526 = vrot.slane %v3426, 1
        %v3527 = vrot.slane %v3427, 1
        %v3528 = vsel %vm2412, %v3526, %v3527
        %v3529 = vrot.slane %v3428, 1
        %v3530 = vsel %vm2412, %v3527, %v3529
        %v3531 = vrot.slane %v3429, 1
        %v3532 = vrot.slane %v3430, 1
        %v3533 = vsel %vm2412, %v3531, %v3532
        %v3534 = vrot.slane %v3431, 1
        %v3535 = vsel %vm2412, %v3532, %v3534
        %v3536 = vrot.slane %v3432, 1
        %v3537 = vrot.slane %v3433, 1
        %v3538 = vsel %vm2412, %v3536, %v3537
        %v3539 = vrot.slane %v3434, 1
        %v3540 = vsel %vm2412, %v3537, %v3539
        %v3541 = vrot.slane %v3435, 1
        %v3542 = vrot.slane %v3436, 1
        %v3543 = vsel %vm2412, %v3541, %v3542
        %v3544 = vrot.slane %v3437, 1
        %v3545 = vsel %vm2412, %v3542, %v3544
        %v3546 = vrot.slane %v3438, 1
        %v3547 = vrot.slane %v3439, 1
        %v3548 = vsel %vm2412, %v3546, %v3547
        %v3549 = vrot.slane %v3440, 1
        %v3550 = vsel %vm2412, %v3547, %v3549
        %v3551 = vrot.slane %v3441, 1
        %v3552 = vrot.slane %v3442, 1
        %v3553 = vsel %vm2412, %v3551, %v3552
        %v3554 = vrot.slane %v3443, 1
        %v3555 = vsel %vm2412, %v3552, %v3554
        %v3556 = vrot.slane %v3444, 1
        %v3557 = vrot.slane %v3445, 1
        %v3558 = vsel %vm2412, %v3556, %v3557
        %v3559 = vrot.slane %v3446, 1
        %v3560 = vsel %vm2412, %v3557, %v3559
        %v3561 = vrot.slane %v3447, 1
        %v3562 = vrot.slane %v3448, 1
        %v3563 = vsel %vm2412, %v3561, %v3562
        %v3564 = vrot.slane %v3449, 1
        %v3565 = vsel %vm2412, %v3562, %v3564
        %v3566 = vrot.slane %v3450, 1
        %v3567 = vrot.slane %v3451, 1
        %v3568 = vsel %vm2412, %v3566, %v3567
        %v3569 = vrot.slane %v3452, 1
        %v3570 = vsel %vm2412, %v3567, %v3569
        %v3571 = vrot.slane %v3453, 1
        %v3572 = vrot.slane %v3454, 1
        %v3573 = vsel %vm2412, %v3571, %v3572
        %v3574 = vrot.slane %v3455, 1
        %v3575 = vsel %vm2412, %v3572, %v3574
        %v3576 = vrot.slane %v3456, 1
        %v3577 = vrot.slane %v3457, 1
        %v3578 = vsel %vm2412, %v3576, %v3577
        %v3579 = vrot.slane %v3458, 1
        %v3580 = vsel %vm2412, %v3577, %v3579
        %v3581 = vrot.slane %v3459, 1
        %v3582 = vrot.slane %v3460, 1
        %v3583 = vsel %vm2412, %v3581, %v3582
        %v3584 = vrot.slane %v3461, 1
        %v3585 = vsel %vm2412, %v3582, %v3584
        %v3586 = vrot.slane %v3462, 1
        %v3587 = vrot.slane %v3463, 1
        %v3588 = vsel %vm2412, %v3586, %v3587
        %v3589 = vrot.slane %v3464, 1
        %v3590 = vsel %vm2412, %v3587, %v3589
        %v3591 = vrot.slane %v3465, 1
        %v3592 = vrot.slane %v3466, 1
        %v3593 = vsel %vm2412, %v3591, %v3592
        %v3594 = vrot.slane %v3467, 1
        %v3595 = vsel %vm2412, %v3592, %v3594
        %v3628 = vadd.f32 %v3386, %v3518
        %v3629 = vadd.f32 %v3387, %v3520
        %v3630 = vadd.f32 %v3388, %v3523
        %v3631 = vadd.f32 %v3389, %v3525
        %v3632 = vadd.f32 %v3390, %v3528
        %v3633 = vadd.f32 %v3391, %v3530
        %v3634 = vadd.f32 %v3392, %v3533
        %v3635 = vadd.f32 %v3393, %v3535
        %v3636 = vadd.f32 %v3394, %v3538
        %v3637 = vadd.f32 %v3395, %v3540
        %v3638 = vadd.f32 %v3396, %v3543
        %v3639 = vadd.f32 %v3397, %v3545
        %v3640 = vadd.f32 %v3398, %v3548
        %v3641 = vadd.f32 %v3399, %v3550
        %v3642 = vadd.f32 %v3400, %v3553
        %v3643 = vadd.f32 %v3401, %v3555
        %v3644 = vadd.f32 %v3402, %v3558
        %v3645 = vadd.f32 %v3403, %v3560
        %v3646 = vadd.f32 %v3404, %v3563
        %v3647 = vadd.f32 %v3405, %v3565
        %v3648 = vadd.f32 %v3406, %v3568
        %v3649 = vadd.f32 %v3407, %v3570
        %v3650 = vadd.f32 %v3408, %v3573
        %v3651 = vadd.f32 %v3409, %v3575
        %v3652 = vadd.f32 %v3410, %v3578
        %v3653 = vadd.f32 %v3411, %v3580
        %v3654 = vadd.f32 %v3412, %v3583
        %v3655 = vadd.f32 %v3413, %v3585
        %v3656 = vadd.f32 %v3414, %v3588
        %v3657 = vadd.f32 %v3415, %v3590
        %v3658 = vadd.f32 %v3416, %v3593
        %v3659 = vadd.f32 %v3417, %v3595
        %v3660 = vld [vmem:[%s3351 + $0x2] sm:$0x1]
        %v3661 = vperm.slane %v3660, 0
        %v3662 = vmul.f32 %v2216, %v3661
        %v3663 = vmul.f32 %v2121, %v3661
        %v3664 = vmul.f32 %v2233, %v3661
        %v3665 = vmul.f32 %v2217, %v3661
        %v3666 = vmul.f32 %v2124, %v3661
        %v3667 = vmul.f32 %v2234, %v3661
        %v3668 = vmul.f32 %v2218, %v3661
        %v3669 = vmul.f32 %v2127, %v3661
        %v3670 = vmul.f32 %v2235, %v3661
        %v3671 = vmul.f32 %v2219, %v3661
        %v3672 = vmul.f32 %v2130, %v3661
        %v3673 = vmul.f32 %v2236, %v3661
        %v3674 = vmul.f32 %v2220, %v3661
        %v3675 = vmul.f32 %v2133, %v3661
        %v3676 = vmul.f32 %v2237, %v3661
        %v3677 = vmul.f32 %v2221, %v3661
        %v3678 = vmul.f32 %v2136, %v3661
        %v3679 = vmul.f32 %v2238, %v3661
        %v3680 = vmul.f32 %v2222, %v3661
        %v3681 = vmul.f32 %v2139, %v3661
        %v3682 = vmul.f32 %v2239, %v3661
        %v3683 = vmul.f32 %v2223, %v3661
        %v3684 = vmul.f32 %v2142, %v3661
        %v3685 = vmul.f32 %v2240, %v3661
        %v3686 = vmul.f32 %v2224, %v3661
        %v3687 = vmul.f32 %v2145, %v3661
        %v3688 = vmul.f32 %v2241, %v3661
        %v3689 = vmul.f32 %v2225, %v3661
        %v3690 = vmul.f32 %v2148, %v3661
        %v3691 = vmul.f32 %v2242, %v3661
        %v3692 = vmul.f32 %v2226, %v3661
        %v3693 = vmul.f32 %v2151, %v3661
        %v3694 = vmul.f32 %v2243, %v3661
        %v3695 = vmul.f32 %v2227, %v3661
        %v3696 = vmul.f32 %v2154, %v3661
        %v3697 = vmul.f32 %v2244, %v3661
        %v3698 = vmul.f32 %v2228, %v3661
        %v3699 = vmul.f32 %v2157, %v3661
        %v3700 = vmul.f32 %v2245, %v3661
        %v3701 = vmul.f32 %v2229, %v3661
        %v3702 = vmul.f32 %v2160, %v3661
        %v3703 = vmul.f32 %v2246, %v3661
        %v3704 = vmul.f32 %v2230, %v3661
        %v3705 = vmul.f32 %v2163, %v3661
        %v3706 = vmul.f32 %v2247, %v3661
        %v3707 = vmul.f32 %v2214, %v3661
        %v3708 = vmul.f32 %v2115, %v3661
        %v3709 = vmul.f32 %v2231, %v3661
        %v3758 = vrot.slane %v3662, 2
        %v3759 = vrot.slane %v3663, 2
        %v3760 = vsel %vm2655, %v3758, %v3759
        %v3761 = vrot.slane %v3664, 2
        %v3762 = vsel %vm2655, %v3759, %v3761
        %v3763 = vrot.slane %v3665, 2
        %v3764 = vrot.slane %v3666, 2
        %v3765 = vsel %vm2655, %v3763, %v3764
        %v3766 = vrot.slane %v3667, 2
        %v3767 = vsel %vm2655, %v3764, %v3766
        %v3768 = vrot.slane %v3668, 2
        %v3769 = vrot.slane %v3669, 2
        %v3770 = vsel %vm2655, %v3768, %v3769
        %v3771 = vrot.slane %v3670, 2
        %v3772 = vsel %vm2655, %v3769, %v3771
        %v3773 = vrot.slane %v3671, 2
        %v3774 = vrot.slane %v3672, 2
        %v3775 = vsel %vm2655, %v3773, %v3774
        %v3776 = vrot.slane %v3673, 2
        %v3777 = vsel %vm2655, %v3774, %v3776
        %v3778 = vrot.slane %v3674, 2
        %v3779 = vrot.slane %v3675, 2
        %v3780 = vsel %vm2655, %v3778, %v3779
        %v3781 = vrot.slane %v3676, 2
        %v3782 = vsel %vm2655, %v3779, %v3781
        %v3783 = vrot.slane %v3677, 2
        %v3784 = vrot.slane %v3678, 2
        %v3785 = vsel %vm2655, %v3783, %v3784
        %v3786 = vrot.slane %v3679, 2
        %v3787 = vsel %vm2655, %v3784, %v3786
        %v3788 = vrot.slane %v3680, 2
        %v3789 = vrot.slane %v3681, 2
        %v3790 = vsel %vm2655, %v3788, %v3789
        %v3791 = vrot.slane %v3682, 2
        %v3792 = vsel %vm2655, %v3789, %v3791
        %v3793 = vrot.slane %v3683, 2
        %v3794 = vrot.slane %v3684, 2
        %v3795 = vsel %vm2655, %v3793, %v3794
        %v3796 = vrot.slane %v3685, 2
        %v3797 = vsel %vm2655, %v3794, %v3796
        %v3798 = vrot.slane %v3686, 2
        %v3799 = vrot.slane %v3687, 2
        %v3800 = vsel %vm2655, %v3798, %v3799
        %v3801 = vrot.slane %v3688, 2
        %v3802 = vsel %vm2655, %v3799, %v3801
        %v3803 = vrot.slane %v3689, 2
        %v3804 = vrot.slane %v3690, 2
        %v3805 = vsel %vm2655, %v3803, %v3804
        %v3806 = vrot.slane %v3691, 2
        %v3807 = vsel %vm2655, %v3804, %v3806
        %v3808 = vrot.slane %v3692, 2
        %v3809 = vrot.slane %v3693, 2
        %v3810 = vsel %vm2655, %v3808, %v3809
        %v3811 = vrot.slane %v3694, 2
        %v3812 = vsel %vm2655, %v3809, %v3811
        %v3813 = vrot.slane %v3695, 2
        %v3814 = vrot.slane %v3696, 2
        %v3815 = vsel %vm2655, %v3813, %v3814
        %v3816 = vrot.slane %v3697, 2
        %v3817 = vsel %vm2655, %v3814, %v3816
        %v3818 = vrot.slane %v3698, 2
        %v3819 = vrot.slane %v3699, 2
        %v3820 = vsel %vm2655, %v3818, %v3819
        %v3821 = vrot.slane %v3700, 2
        %v3822 = vsel %vm2655, %v3819, %v3821
        %v3823 = vrot.slane %v3701, 2
        %v3824 = vrot.slane %v3702, 2
        %v3825 = vsel %vm2655, %v3823, %v3824
        %v3826 = vrot.slane %v3703, 2
        %v3827 = vsel %vm2655, %v3824, %v3826
        %v3828 = vrot.slane %v3704, 2
        %v3829 = vrot.slane %v3705, 2
        %v3830 = vsel %vm2655, %v3828, %v3829
        %v3831 = vrot.slane %v3706, 2
        %v3832 = vsel %vm2655, %v3829, %v3831
        %v3833 = vrot.slane %v3707, 2
        %v3834 = vrot.slane %v3708, 2
        %v3835 = vsel %vm2655, %v3833, %v3834
        %v3836 = vrot.slane %v3709, 2
        %v3837 = vsel %vm2655, %v3834, %v3836
        %v3870 = vadd.f32 %v3628, %v3760
        %v3871 = vadd.f32 %v3629, %v3762
        %v3872 = vadd.f32 %v3630, %v3765
        %v3873 = vadd.f32 %v3631, %v3767
        %v3874 = vadd.f32 %v3632, %v3770
        %v3875 = vadd.f32 %v3633, %v3772
        %v3876 = vadd.f32 %v3634, %v3775
        %v3877 = vadd.f32 %v3635, %v3777
        %v3878 = vadd.f32 %v3636, %v3780
        %v3879 = vadd.f32 %v3637, %v3782
        %v3880 = vadd.f32 %v3638, %v3785
        %v3881 = vadd.f32 %v3639, %v3787
        %v3882 = vadd.f32 %v3640, %v3790
        %v3883 = vadd.f32 %v3641, %v3792
        %v3884 = vadd.f32 %v3642, %v3795
        %v3885 = vadd.f32 %v3643, %v3797
        %v3886 = vadd.f32 %v3644, %v3800
        %v3887 = vadd.f32 %v3645, %v3802
        %v3888 = vadd.f32 %v3646, %v3805
        %v3889 = vadd.f32 %v3647, %v3807
        %v3890 = vadd.f32 %v3648, %v3810
        %v3891 = vadd.f32 %v3649, %v3812
        %v3892 = vadd.f32 %v3650, %v3815
        %v3893 = vadd.f32 %v3651, %v3817
        %v3894 = vadd.f32 %v3652, %v3820
        %v3895 = vadd.f32 %v3653, %v3822
        %v3896 = vadd.f32 %v3654, %v3825
        %v3897 = vadd.f32 %v3655, %v3827
        %v3898 = vadd.f32 %v3656, %v3830
        %v3899 = vadd.f32 %v3657, %v3832
        %v3900 = vadd.f32 %v3658, %v3835
        %v3901 = vadd.f32 %v3659, %v3837
        %v3902 = vld [vmem:[%s5] sm:$0x1]
        %v3904 = vperm.slane %v3902, 0
        %v3906 = vmul.f32 %v3870, %v3904
        %v3907 = vmul.f32 %v3871, %v3904
        %v3908 = vmul.f32 %v3872, %v3904
        %v3909 = vmul.f32 %v3873, %v3904
        %v3910 = vmul.f32 %v3874, %v3904
        %v3911 = vmul.f32 %v3875, %v3904
        %v3912 = vmul.f32 %v3876, %v3904
        %v3913 = vmul.f32 %v3877, %v3904
        %v3914 = vmul.f32 %v3878, %v3904
        %v3915 = vmul.f32 %v3879, %v3904
        %v3916 = vmul.f32 %v3880, %v3904
        %v3917 = vmul.f32 %v3881, %v3904
        %v3918 = vmul.f32 %v3882, %v3904
        %v3919 = vmul.f32 %v3883, %v3904
        %v3920 = vmul.f32 %v3884, %v3904
        %v3921 = vmul.f32 %v3885, %v3904
        %v3922 = vmul.f32 %v3886, %v3904
        %v3923 = vmul.f32 %v3887, %v3904
        %v3924 = vmul.f32 %v3888, %v3904
        %v3925 = vmul.f32 %v3889, %v3904
        %v3926 = vmul.f32 %v3890, %v3904
        %v3927 = vmul.f32 %v3891, %v3904
        %v3928 = vmul.f32 %v3892, %v3904
        %v3929 = vmul.f32 %v3893, %v3904
        %v3930 = vmul.f32 %v3894, %v3904
        %v3931 = vmul.f32 %v3895, %v3904
        %v3932 = vmul.f32 %v3896, %v3904
        %v3933 = vmul.f32 %v3897, %v3904
        %v3934 = vmul.f32 %v3898, %v3904
        %v3935 = vmul.f32 %v3899, %v3904
        %v3936 = vmul.f32 %v3900, %v3904
        %v3937 = vmul.f32 %v3901, %v3904
        %v3938 = vld [vmem:[%s6] sm:$0x1]
        %v3940 = vperm.slane %v3938, 0
        %v3942 = vadd.f32 %v3906, %v3940
        %v3943 = vadd.f32 %v3907, %v3940
        %v3944 = vadd.f32 %v3908, %v3940
        %v3945 = vadd.f32 %v3909, %v3940
        %v3946 = vadd.f32 %v3910, %v3940
        %v3947 = vadd.f32 %v3911, %v3940
        %v3948 = vadd.f32 %v3912, %v3940
        %v3949 = vadd.f32 %v3913, %v3940
        %v3950 = vadd.f32 %v3914, %v3940
        %v3951 = vadd.f32 %v3915, %v3940
        %v3952 = vadd.f32 %v3916, %v3940
        %v3953 = vadd.f32 %v3917, %v3940
        %v3954 = vadd.f32 %v3918, %v3940
        %v3955 = vadd.f32 %v3919, %v3940
        %v3956 = vadd.f32 %v3920, %v3940
        %v3957 = vadd.f32 %v3921, %v3940
        %v3958 = vadd.f32 %v3922, %v3940
        %v3959 = vadd.f32 %v3923, %v3940
        %v3960 = vadd.f32 %v3924, %v3940
        %v3961 = vadd.f32 %v3925, %v3940
        %v3962 = vadd.f32 %v3926, %v3940
        %v3963 = vadd.f32 %v3927, %v3940
        %v3964 = vadd.f32 %v3928, %v3940
        %v3965 = vadd.f32 %v3929, %v3940
        %v3966 = vadd.f32 %v3930, %v3940
        %v3967 = vadd.f32 %v3931, %v3940
        %v3968 = vadd.f32 %v3932, %v3940
        %v3969 = vadd.f32 %v3933, %v3940
        %v3970 = vadd.f32 %v3934, %v3940
        %v3971 = vadd.f32 %v3935, %v3940
        %v3972 = vadd.f32 %v3936, %v3940
        %v3973 = vadd.f32 %v3937, %v3940
        %v3974 = vmul.f32 %v3942, 0.5
        %v3975 = vmul.f32 %v3943, 0.5
        %v3976 = vmul.f32 %v3944, 0.5
        %v3977 = vmul.f32 %v3945, 0.5
        %v3978 = vmul.f32 %v3946, 0.5
        %v3979 = vmul.f32 %v3947, 0.5
        %v3980 = vmul.f32 %v3948, 0.5
        %v3981 = vmul.f32 %v3949, 0.5
        %v3982 = vmul.f32 %v3950, 0.5
        %v3983 = vmul.f32 %v3951, 0.5
        %v3984 = vmul.f32 %v3952, 0.5
        %v3985 = vmul.f32 %v3953, 0.5
        %v3986 = vmul.f32 %v3954, 0.5
        %v3987 = vmul.f32 %v3955, 0.5
        %v3988 = vmul.f32 %v3956, 0.5
        %v3989 = vmul.f32 %v3957, 0.5
        %v3990 = vmul.f32 %v3958, 0.5
        %v3991 = vmul.f32 %v3959, 0.5
        %v3992 = vmul.f32 %v3960, 0.5
        %v3993 = vmul.f32 %v3961, 0.5
        %v3994 = vmul.f32 %v3962, 0.5
        %v3995 = vmul.f32 %v3963, 0.5
        %v3996 = vmul.f32 %v3964, 0.5
        %v3997 = vmul.f32 %v3965, 0.5
        %v3998 = vmul.f32 %v3966, 0.5
        %v3999 = vmul.f32 %v3967, 0.5
        %v4000 = vmul.f32 %v3968, 0.5
        %v4001 = vmul.f32 %v3969, 0.5
        %v4002 = vmul.f32 %v3970, 0.5
        %v4003 = vmul.f32 %v3971, 0.5
        %v4004 = vmul.f32 %v3972, 0.5
        %v4005 = vmul.f32 %v3973, 0.5
        %v4006 = vmul.f32 %v3942, 0.70710677
        %v4007 = vmul.f32 %v3943, 0.70710677
        %v4008 = vmul.f32 %v3944, 0.70710677
        %v4009 = vmul.f32 %v3945, 0.70710677
        %v4010 = vmul.f32 %v3946, 0.70710677
        %v4011 = vmul.f32 %v3947, 0.70710677
        %v4012 = vmul.f32 %v3948, 0.70710677
        %v4013 = vmul.f32 %v3949, 0.70710677
        %v4014 = vmul.f32 %v3950, 0.70710677
        %v4015 = vmul.f32 %v3951, 0.70710677
        %v4016 = vmul.f32 %v3952, 0.70710677
        %v4017 = vmul.f32 %v3953, 0.70710677
        %v4018 = vmul.f32 %v3954, 0.70710677
        %v4019 = vmul.f32 %v3955, 0.70710677
        %v4020 = vmul.f32 %v3956, 0.70710677
        %v4021 = vmul.f32 %v3957, 0.70710677
        %v4022 = vmul.f32 %v3958, 0.70710677
        %v4023 = vmul.f32 %v3959, 0.70710677
        %v4024 = vmul.f32 %v3960, 0.70710677
        %v4025 = vmul.f32 %v3961, 0.70710677
        %v4026 = vmul.f32 %v3962, 0.70710677
        %v4027 = vmul.f32 %v3963, 0.70710677
        %v4028 = vmul.f32 %v3964, 0.70710677
        %v4029 = vmul.f32 %v3965, 0.70710677
        %v4030 = vmul.f32 %v3966, 0.70710677
        %v4031 = vmul.f32 %v3967, 0.70710677
        %v4032 = vmul.f32 %v3968, 0.70710677
        %v4033 = vmul.f32 %v3969, 0.70710677
        %v4034 = vmul.f32 %v3970, 0.70710677
        %v4035 = vmul.f32 %v3971, 0.70710677
        %v4036 = vmul.f32 %v3972, 0.70710677
        %v4037 = vmul.f32 %v3973, 0.70710677
        %v4038 = vmul.f32 %v4006, %v4006
        %v4039 = vmin.f32 16.0, %v4038
        %v4040 = vmul.f32 %v4039, 2.1237322e-06
        %v4041 = vadd.f32 %v4040, 0.00028619796
        %v4042 = vmul.f32 %v4039, %v4041
        %v4043 = vadd.f32 %v4042, 0.0036580483
        %v4044 = vmul.f32 %v4039, %v4043
        %v4045 = vadd.f32 %v4044, 0.05243302
        %v4046 = vmul.f32 %v4039, %v4045
        %v4047 = vadd.f32 %v4046, 0.18741608
        %v4048 = vmul.f32 %v4039, %v4047
        %v4049 = vadd.f32 %v4048, 1.1283791
        %v4050 = vmul.f32 %v4006, %v4049
        %v4051 = vmul.f32 %v4039, 3.8918573e-05
        %v4052 = vadd.f32 %v4051, 0.001143296
        %v4053 = vmul.f32 %v4039, %v4052
        %v4054 = vadd.f32 %v4053, 0.014752088
        %v4055 = vmul.f32 %v4039, %v4054
        %v4056 = vadd.f32 %v4055, 0.112945676
        %v4057 = vmul.f32 %v4039, %v4056
        %v4058 = vadd.f32 %v4057, 0.4994258
        %v4059 = vmul.f32 %v4039, %v4058
        %v4060 = vadd.f32 %v4059, 1.0
        %v4061 = vrcp.pop %v4060
        %v4062 = vmul.f32 %v4060, %v4061
        %v4063 = vsub.f32 1.0, %v4062
        %v4064 = vmul.f32 %v4061, %v4063
        %v4065 = vadd.f32 %v4061, %v4064
        %vm4066 = vweird.f32 %v4060
        %vm4067 = vweird.f32 %v4061
        %vm4068 = vmor %vm4066, %vm4067
        %v4069 = vsel %vm4068, %v4061, %v4065
        %v4070 = vand.u32 2147483647, %v4060
        %vm4071 = vcmp.eq.f32.partialorder %v4070, 8.507059e+37
        %v4072 = vand.u32 %v4060, 2147483648
        %v4073 = vor.u32 1.1754944e-38, %v4072
        %v4074 = vsel %vm4071, %v4073, %v4069
        %v4075 = vmul.f32 %v4050, %v4074
        %v4076 = vmin.f32 %v4075, 1.0
        %v4077 = vmax.f32 %v4076, -1.0
        %v4078 = vmul.f32 %v4007, %v4007
        %v4079 = vmin.f32 16.0, %v4078
        %v4080 = vmul.f32 %v4079, 2.1237322e-06
        %v4081 = vadd.f32 %v4080, 0.00028619796
        %v4082 = vmul.f32 %v4079, %v4081
        %v4083 = vadd.f32 %v4082, 0.0036580483
        %v4084 = vmul.f32 %v4079, %v4083
        %v4085 = vadd.f32 %v4084, 0.05243302
        %v4086 = vmul.f32 %v4079, %v4085
        %v4087 = vadd.f32 %v4086, 0.18741608
        %v4088 = vmul.f32 %v4079, %v4087
        %v4089 = vadd.f32 %v4088, 1.1283791
        %v4090 = vmul.f32 %v4007, %v4089
        %v4091 = vmul.f32 %v4079, 3.8918573e-05
        %v4092 = vadd.f32 %v4091, 0.001143296
        %v4093 = vmul.f32 %v4079, %v4092
        %v4094 = vadd.f32 %v4093, 0.014752088
        %v4095 = vmul.f32 %v4079, %v4094
        %v4096 = vadd.f32 %v4095, 0.112945676
        %v4097 = vmul.f32 %v4079, %v4096
        %v4098 = vadd.f32 %v4097, 0.4994258
        %v4099 = vmul.f32 %v4079, %v4098
        %v4100 = vadd.f32 %v4099, 1.0
        %v4101 = vrcp.pop %v4100
        %v4102 = vmul.f32 %v4100, %v4101
        %v4103 = vsub.f32 1.0, %v4102
        %v4104 = vmul.f32 %v4101, %v4103
        %v4105 = vadd.f32 %v4101, %v4104
        %vm4106 = vweird.f32 %v4100
        %vm4107 = vweird.f32 %v4101
        %vm4108 = vmor %vm4106, %vm4107
        %v4109 = vsel %vm4108, %v4101, %v4105
        %v4110 = vand.u32 2147483647, %v4100
        %vm4111 = vcmp.eq.f32.partialorder %v4110, 8.507059e+37
        %v4112 = vand.u32 %v4100, 2147483648
        %v4113 = vor.u32 1.1754944e-38, %v4112
        %v4114 = vsel %vm4111, %v4113, %v4109
        %v4115 = vmul.f32 %v4090, %v4114
        %v4116 = vmin.f32 %v4115, 1.0
        %v4117 = vmax.f32 %v4116, -1.0
        %v4118 = vmul.f32 %v4008, %v4008
        %v4119 = vmin.f32 16.0, %v4118
        %v4120 = vmul.f32 %v4119, 2.1237322e-06
        %v4121 = vadd.f32 %v4120, 0.00028619796
        %v4122 = vmul.f32 %v4119, %v4121
        %v4123 = vadd.f32 %v4122, 0.0036580483
        %v4124 = vmul.f32 %v4119, %v4123
        %v4125 = vadd.f32 %v4124, 0.05243302
        %v4126 = vmul.f32 %v4119, %v4125
        %v4127 = vadd.f32 %v4126, 0.18741608
        %v4128 = vmul.f32 %v4119, %v4127
        %v4129 = vadd.f32 %v4128, 1.1283791
        %v4130 = vmul.f32 %v4008, %v4129
        %v4131 = vmul.f32 %v4119, 3.8918573e-05
        %v4132 = vadd.f32 %v4131, 0.001143296
        %v4133 = vmul.f32 %v4119, %v4132
        %v4134 = vadd.f32 %v4133, 0.014752088
        %v4135 = vmul.f32 %v4119, %v4134
        %v4136 = vadd.f32 %v4135, 0.112945676
        %v4137 = vmul.f32 %v4119, %v4136
        %v4138 = vadd.f32 %v4137, 0.4994258
        %v4139 = vmul.f32 %v4119, %v4138
        %v4140 = vadd.f32 %v4139, 1.0
        %v4141 = vrcp.pop %v4140
        %v4142 = vmul.f32 %v4140, %v4141
        %v4143 = vsub.f32 1.0, %v4142
        %v4144 = vmul.f32 %v4141, %v4143
        %v4145 = vadd.f32 %v4141, %v4144
        %vm4146 = vweird.f32 %v4140
        %vm4147 = vweird.f32 %v4141
        %vm4148 = vmor %vm4146, %vm4147
        %v4149 = vsel %vm4148, %v4141, %v4145
        %v4150 = vand.u32 2147483647, %v4140
        %vm4151 = vcmp.eq.f32.partialorder %v4150, 8.507059e+37
        %v4152 = vand.u32 %v4140, 2147483648
        %v4153 = vor.u32 1.1754944e-38, %v4152
        %v4154 = vsel %vm4151, %v4153, %v4149
        %v4155 = vmul.f32 %v4130, %v4154
        %v4156 = vmin.f32 %v4155, 1.0
        %v4157 = vmax.f32 %v4156, -1.0
        %v4158 = vmul.f32 %v4009, %v4009
        %v4159 = vmin.f32 16.0, %v4158
        %v4160 = vmul.f32 %v4159, 2.1237322e-06
        %v4161 = vadd.f32 %v4160, 0.00028619796
        %v4162 = vmul.f32 %v4159, %v4161
        %v4163 = vadd.f32 %v4162, 0.0036580483
        %v4164 = vmul.f32 %v4159, %v4163
        %v4165 = vadd.f32 %v4164, 0.05243302
        %v4166 = vmul.f32 %v4159, %v4165
        %v4167 = vadd.f32 %v4166, 0.18741608
        %v4168 = vmul.f32 %v4159, %v4167
        %v4169 = vadd.f32 %v4168, 1.1283791
        %v4170 = vmul.f32 %v4009, %v4169
        %v4171 = vmul.f32 %v4159, 3.8918573e-05
        %v4172 = vadd.f32 %v4171, 0.001143296
        %v4173 = vmul.f32 %v4159, %v4172
        %v4174 = vadd.f32 %v4173, 0.014752088
        %v4175 = vmul.f32 %v4159, %v4174
        %v4176 = vadd.f32 %v4175, 0.112945676
        %v4177 = vmul.f32 %v4159, %v4176
        %v4178 = vadd.f32 %v4177, 0.4994258
        %v4179 = vmul.f32 %v4159, %v4178
        %v4180 = vadd.f32 %v4179, 1.0
        %v4181 = vrcp.pop %v4180
        %v4182 = vmul.f32 %v4180, %v4181
        %v4183 = vsub.f32 1.0, %v4182
        %v4184 = vmul.f32 %v4181, %v4183
        %v4185 = vadd.f32 %v4181, %v4184
        %vm4186 = vweird.f32 %v4180
        %vm4187 = vweird.f32 %v4181
        %vm4188 = vmor %vm4186, %vm4187
        %v4189 = vsel %vm4188, %v4181, %v4185
        %v4190 = vand.u32 2147483647, %v4180
        %vm4191 = vcmp.eq.f32.partialorder %v4190, 8.507059e+37
        %v4192 = vand.u32 %v4180, 2147483648
        %v4193 = vor.u32 1.1754944e-38, %v4192
        %v4194 = vsel %vm4191, %v4193, %v4189
        %v4195 = vmul.f32 %v4170, %v4194
        %v4196 = vmin.f32 %v4195, 1.0
        %v4197 = vmax.f32 %v4196, -1.0
        %v4198 = vmul.f32 %v4010, %v4010
        %v4199 = vmin.f32 16.0, %v4198
        %v4200 = vmul.f32 %v4199, 2.1237322e-06
        %v4201 = vadd.f32 %v4200, 0.00028619796
        %v4202 = vmul.f32 %v4199, %v4201
        %v4203 = vadd.f32 %v4202, 0.0036580483
        %v4204 = vmul.f32 %v4199, %v4203
        %v4205 = vadd.f32 %v4204, 0.05243302
        %v4206 = vmul.f32 %v4199, %v4205
        %v4207 = vadd.f32 %v4206, 0.18741608
        %v4208 = vmul.f32 %v4199, %v4207
        %v4209 = vadd.f32 %v4208, 1.1283791
        %v4210 = vmul.f32 %v4010, %v4209
        %v4211 = vmul.f32 %v4199, 3.8918573e-05
        %v4212 = vadd.f32 %v4211, 0.001143296
        %v4213 = vmul.f32 %v4199, %v4212
        %v4214 = vadd.f32 %v4213, 0.014752088
        %v4215 = vmul.f32 %v4199, %v4214
        %v4216 = vadd.f32 %v4215, 0.112945676
        %v4217 = vmul.f32 %v4199, %v4216
        %v4218 = vadd.f32 %v4217, 0.4994258
        %v4219 = vmul.f32 %v4199, %v4218
        %v4220 = vadd.f32 %v4219, 1.0
        %v4221 = vrcp.pop %v4220
        %v4222 = vmul.f32 %v4220, %v4221
        %v4223 = vsub.f32 1.0, %v4222
        %v4224 = vmul.f32 %v4221, %v4223
        %v4225 = vadd.f32 %v4221, %v4224
        %vm4226 = vweird.f32 %v4220
        %vm4227 = vweird.f32 %v4221
        %vm4228 = vmor %vm4226, %vm4227
        %v4229 = vsel %vm4228, %v4221, %v4225
        %v4230 = vand.u32 2147483647, %v4220
        %vm4231 = vcmp.eq.f32.partialorder %v4230, 8.507059e+37
        %v4232 = vand.u32 %v4220, 2147483648
        %v4233 = vor.u32 1.1754944e-38, %v4232
        %v4234 = vsel %vm4231, %v4233, %v4229
        %v4235 = vmul.f32 %v4210, %v4234
        %v4236 = vmin.f32 %v4235, 1.0
        %v4237 = vmax.f32 %v4236, -1.0
        %v4238 = vmul.f32 %v4011, %v4011
        %v4239 = vmin.f32 16.0, %v4238
        %v4240 = vmul.f32 %v4239, 2.1237322e-06
        %v4241 = vadd.f32 %v4240, 0.00028619796
        %v4242 = vmul.f32 %v4239, %v4241
        %v4243 = vadd.f32 %v4242, 0.0036580483
        %v4244 = vmul.f32 %v4239, %v4243
        %v4245 = vadd.f32 %v4244, 0.05243302
        %v4246 = vmul.f32 %v4239, %v4245
        %v4247 = vadd.f32 %v4246, 0.18741608
        %v4248 = vmul.f32 %v4239, %v4247
        %v4249 = vadd.f32 %v4248, 1.1283791
        %v4250 = vmul.f32 %v4011, %v4249
        %v4251 = vmul.f32 %v4239, 3.8918573e-05
        %v4252 = vadd.f32 %v4251, 0.001143296
        %v4253 = vmul.f32 %v4239, %v4252
        %v4254 = vadd.f32 %v4253, 0.014752088
        %v4255 = vmul.f32 %v4239, %v4254
        %v4256 = vadd.f32 %v4255, 0.112945676
        %v4257 = vmul.f32 %v4239, %v4256
        %v4258 = vadd.f32 %v4257, 0.4994258
        %v4259 = vmul.f32 %v4239, %v4258
        %v4260 = vadd.f32 %v4259, 1.0
        %v4261 = vrcp.pop %v4260
        %v4262 = vmul.f32 %v4260, %v4261
        %v4263 = vsub.f32 1.0, %v4262
        %v4264 = vmul.f32 %v4261, %v4263
        %v4265 = vadd.f32 %v4261, %v4264
        %vm4266 = vweird.f32 %v4260
        %vm4267 = vweird.f32 %v4261
        %vm4268 = vmor %vm4266, %vm4267
        %v4269 = vsel %vm4268, %v4261, %v4265
        %v4270 = vand.u32 2147483647, %v4260
        %vm4271 = vcmp.eq.f32.partialorder %v4270, 8.507059e+37
        %v4272 = vand.u32 %v4260, 2147483648
        %v4273 = vor.u32 1.1754944e-38, %v4272
        %v4274 = vsel %vm4271, %v4273, %v4269
        %v4275 = vmul.f32 %v4250, %v4274
        %v4276 = vmin.f32 %v4275, 1.0
        %v4277 = vmax.f32 %v4276, -1.0
        %v4278 = vmul.f32 %v4012, %v4012
        %v4279 = vmin.f32 16.0, %v4278
        %v4280 = vmul.f32 %v4279, 2.1237322e-06
        %v4281 = vadd.f32 %v4280, 0.00028619796
        %v4282 = vmul.f32 %v4279, %v4281
        %v4283 = vadd.f32 %v4282, 0.0036580483
        %v4284 = vmul.f32 %v4279, %v4283
        %v4285 = vadd.f32 %v4284, 0.05243302
        %v4286 = vmul.f32 %v4279, %v4285
        %v4287 = vadd.f32 %v4286, 0.18741608
        %v4288 = vmul.f32 %v4279, %v4287
        %v4289 = vadd.f32 %v4288, 1.1283791
        %v4290 = vmul.f32 %v4012, %v4289
        %v4291 = vmul.f32 %v4279, 3.8918573e-05
        %v4292 = vadd.f32 %v4291, 0.001143296
        %v4293 = vmul.f32 %v4279, %v4292
        %v4294 = vadd.f32 %v4293, 0.014752088
        %v4295 = vmul.f32 %v4279, %v4294
        %v4296 = vadd.f32 %v4295, 0.112945676
        %v4297 = vmul.f32 %v4279, %v4296
        %v4298 = vadd.f32 %v4297, 0.4994258
        %v4299 = vmul.f32 %v4279, %v4298
        %v4300 = vadd.f32 %v4299, 1.0
        %v4301 = vrcp.pop %v4300
        %v4302 = vmul.f32 %v4300, %v4301
        %v4303 = vsub.f32 1.0, %v4302
        %v4304 = vmul.f32 %v4301, %v4303
        %v4305 = vadd.f32 %v4301, %v4304
        %vm4306 = vweird.f32 %v4300
        %vm4307 = vweird.f32 %v4301
        %vm4308 = vmor %vm4306, %vm4307
        %v4309 = vsel %vm4308, %v4301, %v4305
        %v4310 = vand.u32 2147483647, %v4300
        %vm4311 = vcmp.eq.f32.partialorder %v4310, 8.507059e+37
        %v4312 = vand.u32 %v4300, 2147483648
        %v4313 = vor.u32 1.1754944e-38, %v4312
        %v4314 = vsel %vm4311, %v4313, %v4309
        %v4315 = vmul.f32 %v4290, %v4314
        %v4316 = vmin.f32 %v4315, 1.0
        %v4317 = vmax.f32 %v4316, -1.0
        %v4318 = vmul.f32 %v4013, %v4013
        %v4319 = vmin.f32 16.0, %v4318
        %v4320 = vmul.f32 %v4319, 2.1237322e-06
        %v4321 = vadd.f32 %v4320, 0.00028619796
        %v4322 = vmul.f32 %v4319, %v4321
        %v4323 = vadd.f32 %v4322, 0.0036580483
        %v4324 = vmul.f32 %v4319, %v4323
        %v4325 = vadd.f32 %v4324, 0.05243302
        %v4326 = vmul.f32 %v4319, %v4325
        %v4327 = vadd.f32 %v4326, 0.18741608
        %v4328 = vmul.f32 %v4319, %v4327
        %v4329 = vadd.f32 %v4328, 1.1283791
        %v4330 = vmul.f32 %v4013, %v4329
        %v4331 = vmul.f32 %v4319, 3.8918573e-05
        %v4332 = vadd.f32 %v4331, 0.001143296
        %v4333 = vmul.f32 %v4319, %v4332
        %v4334 = vadd.f32 %v4333, 0.014752088
        %v4335 = vmul.f32 %v4319, %v4334
        %v4336 = vadd.f32 %v4335, 0.112945676
        %v4337 = vmul.f32 %v4319, %v4336
        %v4338 = vadd.f32 %v4337, 0.4994258
        %v4339 = vmul.f32 %v4319, %v4338
        %v4340 = vadd.f32 %v4339, 1.0
        %v4341 = vrcp.pop %v4340
        %v4342 = vmul.f32 %v4340, %v4341
        %v4343 = vsub.f32 1.0, %v4342
        %v4344 = vmul.f32 %v4341, %v4343
        %v4345 = vadd.f32 %v4341, %v4344
        %vm4346 = vweird.f32 %v4340
        %vm4347 = vweird.f32 %v4341
        %vm4348 = vmor %vm4346, %vm4347
        %v4349 = vsel %vm4348, %v4341, %v4345
        %v4350 = vand.u32 2147483647, %v4340
        %vm4351 = vcmp.eq.f32.partialorder %v4350, 8.507059e+37
        %v4352 = vand.u32 %v4340, 2147483648
        %v4353 = vor.u32 1.1754944e-38, %v4352
        %v4354 = vsel %vm4351, %v4353, %v4349
        %v4355 = vmul.f32 %v4330, %v4354
        %v4356 = vmin.f32 %v4355, 1.0
        %v4357 = vmax.f32 %v4356, -1.0
        %v4358 = vmul.f32 %v4014, %v4014
        %v4359 = vmin.f32 16.0, %v4358
        %v4360 = vmul.f32 %v4359, 2.1237322e-06
        %v4361 = vadd.f32 %v4360, 0.00028619796
        %v4362 = vmul.f32 %v4359, %v4361
        %v4363 = vadd.f32 %v4362, 0.0036580483
        %v4364 = vmul.f32 %v4359, %v4363
        %v4365 = vadd.f32 %v4364, 0.05243302
        %v4366 = vmul.f32 %v4359, %v4365
        %v4367 = vadd.f32 %v4366, 0.18741608
        %v4368 = vmul.f32 %v4359, %v4367
        %v4369 = vadd.f32 %v4368, 1.1283791
        %v4370 = vmul.f32 %v4014, %v4369
        %v4371 = vmul.f32 %v4359, 3.8918573e-05
        %v4372 = vadd.f32 %v4371, 0.001143296
        %v4373 = vmul.f32 %v4359, %v4372
        %v4374 = vadd.f32 %v4373, 0.014752088
        %v4375 = vmul.f32 %v4359, %v4374
        %v4376 = vadd.f32 %v4375, 0.112945676
        %v4377 = vmul.f32 %v4359, %v4376
        %v4378 = vadd.f32 %v4377, 0.4994258
        %v4379 = vmul.f32 %v4359, %v4378
        %v4380 = vadd.f32 %v4379, 1.0
        %v4381 = vrcp.pop %v4380
        %v4382 = vmul.f32 %v4380, %v4381
        %v4383 = vsub.f32 1.0, %v4382
        %v4384 = vmul.f32 %v4381, %v4383
        %v4385 = vadd.f32 %v4381, %v4384
        %vm4386 = vweird.f32 %v4380
        %vm4387 = vweird.f32 %v4381
        %vm4388 = vmor %vm4386, %vm4387
        %v4389 = vsel %vm4388, %v4381, %v4385
        %v4390 = vand.u32 2147483647, %v4380
        %vm4391 = vcmp.eq.f32.partialorder %v4390, 8.507059e+37
        %v4392 = vand.u32 %v4380, 2147483648
        %v4393 = vor.u32 1.1754944e-38, %v4392
        %v4394 = vsel %vm4391, %v4393, %v4389
        %v4395 = vmul.f32 %v4370, %v4394
        %v4396 = vmin.f32 %v4395, 1.0
        %v4397 = vmax.f32 %v4396, -1.0
        %v4398 = vmul.f32 %v4015, %v4015
        %v4399 = vmin.f32 16.0, %v4398
        %v4400 = vmul.f32 %v4399, 2.1237322e-06
        %v4401 = vadd.f32 %v4400, 0.00028619796
        %v4402 = vmul.f32 %v4399, %v4401
        %v4403 = vadd.f32 %v4402, 0.0036580483
        %v4404 = vmul.f32 %v4399, %v4403
        %v4405 = vadd.f32 %v4404, 0.05243302
        %v4406 = vmul.f32 %v4399, %v4405
        %v4407 = vadd.f32 %v4406, 0.18741608
        %v4408 = vmul.f32 %v4399, %v4407
        %v4409 = vadd.f32 %v4408, 1.1283791
        %v4410 = vmul.f32 %v4015, %v4409
        %v4411 = vmul.f32 %v4399, 3.8918573e-05
        %v4412 = vadd.f32 %v4411, 0.001143296
        %v4413 = vmul.f32 %v4399, %v4412
        %v4414 = vadd.f32 %v4413, 0.014752088
        %v4415 = vmul.f32 %v4399, %v4414
        %v4416 = vadd.f32 %v4415, 0.112945676
        %v4417 = vmul.f32 %v4399, %v4416
        %v4418 = vadd.f32 %v4417, 0.4994258
        %v4419 = vmul.f32 %v4399, %v4418
        %v4420 = vadd.f32 %v4419, 1.0
        %v4421 = vrcp.pop %v4420
        %v4422 = vmul.f32 %v4420, %v4421
        %v4423 = vsub.f32 1.0, %v4422
        %v4424 = vmul.f32 %v4421, %v4423
        %v4425 = vadd.f32 %v4421, %v4424
        %vm4426 = vweird.f32 %v4420
        %vm4427 = vweird.f32 %v4421
        %vm4428 = vmor %vm4426, %vm4427
        %v4429 = vsel %vm4428, %v4421, %v4425
        %v4430 = vand.u32 2147483647, %v4420
        %vm4431 = vcmp.eq.f32.partialorder %v4430, 8.507059e+37
        %v4432 = vand.u32 %v4420, 2147483648
        %v4433 = vor.u32 1.1754944e-38, %v4432
        %v4434 = vsel %vm4431, %v4433, %v4429
        %v4435 = vmul.f32 %v4410, %v4434
        %v4436 = vmin.f32 %v4435, 1.0
        %v4437 = vmax.f32 %v4436, -1.0
        %v4438 = vmul.f32 %v4016, %v4016
        %v4439 = vmin.f32 16.0, %v4438
        %v4440 = vmul.f32 %v4439, 2.1237322e-06
        %v4441 = vadd.f32 %v4440, 0.00028619796
        %v4442 = vmul.f32 %v4439, %v4441
        %v4443 = vadd.f32 %v4442, 0.0036580483
        %v4444 = vmul.f32 %v4439, %v4443
        %v4445 = vadd.f32 %v4444, 0.05243302
        %v4446 = vmul.f32 %v4439, %v4445
        %v4447 = vadd.f32 %v4446, 0.18741608
        %v4448 = vmul.f32 %v4439, %v4447
        %v4449 = vadd.f32 %v4448, 1.1283791
        %v4450 = vmul.f32 %v4016, %v4449
        %v4451 = vmul.f32 %v4439, 3.8918573e-05
        %v4452 = vadd.f32 %v4451, 0.001143296
        %v4453 = vmul.f32 %v4439, %v4452
        %v4454 = vadd.f32 %v4453, 0.014752088
        %v4455 = vmul.f32 %v4439, %v4454
        %v4456 = vadd.f32 %v4455, 0.112945676
        %v4457 = vmul.f32 %v4439, %v4456
        %v4458 = vadd.f32 %v4457, 0.4994258
        %v4459 = vmul.f32 %v4439, %v4458
        %v4460 = vadd.f32 %v4459, 1.0
        %v4461 = vrcp.pop %v4460
        %v4462 = vmul.f32 %v4460, %v4461
        %v4463 = vsub.f32 1.0, %v4462
        %v4464 = vmul.f32 %v4461, %v4463
        %v4465 = vadd.f32 %v4461, %v4464
        %vm4466 = vweird.f32 %v4460
        %vm4467 = vweird.f32 %v4461
        %vm4468 = vmor %vm4466, %vm4467
        %v4469 = vsel %vm4468, %v4461, %v4465
        %v4470 = vand.u32 2147483647, %v4460
        %vm4471 = vcmp.eq.f32.partialorder %v4470, 8.507059e+37
        %v4472 = vand.u32 %v4460, 2147483648
        %v4473 = vor.u32 1.1754944e-38, %v4472
        %v4474 = vsel %vm4471, %v4473, %v4469
        %v4475 = vmul.f32 %v4450, %v4474
        %v4476 = vmin.f32 %v4475, 1.0
        %v4477 = vmax.f32 %v4476, -1.0
        %v4478 = vmul.f32 %v4017, %v4017
        %v4479 = vmin.f32 16.0, %v4478
        %v4480 = vmul.f32 %v4479, 2.1237322e-06
        %v4481 = vadd.f32 %v4480, 0.00028619796
        %v4482 = vmul.f32 %v4479, %v4481
        %v4483 = vadd.f32 %v4482, 0.0036580483
        %v4484 = vmul.f32 %v4479, %v4483
        %v4485 = vadd.f32 %v4484, 0.05243302
        %v4486 = vmul.f32 %v4479, %v4485
        %v4487 = vadd.f32 %v4486, 0.18741608
        %v4488 = vmul.f32 %v4479, %v4487
        %v4489 = vadd.f32 %v4488, 1.1283791
        %v4490 = vmul.f32 %v4017, %v4489
        %v4491 = vmul.f32 %v4479, 3.8918573e-05
        %v4492 = vadd.f32 %v4491, 0.001143296
        %v4493 = vmul.f32 %v4479, %v4492
        %v4494 = vadd.f32 %v4493, 0.014752088
        %v4495 = vmul.f32 %v4479, %v4494
        %v4496 = vadd.f32 %v4495, 0.112945676
        %v4497 = vmul.f32 %v4479, %v4496
        %v4498 = vadd.f32 %v4497, 0.4994258
        %v4499 = vmul.f32 %v4479, %v4498
        %v4500 = vadd.f32 %v4499, 1.0
        %v4501 = vrcp.pop %v4500
        %v4502 = vmul.f32 %v4500, %v4501
        %v4503 = vsub.f32 1.0, %v4502
        %v4504 = vmul.f32 %v4501, %v4503
        %v4505 = vadd.f32 %v4501, %v4504
        %vm4506 = vweird.f32 %v4500
        %vm4507 = vweird.f32 %v4501
        %vm4508 = vmor %vm4506, %vm4507
        %v4509 = vsel %vm4508, %v4501, %v4505
        %v4510 = vand.u32 2147483647, %v4500
        %vm4511 = vcmp.eq.f32.partialorder %v4510, 8.507059e+37
        %v4512 = vand.u32 %v4500, 2147483648
        %v4513 = vor.u32 1.1754944e-38, %v4512
        %v4514 = vsel %vm4511, %v4513, %v4509
        %v4515 = vmul.f32 %v4490, %v4514
        %v4516 = vmin.f32 %v4515, 1.0
        %v4517 = vmax.f32 %v4516, -1.0
        %v4518 = vmul.f32 %v4018, %v4018
        %v4519 = vmin.f32 16.0, %v4518
        %v4520 = vmul.f32 %v4519, 2.1237322e-06
        %v4521 = vadd.f32 %v4520, 0.00028619796
        %v4522 = vmul.f32 %v4519, %v4521
        %v4523 = vadd.f32 %v4522, 0.0036580483
        %v4524 = vmul.f32 %v4519, %v4523
        %v4525 = vadd.f32 %v4524, 0.05243302
        %v4526 = vmul.f32 %v4519, %v4525
        %v4527 = vadd.f32 %v4526, 0.18741608
        %v4528 = vmul.f32 %v4519, %v4527
        %v4529 = vadd.f32 %v4528, 1.1283791
        %v4530 = vmul.f32 %v4018, %v4529
        %v4531 = vmul.f32 %v4519, 3.8918573e-05
        %v4532 = vadd.f32 %v4531, 0.001143296
        %v4533 = vmul.f32 %v4519, %v4532
        %v4534 = vadd.f32 %v4533, 0.014752088
        %v4535 = vmul.f32 %v4519, %v4534
        %v4536 = vadd.f32 %v4535, 0.112945676
        %v4537 = vmul.f32 %v4519, %v4536
        %v4538 = vadd.f32 %v4537, 0.4994258
        %v4539 = vmul.f32 %v4519, %v4538
        %v4540 = vadd.f32 %v4539, 1.0
        %v4541 = vrcp.pop %v4540
        %v4542 = vmul.f32 %v4540, %v4541
        %v4543 = vsub.f32 1.0, %v4542
        %v4544 = vmul.f32 %v4541, %v4543
        %v4545 = vadd.f32 %v4541, %v4544
        %vm4546 = vweird.f32 %v4540
        %vm4547 = vweird.f32 %v4541
        %vm4548 = vmor %vm4546, %vm4547
        %v4549 = vsel %vm4548, %v4541, %v4545
        %v4550 = vand.u32 2147483647, %v4540
        %vm4551 = vcmp.eq.f32.partialorder %v4550, 8.507059e+37
        %v4552 = vand.u32 %v4540, 2147483648
        %v4553 = vor.u32 1.1754944e-38, %v4552
        %v4554 = vsel %vm4551, %v4553, %v4549
        %v4555 = vmul.f32 %v4530, %v4554
        %v4556 = vmin.f32 %v4555, 1.0
        %v4557 = vmax.f32 %v4556, -1.0
        %v4558 = vmul.f32 %v4019, %v4019
        %v4559 = vmin.f32 16.0, %v4558
        %v4560 = vmul.f32 %v4559, 2.1237322e-06
        %v4561 = vadd.f32 %v4560, 0.00028619796
        %v4562 = vmul.f32 %v4559, %v4561
        %v4563 = vadd.f32 %v4562, 0.0036580483
        %v4564 = vmul.f32 %v4559, %v4563
        %v4565 = vadd.f32 %v4564, 0.05243302
        %v4566 = vmul.f32 %v4559, %v4565
        %v4567 = vadd.f32 %v4566, 0.18741608
        %v4568 = vmul.f32 %v4559, %v4567
        %v4569 = vadd.f32 %v4568, 1.1283791
        %v4570 = vmul.f32 %v4019, %v4569
        %v4571 = vmul.f32 %v4559, 3.8918573e-05
        %v4572 = vadd.f32 %v4571, 0.001143296
        %v4573 = vmul.f32 %v4559, %v4572
        %v4574 = vadd.f32 %v4573, 0.014752088
        %v4575 = vmul.f32 %v4559, %v4574
        %v4576 = vadd.f32 %v4575, 0.112945676
        %v4577 = vmul.f32 %v4559, %v4576
        %v4578 = vadd.f32 %v4577, 0.4994258
        %v4579 = vmul.f32 %v4559, %v4578
        %v4580 = vadd.f32 %v4579, 1.0
        %v4581 = vrcp.pop %v4580
        %v4582 = vmul.f32 %v4580, %v4581
        %v4583 = vsub.f32 1.0, %v4582
        %v4584 = vmul.f32 %v4581, %v4583
        %v4585 = vadd.f32 %v4581, %v4584
        %vm4586 = vweird.f32 %v4580
        %vm4587 = vweird.f32 %v4581
        %vm4588 = vmor %vm4586, %vm4587
        %v4589 = vsel %vm4588, %v4581, %v4585
        %v4590 = vand.u32 2147483647, %v4580
        %vm4591 = vcmp.eq.f32.partialorder %v4590, 8.507059e+37
        %v4592 = vand.u32 %v4580, 2147483648
        %v4593 = vor.u32 1.1754944e-38, %v4592
        %v4594 = vsel %vm4591, %v4593, %v4589
        %v4595 = vmul.f32 %v4570, %v4594
        %v4596 = vmin.f32 %v4595, 1.0
        %v4597 = vmax.f32 %v4596, -1.0
        %v4598 = vmul.f32 %v4020, %v4020
        %v4599 = vmin.f32 16.0, %v4598
        %v4600 = vmul.f32 %v4599, 2.1237322e-06
        %v4601 = vadd.f32 %v4600, 0.00028619796
        %v4602 = vmul.f32 %v4599, %v4601
        %v4603 = vadd.f32 %v4602, 0.0036580483
        %v4604 = vmul.f32 %v4599, %v4603
        %v4605 = vadd.f32 %v4604, 0.05243302
        %v4606 = vmul.f32 %v4599, %v4605
        %v4607 = vadd.f32 %v4606, 0.18741608
        %v4608 = vmul.f32 %v4599, %v4607
        %v4609 = vadd.f32 %v4608, 1.1283791
        %v4610 = vmul.f32 %v4020, %v4609
        %v4611 = vmul.f32 %v4599, 3.8918573e-05
        %v4612 = vadd.f32 %v4611, 0.001143296
        %v4613 = vmul.f32 %v4599, %v4612
        %v4614 = vadd.f32 %v4613, 0.014752088
        %v4615 = vmul.f32 %v4599, %v4614
        %v4616 = vadd.f32 %v4615, 0.112945676
        %v4617 = vmul.f32 %v4599, %v4616
        %v4618 = vadd.f32 %v4617, 0.4994258
        %v4619 = vmul.f32 %v4599, %v4618
        %v4620 = vadd.f32 %v4619, 1.0
        %v4621 = vrcp.pop %v4620
        %v4622 = vmul.f32 %v4620, %v4621
        %v4623 = vsub.f32 1.0, %v4622
        %v4624 = vmul.f32 %v4621, %v4623
        %v4625 = vadd.f32 %v4621, %v4624
        %vm4626 = vweird.f32 %v4620
        %vm4627 = vweird.f32 %v4621
        %vm4628 = vmor %vm4626, %vm4627
        %v4629 = vsel %vm4628, %v4621, %v4625
        %v4630 = vand.u32 2147483647, %v4620
        %vm4631 = vcmp.eq.f32.partialorder %v4630, 8.507059e+37
        %v4632 = vand.u32 %v4620, 2147483648
        %v4633 = vor.u32 1.1754944e-38, %v4632
        %v4634 = vsel %vm4631, %v4633, %v4629
        %v4635 = vmul.f32 %v4610, %v4634
        %v4636 = vmin.f32 %v4635, 1.0
        %v4637 = vmax.f32 %v4636, -1.0
        %v4638 = vmul.f32 %v4021, %v4021
        %v4639 = vmin.f32 16.0, %v4638
        %v4640 = vmul.f32 %v4639, 2.1237322e-06
        %v4641 = vadd.f32 %v4640, 0.00028619796
        %v4642 = vmul.f32 %v4639, %v4641
        %v4643 = vadd.f32 %v4642, 0.0036580483
        %v4644 = vmul.f32 %v4639, %v4643
        %v4645 = vadd.f32 %v4644, 0.05243302
        %v4646 = vmul.f32 %v4639, %v4645
        %v4647 = vadd.f32 %v4646, 0.18741608
        %v4648 = vmul.f32 %v4639, %v4647
        %v4649 = vadd.f32 %v4648, 1.1283791
        %v4650 = vmul.f32 %v4021, %v4649
        %v4651 = vmul.f32 %v4639, 3.8918573e-05
        %v4652 = vadd.f32 %v4651, 0.001143296
        %v4653 = vmul.f32 %v4639, %v4652
        %v4654 = vadd.f32 %v4653, 0.014752088
        %v4655 = vmul.f32 %v4639, %v4654
        %v4656 = vadd.f32 %v4655, 0.112945676
        %v4657 = vmul.f32 %v4639, %v4656
        %v4658 = vadd.f32 %v4657, 0.4994258
        %v4659 = vmul.f32 %v4639, %v4658
        %v4660 = vadd.f32 %v4659, 1.0
        %v4661 = vrcp.pop %v4660
        %v4662 = vmul.f32 %v4660, %v4661
        %v4663 = vsub.f32 1.0, %v4662
        %v4664 = vmul.f32 %v4661, %v4663
        %v4665 = vadd.f32 %v4661, %v4664
        %vm4666 = vweird.f32 %v4660
        %vm4667 = vweird.f32 %v4661
        %vm4668 = vmor %vm4666, %vm4667
        %v4669 = vsel %vm4668, %v4661, %v4665
        %v4670 = vand.u32 2147483647, %v4660
        %vm4671 = vcmp.eq.f32.partialorder %v4670, 8.507059e+37
        %v4672 = vand.u32 %v4660, 2147483648
        %v4673 = vor.u32 1.1754944e-38, %v4672
        %v4674 = vsel %vm4671, %v4673, %v4669
        %v4675 = vmul.f32 %v4650, %v4674
        %v4676 = vmin.f32 %v4675, 1.0
        %v4677 = vmax.f32 %v4676, -1.0
        %v4678 = vmul.f32 %v4022, %v4022
        %v4679 = vmin.f32 16.0, %v4678
        %v4680 = vmul.f32 %v4679, 2.1237322e-06
        %v4681 = vadd.f32 %v4680, 0.00028619796
        %v4682 = vmul.f32 %v4679, %v4681
        %v4683 = vadd.f32 %v4682, 0.0036580483
        %v4684 = vmul.f32 %v4679, %v4683
        %v4685 = vadd.f32 %v4684, 0.05243302
        %v4686 = vmul.f32 %v4679, %v4685
        %v4687 = vadd.f32 %v4686, 0.18741608
        %v4688 = vmul.f32 %v4679, %v4687
        %v4689 = vadd.f32 %v4688, 1.1283791
        %v4690 = vmul.f32 %v4022, %v4689
        %v4691 = vmul.f32 %v4679, 3.8918573e-05
        %v4692 = vadd.f32 %v4691, 0.001143296
        %v4693 = vmul.f32 %v4679, %v4692
        %v4694 = vadd.f32 %v4693, 0.014752088
        %v4695 = vmul.f32 %v4679, %v4694
        %v4696 = vadd.f32 %v4695, 0.112945676
        %v4697 = vmul.f32 %v4679, %v4696
        %v4698 = vadd.f32 %v4697, 0.4994258
        %v4699 = vmul.f32 %v4679, %v4698
        %v4700 = vadd.f32 %v4699, 1.0
        %v4701 = vrcp.pop %v4700
        %v4702 = vmul.f32 %v4700, %v4701
        %v4703 = vsub.f32 1.0, %v4702
        %v4704 = vmul.f32 %v4701, %v4703
        %v4705 = vadd.f32 %v4701, %v4704
        %vm4706 = vweird.f32 %v4700
        %vm4707 = vweird.f32 %v4701
        %vm4708 = vmor %vm4706, %vm4707
        %v4709 = vsel %vm4708, %v4701, %v4705
        %v4710 = vand.u32 2147483647, %v4700
        %vm4711 = vcmp.eq.f32.partialorder %v4710, 8.507059e+37
        %v4712 = vand.u32 %v4700, 2147483648
        %v4713 = vor.u32 1.1754944e-38, %v4712
        %v4714 = vsel %vm4711, %v4713, %v4709
        %v4715 = vmul.f32 %v4690, %v4714
        %v4716 = vmin.f32 %v4715, 1.0
        %v4717 = vmax.f32 %v4716, -1.0
        %v4718 = vmul.f32 %v4023, %v4023
        %v4719 = vmin.f32 16.0, %v4718
        %v4720 = vmul.f32 %v4719, 2.1237322e-06
        %v4721 = vadd.f32 %v4720, 0.00028619796
        %v4722 = vmul.f32 %v4719, %v4721
        %v4723 = vadd.f32 %v4722, 0.0036580483
        %v4724 = vmul.f32 %v4719, %v4723
        %v4725 = vadd.f32 %v4724, 0.05243302
        %v4726 = vmul.f32 %v4719, %v4725
        %v4727 = vadd.f32 %v4726, 0.18741608
        %v4728 = vmul.f32 %v4719, %v4727
        %v4729 = vadd.f32 %v4728, 1.1283791
        %v4730 = vmul.f32 %v4023, %v4729
        %v4731 = vmul.f32 %v4719, 3.8918573e-05
        %v4732 = vadd.f32 %v4731, 0.001143296
        %v4733 = vmul.f32 %v4719, %v4732
        %v4734 = vadd.f32 %v4733, 0.014752088
        %v4735 = vmul.f32 %v4719, %v4734
        %v4736 = vadd.f32 %v4735, 0.112945676
        %v4737 = vmul.f32 %v4719, %v4736
        %v4738 = vadd.f32 %v4737, 0.4994258
        %v4739 = vmul.f32 %v4719, %v4738
        %v4740 = vadd.f32 %v4739, 1.0
        %v4741 = vrcp.pop %v4740
        %v4742 = vmul.f32 %v4740, %v4741
        %v4743 = vsub.f32 1.0, %v4742
        %v4744 = vmul.f32 %v4741, %v4743
        %v4745 = vadd.f32 %v4741, %v4744
        %vm4746 = vweird.f32 %v4740
        %vm4747 = vweird.f32 %v4741
        %vm4748 = vmor %vm4746, %vm4747
        %v4749 = vsel %vm4748, %v4741, %v4745
        %v4750 = vand.u32 2147483647, %v4740
        %vm4751 = vcmp.eq.f32.partialorder %v4750, 8.507059e+37
        %v4752 = vand.u32 %v4740, 2147483648
        %v4753 = vor.u32 1.1754944e-38, %v4752
        %v4754 = vsel %vm4751, %v4753, %v4749
        %v4755 = vmul.f32 %v4730, %v4754
        %v4756 = vmin.f32 %v4755, 1.0
        %v4757 = vmax.f32 %v4756, -1.0
        %v4758 = vmul.f32 %v4024, %v4024
        %v4759 = vmin.f32 16.0, %v4758
        %v4760 = vmul.f32 %v4759, 2.1237322e-06
        %v4761 = vadd.f32 %v4760, 0.00028619796
        %v4762 = vmul.f32 %v4759, %v4761
        %v4763 = vadd.f32 %v4762, 0.0036580483
        %v4764 = vmul.f32 %v4759, %v4763
        %v4765 = vadd.f32 %v4764, 0.05243302
        %v4766 = vmul.f32 %v4759, %v4765
        %v4767 = vadd.f32 %v4766, 0.18741608
        %v4768 = vmul.f32 %v4759, %v4767
        %v4769 = vadd.f32 %v4768, 1.1283791
        %v4770 = vmul.f32 %v4024, %v4769
        %v4771 = vmul.f32 %v4759, 3.8918573e-05
        %v4772 = vadd.f32 %v4771, 0.001143296
        %v4773 = vmul.f32 %v4759, %v4772
        %v4774 = vadd.f32 %v4773, 0.014752088
        %v4775 = vmul.f32 %v4759, %v4774
        %v4776 = vadd.f32 %v4775, 0.112945676
        %v4777 = vmul.f32 %v4759, %v4776
        %v4778 = vadd.f32 %v4777, 0.4994258
        %v4779 = vmul.f32 %v4759, %v4778
        %v4780 = vadd.f32 %v4779, 1.0
        %v4781 = vrcp.pop %v4780
        %v4782 = vmul.f32 %v4780, %v4781
        %v4783 = vsub.f32 1.0, %v4782
        %v4784 = vmul.f32 %v4781, %v4783
        %v4785 = vadd.f32 %v4781, %v4784
        %vm4786 = vweird.f32 %v4780
        %vm4787 = vweird.f32 %v4781
        %vm4788 = vmor %vm4786, %vm4787
        %v4789 = vsel %vm4788, %v4781, %v4785
        %v4790 = vand.u32 2147483647, %v4780
        %vm4791 = vcmp.eq.f32.partialorder %v4790, 8.507059e+37
        %v4792 = vand.u32 %v4780, 2147483648
        %v4793 = vor.u32 1.1754944e-38, %v4792
        %v4794 = vsel %vm4791, %v4793, %v4789
        %v4795 = vmul.f32 %v4770, %v4794
        %v4796 = vmin.f32 %v4795, 1.0
        %v4797 = vmax.f32 %v4796, -1.0
        %v4798 = vmul.f32 %v4025, %v4025
        %v4799 = vmin.f32 16.0, %v4798
        %v4800 = vmul.f32 %v4799, 2.1237322e-06
        %v4801 = vadd.f32 %v4800, 0.00028619796
        %v4802 = vmul.f32 %v4799, %v4801
        %v4803 = vadd.f32 %v4802, 0.0036580483
        %v4804 = vmul.f32 %v4799, %v4803
        %v4805 = vadd.f32 %v4804, 0.05243302
        %v4806 = vmul.f32 %v4799, %v4805
        %v4807 = vadd.f32 %v4806, 0.18741608
        %v4808 = vmul.f32 %v4799, %v4807
        %v4809 = vadd.f32 %v4808, 1.1283791
        %v4810 = vmul.f32 %v4025, %v4809
        %v4811 = vmul.f32 %v4799, 3.8918573e-05
        %v4812 = vadd.f32 %v4811, 0.001143296
        %v4813 = vmul.f32 %v4799, %v4812
        %v4814 = vadd.f32 %v4813, 0.014752088
        %v4815 = vmul.f32 %v4799, %v4814
        %v4816 = vadd.f32 %v4815, 0.112945676
        %v4817 = vmul.f32 %v4799, %v4816
        %v4818 = vadd.f32 %v4817, 0.4994258
        %v4819 = vmul.f32 %v4799, %v4818
        %v4820 = vadd.f32 %v4819, 1.0
        %v4821 = vrcp.pop %v4820
        %v4822 = vmul.f32 %v4820, %v4821
        %v4823 = vsub.f32 1.0, %v4822
        %v4824 = vmul.f32 %v4821, %v4823
        %v4825 = vadd.f32 %v4821, %v4824
        %vm4826 = vweird.f32 %v4820
        %vm4827 = vweird.f32 %v4821
        %vm4828 = vmor %vm4826, %vm4827
        %v4829 = vsel %vm4828, %v4821, %v4825
        %v4830 = vand.u32 2147483647, %v4820
        %vm4831 = vcmp.eq.f32.partialorder %v4830, 8.507059e+37
        %v4832 = vand.u32 %v4820, 2147483648
        %v4833 = vor.u32 1.1754944e-38, %v4832
        %v4834 = vsel %vm4831, %v4833, %v4829
        %v4835 = vmul.f32 %v4810, %v4834
        %v4836 = vmin.f32 %v4835, 1.0
        %v4837 = vmax.f32 %v4836, -1.0
        %v4838 = vmul.f32 %v4026, %v4026
        %v4839 = vmin.f32 16.0, %v4838
        %v4840 = vmul.f32 %v4839, 2.1237322e-06
        %v4841 = vadd.f32 %v4840, 0.00028619796
        %v4842 = vmul.f32 %v4839, %v4841
        %v4843 = vadd.f32 %v4842, 0.0036580483
        %v4844 = vmul.f32 %v4839, %v4843
        %v4845 = vadd.f32 %v4844, 0.05243302
        %v4846 = vmul.f32 %v4839, %v4845
        %v4847 = vadd.f32 %v4846, 0.18741608
        %v4848 = vmul.f32 %v4839, %v4847
        %v4849 = vadd.f32 %v4848, 1.1283791
        %v4850 = vmul.f32 %v4026, %v4849
        %v4851 = vmul.f32 %v4839, 3.8918573e-05
        %v4852 = vadd.f32 %v4851, 0.001143296
        %v4853 = vmul.f32 %v4839, %v4852
        %v4854 = vadd.f32 %v4853, 0.014752088
        %v4855 = vmul.f32 %v4839, %v4854
        %v4856 = vadd.f32 %v4855, 0.112945676
        %v4857 = vmul.f32 %v4839, %v4856
        %v4858 = vadd.f32 %v4857, 0.4994258
        %v4859 = vmul.f32 %v4839, %v4858
        %v4860 = vadd.f32 %v4859, 1.0
        %v4861 = vrcp.pop %v4860
        %v4862 = vmul.f32 %v4860, %v4861
        %v4863 = vsub.f32 1.0, %v4862
        %v4864 = vmul.f32 %v4861, %v4863
        %v4865 = vadd.f32 %v4861, %v4864
        %vm4866 = vweird.f32 %v4860
        %vm4867 = vweird.f32 %v4861
        %vm4868 = vmor %vm4866, %vm4867
        %v4869 = vsel %vm4868, %v4861, %v4865
        %v4870 = vand.u32 2147483647, %v4860
        %vm4871 = vcmp.eq.f32.partialorder %v4870, 8.507059e+37
        %v4872 = vand.u32 %v4860, 2147483648
        %v4873 = vor.u32 1.1754944e-38, %v4872
        %v4874 = vsel %vm4871, %v4873, %v4869
        %v4875 = vmul.f32 %v4850, %v4874
        %v4876 = vmin.f32 %v4875, 1.0
        %v4877 = vmax.f32 %v4876, -1.0
        %v4878 = vmul.f32 %v4027, %v4027
        %v4879 = vmin.f32 16.0, %v4878
        %v4880 = vmul.f32 %v4879, 2.1237322e-06
        %v4881 = vadd.f32 %v4880, 0.00028619796
        %v4882 = vmul.f32 %v4879, %v4881
        %v4883 = vadd.f32 %v4882, 0.0036580483
        %v4884 = vmul.f32 %v4879, %v4883
        %v4885 = vadd.f32 %v4884, 0.05243302
        %v4886 = vmul.f32 %v4879, %v4885
        %v4887 = vadd.f32 %v4886, 0.18741608
        %v4888 = vmul.f32 %v4879, %v4887
        %v4889 = vadd.f32 %v4888, 1.1283791
        %v4890 = vmul.f32 %v4027, %v4889
        %v4891 = vmul.f32 %v4879, 3.8918573e-05
        %v4892 = vadd.f32 %v4891, 0.001143296
        %v4893 = vmul.f32 %v4879, %v4892
        %v4894 = vadd.f32 %v4893, 0.014752088
        %v4895 = vmul.f32 %v4879, %v4894
        %v4896 = vadd.f32 %v4895, 0.112945676
        %v4897 = vmul.f32 %v4879, %v4896
        %v4898 = vadd.f32 %v4897, 0.4994258
        %v4899 = vmul.f32 %v4879, %v4898
        %v4900 = vadd.f32 %v4899, 1.0
        %v4901 = vrcp.pop %v4900
        %v4902 = vmul.f32 %v4900, %v4901
        %v4903 = vsub.f32 1.0, %v4902
        %v4904 = vmul.f32 %v4901, %v4903
        %v4905 = vadd.f32 %v4901, %v4904
        %vm4906 = vweird.f32 %v4900
        %vm4907 = vweird.f32 %v4901
        %vm4908 = vmor %vm4906, %vm4907
        %v4909 = vsel %vm4908, %v4901, %v4905
        %v4910 = vand.u32 2147483647, %v4900
        %vm4911 = vcmp.eq.f32.partialorder %v4910, 8.507059e+37
        %v4912 = vand.u32 %v4900, 2147483648
        %v4913 = vor.u32 1.1754944e-38, %v4912
        %v4914 = vsel %vm4911, %v4913, %v4909
        %v4915 = vmul.f32 %v4890, %v4914
        %v4916 = vmin.f32 %v4915, 1.0
        %v4917 = vmax.f32 %v4916, -1.0
        %v4918 = vmul.f32 %v4028, %v4028
        %v4919 = vmin.f32 16.0, %v4918
        %v4920 = vmul.f32 %v4919, 2.1237322e-06
        %v4921 = vadd.f32 %v4920, 0.00028619796
        %v4922 = vmul.f32 %v4919, %v4921
        %v4923 = vadd.f32 %v4922, 0.0036580483
        %v4924 = vmul.f32 %v4919, %v4923
        %v4925 = vadd.f32 %v4924, 0.05243302
        %v4926 = vmul.f32 %v4919, %v4925
        %v4927 = vadd.f32 %v4926, 0.18741608
        %v4928 = vmul.f32 %v4919, %v4927
        %v4929 = vadd.f32 %v4928, 1.1283791
        %v4930 = vmul.f32 %v4028, %v4929
        %v4931 = vmul.f32 %v4919, 3.8918573e-05
        %v4932 = vadd.f32 %v4931, 0.001143296
        %v4933 = vmul.f32 %v4919, %v4932
        %v4934 = vadd.f32 %v4933, 0.014752088
        %v4935 = vmul.f32 %v4919, %v4934
        %v4936 = vadd.f32 %v4935, 0.112945676
        %v4937 = vmul.f32 %v4919, %v4936
        %v4938 = vadd.f32 %v4937, 0.4994258
        %v4939 = vmul.f32 %v4919, %v4938
        %v4940 = vadd.f32 %v4939, 1.0
        %v4941 = vrcp.pop %v4940
        %v4942 = vmul.f32 %v4940, %v4941
        %v4943 = vsub.f32 1.0, %v4942
        %v4944 = vmul.f32 %v4941, %v4943
        %v4945 = vadd.f32 %v4941, %v4944
        %vm4946 = vweird.f32 %v4940
        %vm4947 = vweird.f32 %v4941
        %vm4948 = vmor %vm4946, %vm4947
        %v4949 = vsel %vm4948, %v4941, %v4945
        %v4950 = vand.u32 2147483647, %v4940
        %vm4951 = vcmp.eq.f32.partialorder %v4950, 8.507059e+37
        %v4952 = vand.u32 %v4940, 2147483648
        %v4953 = vor.u32 1.1754944e-38, %v4952
        %v4954 = vsel %vm4951, %v4953, %v4949
        %v4955 = vmul.f32 %v4930, %v4954
        %v4956 = vmin.f32 %v4955, 1.0
        %v4957 = vmax.f32 %v4956, -1.0
        %v4958 = vmul.f32 %v4029, %v4029
        %v4959 = vmin.f32 16.0, %v4958
        %v4960 = vmul.f32 %v4959, 2.1237322e-06
        %v4961 = vadd.f32 %v4960, 0.00028619796
        %v4962 = vmul.f32 %v4959, %v4961
        %v4963 = vadd.f32 %v4962, 0.0036580483
        %v4964 = vmul.f32 %v4959, %v4963
        %v4965 = vadd.f32 %v4964, 0.05243302
        %v4966 = vmul.f32 %v4959, %v4965
        %v4967 = vadd.f32 %v4966, 0.18741608
        %v4968 = vmul.f32 %v4959, %v4967
        %v4969 = vadd.f32 %v4968, 1.1283791
        %v4970 = vmul.f32 %v4029, %v4969
        %v4971 = vmul.f32 %v4959, 3.8918573e-05
        %v4972 = vadd.f32 %v4971, 0.001143296
        %v4973 = vmul.f32 %v4959, %v4972
        %v4974 = vadd.f32 %v4973, 0.014752088
        %v4975 = vmul.f32 %v4959, %v4974
        %v4976 = vadd.f32 %v4975, 0.112945676
        %v4977 = vmul.f32 %v4959, %v4976
        %v4978 = vadd.f32 %v4977, 0.4994258
        %v4979 = vmul.f32 %v4959, %v4978
        %v4980 = vadd.f32 %v4979, 1.0
        %v4981 = vrcp.pop %v4980
        %v4982 = vmul.f32 %v4980, %v4981
        %v4983 = vsub.f32 1.0, %v4982
        %v4984 = vmul.f32 %v4981, %v4983
        %v4985 = vadd.f32 %v4981, %v4984
        %vm4986 = vweird.f32 %v4980
        %vm4987 = vweird.f32 %v4981
        %vm4988 = vmor %vm4986, %vm4987
        %v4989 = vsel %vm4988, %v4981, %v4985
        %v4990 = vand.u32 2147483647, %v4980
        %vm4991 = vcmp.eq.f32.partialorder %v4990, 8.507059e+37
        %v4992 = vand.u32 %v4980, 2147483648
        %v4993 = vor.u32 1.1754944e-38, %v4992
        %v4994 = vsel %vm4991, %v4993, %v4989
        %v4995 = vmul.f32 %v4970, %v4994
        %v4996 = vmin.f32 %v4995, 1.0
        %v4997 = vmax.f32 %v4996, -1.0
        %v4998 = vmul.f32 %v4030, %v4030
        %v4999 = vmin.f32 16.0, %v4998
        %v5000 = vmul.f32 %v4999, 2.1237322e-06
        %v5001 = vadd.f32 %v5000, 0.00028619796
        %v5002 = vmul.f32 %v4999, %v5001
        %v5003 = vadd.f32 %v5002, 0.0036580483
        %v5004 = vmul.f32 %v4999, %v5003
        %v5005 = vadd.f32 %v5004, 0.05243302
        %v5006 = vmul.f32 %v4999, %v5005
        %v5007 = vadd.f32 %v5006, 0.18741608
        %v5008 = vmul.f32 %v4999, %v5007
        %v5009 = vadd.f32 %v5008, 1.1283791
        %v5010 = vmul.f32 %v4030, %v5009
        %v5011 = vmul.f32 %v4999, 3.8918573e-05
        %v5012 = vadd.f32 %v5011, 0.001143296
        %v5013 = vmul.f32 %v4999, %v5012
        %v5014 = vadd.f32 %v5013, 0.014752088
        %v5015 = vmul.f32 %v4999, %v5014
        %v5016 = vadd.f32 %v5015, 0.112945676
        %v5017 = vmul.f32 %v4999, %v5016
        %v5018 = vadd.f32 %v5017, 0.4994258
        %v5019 = vmul.f32 %v4999, %v5018
        %v5020 = vadd.f32 %v5019, 1.0
        %v5021 = vrcp.pop %v5020
        %v5022 = vmul.f32 %v5020, %v5021
        %v5023 = vsub.f32 1.0, %v5022
        %v5024 = vmul.f32 %v5021, %v5023
        %v5025 = vadd.f32 %v5021, %v5024
        %vm5026 = vweird.f32 %v5020
        %vm5027 = vweird.f32 %v5021
        %vm5028 = vmor %vm5026, %vm5027
        %v5029 = vsel %vm5028, %v5021, %v5025
        %v5030 = vand.u32 2147483647, %v5020
        %vm5031 = vcmp.eq.f32.partialorder %v5030, 8.507059e+37
        %v5032 = vand.u32 %v5020, 2147483648
        %v5033 = vor.u32 1.1754944e-38, %v5032
        %v5034 = vsel %vm5031, %v5033, %v5029
        %v5035 = vmul.f32 %v5010, %v5034
        %v5036 = vmin.f32 %v5035, 1.0
        %v5037 = vmax.f32 %v5036, -1.0
        %v5038 = vmul.f32 %v4031, %v4031
        %v5039 = vmin.f32 16.0, %v5038
        %v5040 = vmul.f32 %v5039, 2.1237322e-06
        %v5041 = vadd.f32 %v5040, 0.00028619796
        %v5042 = vmul.f32 %v5039, %v5041
        %v5043 = vadd.f32 %v5042, 0.0036580483
        %v5044 = vmul.f32 %v5039, %v5043
        %v5045 = vadd.f32 %v5044, 0.05243302
        %v5046 = vmul.f32 %v5039, %v5045
        %v5047 = vadd.f32 %v5046, 0.18741608
        %v5048 = vmul.f32 %v5039, %v5047
        %v5049 = vadd.f32 %v5048, 1.1283791
        %v5050 = vmul.f32 %v4031, %v5049
        %v5051 = vmul.f32 %v5039, 3.8918573e-05
        %v5052 = vadd.f32 %v5051, 0.001143296
        %v5053 = vmul.f32 %v5039, %v5052
        %v5054 = vadd.f32 %v5053, 0.014752088
        %v5055 = vmul.f32 %v5039, %v5054
        %v5056 = vadd.f32 %v5055, 0.112945676
        %v5057 = vmul.f32 %v5039, %v5056
        %v5058 = vadd.f32 %v5057, 0.4994258
        %v5059 = vmul.f32 %v5039, %v5058
        %v5060 = vadd.f32 %v5059, 1.0
        %v5061 = vrcp.pop %v5060
        %v5062 = vmul.f32 %v5060, %v5061
        %v5063 = vsub.f32 1.0, %v5062
        %v5064 = vmul.f32 %v5061, %v5063
        %v5065 = vadd.f32 %v5061, %v5064
        %vm5066 = vweird.f32 %v5060
        %vm5067 = vweird.f32 %v5061
        %vm5068 = vmor %vm5066, %vm5067
        %v5069 = vsel %vm5068, %v5061, %v5065
        %v5070 = vand.u32 2147483647, %v5060
        %vm5071 = vcmp.eq.f32.partialorder %v5070, 8.507059e+37
        %v5072 = vand.u32 %v5060, 2147483648
        %v5073 = vor.u32 1.1754944e-38, %v5072
        %v5074 = vsel %vm5071, %v5073, %v5069
        %v5075 = vmul.f32 %v5050, %v5074
        %v5076 = vmin.f32 %v5075, 1.0
        %v5077 = vmax.f32 %v5076, -1.0
        %v5078 = vmul.f32 %v4032, %v4032
        %v5079 = vmin.f32 16.0, %v5078
        %v5080 = vmul.f32 %v5079, 2.1237322e-06
        %v5081 = vadd.f32 %v5080, 0.00028619796
        %v5082 = vmul.f32 %v5079, %v5081
        %v5083 = vadd.f32 %v5082, 0.0036580483
        %v5084 = vmul.f32 %v5079, %v5083
        %v5085 = vadd.f32 %v5084, 0.05243302
        %v5086 = vmul.f32 %v5079, %v5085
        %v5087 = vadd.f32 %v5086, 0.18741608
        %v5088 = vmul.f32 %v5079, %v5087
        %v5089 = vadd.f32 %v5088, 1.1283791
        %v5090 = vmul.f32 %v4032, %v5089
        %v5091 = vmul.f32 %v5079, 3.8918573e-05
        %v5092 = vadd.f32 %v5091, 0.001143296
        %v5093 = vmul.f32 %v5079, %v5092
        %v5094 = vadd.f32 %v5093, 0.014752088
        %v5095 = vmul.f32 %v5079, %v5094
        %v5096 = vadd.f32 %v5095, 0.112945676
        %v5097 = vmul.f32 %v5079, %v5096
        %v5098 = vadd.f32 %v5097, 0.4994258
        %v5099 = vmul.f32 %v5079, %v5098
        %v5100 = vadd.f32 %v5099, 1.0
        %v5101 = vrcp.pop %v5100
        %v5102 = vmul.f32 %v5100, %v5101
        %v5103 = vsub.f32 1.0, %v5102
        %v5104 = vmul.f32 %v5101, %v5103
        %v5105 = vadd.f32 %v5101, %v5104
        %vm5106 = vweird.f32 %v5100
        %vm5107 = vweird.f32 %v5101
        %vm5108 = vmor %vm5106, %vm5107
        %v5109 = vsel %vm5108, %v5101, %v5105
        %v5110 = vand.u32 2147483647, %v5100
        %vm5111 = vcmp.eq.f32.partialorder %v5110, 8.507059e+37
        %v5112 = vand.u32 %v5100, 2147483648
        %v5113 = vor.u32 1.1754944e-38, %v5112
        %v5114 = vsel %vm5111, %v5113, %v5109
        %v5115 = vmul.f32 %v5090, %v5114
        %v5116 = vmin.f32 %v5115, 1.0
        %v5117 = vmax.f32 %v5116, -1.0
        %v5118 = vmul.f32 %v4033, %v4033
        %v5119 = vmin.f32 16.0, %v5118
        %v5120 = vmul.f32 %v5119, 2.1237322e-06
        %v5121 = vadd.f32 %v5120, 0.00028619796
        %v5122 = vmul.f32 %v5119, %v5121
        %v5123 = vadd.f32 %v5122, 0.0036580483
        %v5124 = vmul.f32 %v5119, %v5123
        %v5125 = vadd.f32 %v5124, 0.05243302
        %v5126 = vmul.f32 %v5119, %v5125
        %v5127 = vadd.f32 %v5126, 0.18741608
        %v5128 = vmul.f32 %v5119, %v5127
        %v5129 = vadd.f32 %v5128, 1.1283791
        %v5130 = vmul.f32 %v4033, %v5129
        %v5131 = vmul.f32 %v5119, 3.8918573e-05
        %v5132 = vadd.f32 %v5131, 0.001143296
        %v5133 = vmul.f32 %v5119, %v5132
        %v5134 = vadd.f32 %v5133, 0.014752088
        %v5135 = vmul.f32 %v5119, %v5134
        %v5136 = vadd.f32 %v5135, 0.112945676
        %v5137 = vmul.f32 %v5119, %v5136
        %v5138 = vadd.f32 %v5137, 0.4994258
        %v5139 = vmul.f32 %v5119, %v5138
        %v5140 = vadd.f32 %v5139, 1.0
        %v5141 = vrcp.pop %v5140
        %v5142 = vmul.f32 %v5140, %v5141
        %v5143 = vsub.f32 1.0, %v5142
        %v5144 = vmul.f32 %v5141, %v5143
        %v5145 = vadd.f32 %v5141, %v5144
        %vm5146 = vweird.f32 %v5140
        %vm5147 = vweird.f32 %v5141
        %vm5148 = vmor %vm5146, %vm5147
        %v5149 = vsel %vm5148, %v5141, %v5145
        %v5150 = vand.u32 2147483647, %v5140
        %vm5151 = vcmp.eq.f32.partialorder %v5150, 8.507059e+37
        %v5152 = vand.u32 %v5140, 2147483648
        %v5153 = vor.u32 1.1754944e-38, %v5152
        %v5154 = vsel %vm5151, %v5153, %v5149
        %v5155 = vmul.f32 %v5130, %v5154
        %v5156 = vmin.f32 %v5155, 1.0
        %v5157 = vmax.f32 %v5156, -1.0
        %v5158 = vmul.f32 %v4034, %v4034
        %v5159 = vmin.f32 16.0, %v5158
        %v5160 = vmul.f32 %v5159, 2.1237322e-06
        %v5161 = vadd.f32 %v5160, 0.00028619796
        %v5162 = vmul.f32 %v5159, %v5161
        %v5163 = vadd.f32 %v5162, 0.0036580483
        %v5164 = vmul.f32 %v5159, %v5163
        %v5165 = vadd.f32 %v5164, 0.05243302
        %v5166 = vmul.f32 %v5159, %v5165
        %v5167 = vadd.f32 %v5166, 0.18741608
        %v5168 = vmul.f32 %v5159, %v5167
        %v5169 = vadd.f32 %v5168, 1.1283791
        %v5170 = vmul.f32 %v4034, %v5169
        %v5171 = vmul.f32 %v5159, 3.8918573e-05
        %v5172 = vadd.f32 %v5171, 0.001143296
        %v5173 = vmul.f32 %v5159, %v5172
        %v5174 = vadd.f32 %v5173, 0.014752088
        %v5175 = vmul.f32 %v5159, %v5174
        %v5176 = vadd.f32 %v5175, 0.112945676
        %v5177 = vmul.f32 %v5159, %v5176
        %v5178 = vadd.f32 %v5177, 0.4994258
        %v5179 = vmul.f32 %v5159, %v5178
        %v5180 = vadd.f32 %v5179, 1.0
        %v5181 = vrcp.pop %v5180
        %v5182 = vmul.f32 %v5180, %v5181
        %v5183 = vsub.f32 1.0, %v5182
        %v5184 = vmul.f32 %v5181, %v5183
        %v5185 = vadd.f32 %v5181, %v5184
        %vm5186 = vweird.f32 %v5180
        %vm5187 = vweird.f32 %v5181
        %vm5188 = vmor %vm5186, %vm5187
        %v5189 = vsel %vm5188, %v5181, %v5185
        %v5190 = vand.u32 2147483647, %v5180
        %vm5191 = vcmp.eq.f32.partialorder %v5190, 8.507059e+37
        %v5192 = vand.u32 %v5180, 2147483648
        %v5193 = vor.u32 1.1754944e-38, %v5192
        %v5194 = vsel %vm5191, %v5193, %v5189
        %v5195 = vmul.f32 %v5170, %v5194
        %v5196 = vmin.f32 %v5195, 1.0
        %v5197 = vmax.f32 %v5196, -1.0
        %v5198 = vmul.f32 %v4035, %v4035
        %v5199 = vmin.f32 16.0, %v5198
        %v5200 = vmul.f32 %v5199, 2.1237322e-06
        %v5201 = vadd.f32 %v5200, 0.00028619796
        %v5202 = vmul.f32 %v5199, %v5201
        %v5203 = vadd.f32 %v5202, 0.0036580483
        %v5204 = vmul.f32 %v5199, %v5203
        %v5205 = vadd.f32 %v5204, 0.05243302
        %v5206 = vmul.f32 %v5199, %v5205
        %v5207 = vadd.f32 %v5206, 0.18741608
        %v5208 = vmul.f32 %v5199, %v5207
        %v5209 = vadd.f32 %v5208, 1.1283791
        %v5210 = vmul.f32 %v4035, %v5209
        %v5211 = vmul.f32 %v5199, 3.8918573e-05
        %v5212 = vadd.f32 %v5211, 0.001143296
        %v5213 = vmul.f32 %v5199, %v5212
        %v5214 = vadd.f32 %v5213, 0.014752088
        %v5215 = vmul.f32 %v5199, %v5214
        %v5216 = vadd.f32 %v5215, 0.112945676
        %v5217 = vmul.f32 %v5199, %v5216
        %v5218 = vadd.f32 %v5217, 0.4994258
        %v5219 = vmul.f32 %v5199, %v5218
        %v5220 = vadd.f32 %v5219, 1.0
        %v5221 = vrcp.pop %v5220
        %v5222 = vmul.f32 %v5220, %v5221
        %v5223 = vsub.f32 1.0, %v5222
        %v5224 = vmul.f32 %v5221, %v5223
        %v5225 = vadd.f32 %v5221, %v5224
        %vm5226 = vweird.f32 %v5220
        %vm5227 = vweird.f32 %v5221
        %vm5228 = vmor %vm5226, %vm5227
        %v5229 = vsel %vm5228, %v5221, %v5225
        %v5230 = vand.u32 2147483647, %v5220
        %vm5231 = vcmp.eq.f32.partialorder %v5230, 8.507059e+37
        %v5232 = vand.u32 %v5220, 2147483648
        %v5233 = vor.u32 1.1754944e-38, %v5232
        %v5234 = vsel %vm5231, %v5233, %v5229
        %v5235 = vmul.f32 %v5210, %v5234
        %v5236 = vmin.f32 %v5235, 1.0
        %v5237 = vmax.f32 %v5236, -1.0
        %v5238 = vmul.f32 %v4036, %v4036
        %v5239 = vmin.f32 16.0, %v5238
        %v5240 = vmul.f32 %v5239, 2.1237322e-06
        %v5241 = vadd.f32 %v5240, 0.00028619796
        %v5242 = vmul.f32 %v5239, %v5241
        %v5243 = vadd.f32 %v5242, 0.0036580483
        %v5244 = vmul.f32 %v5239, %v5243
        %v5245 = vadd.f32 %v5244, 0.05243302
        %v5246 = vmul.f32 %v5239, %v5245
        %v5247 = vadd.f32 %v5246, 0.18741608
        %v5248 = vmul.f32 %v5239, %v5247
        %v5249 = vadd.f32 %v5248, 1.1283791
        %v5250 = vmul.f32 %v4036, %v5249
        %v5251 = vmul.f32 %v5239, 3.8918573e-05
        %v5252 = vadd.f32 %v5251, 0.001143296
        %v5253 = vmul.f32 %v5239, %v5252
        %v5254 = vadd.f32 %v5253, 0.014752088
        %v5255 = vmul.f32 %v5239, %v5254
        %v5256 = vadd.f32 %v5255, 0.112945676
        %v5257 = vmul.f32 %v5239, %v5256
        %v5258 = vadd.f32 %v5257, 0.4994258
        %v5259 = vmul.f32 %v5239, %v5258
        %v5260 = vadd.f32 %v5259, 1.0
        %v5261 = vrcp.pop %v5260
        %v5262 = vmul.f32 %v5260, %v5261
        %v5263 = vsub.f32 1.0, %v5262
        %v5264 = vmul.f32 %v5261, %v5263
        %v5265 = vadd.f32 %v5261, %v5264
        %vm5266 = vweird.f32 %v5260
        %vm5267 = vweird.f32 %v5261
        %vm5268 = vmor %vm5266, %vm5267
        %v5269 = vsel %vm5268, %v5261, %v5265
        %v5270 = vand.u32 2147483647, %v5260
        %vm5271 = vcmp.eq.f32.partialorder %v5270, 8.507059e+37
        %v5272 = vand.u32 %v5260, 2147483648
        %v5273 = vor.u32 1.1754944e-38, %v5272
        %v5274 = vsel %vm5271, %v5273, %v5269
        %v5275 = vmul.f32 %v5250, %v5274
        %v5276 = vmin.f32 %v5275, 1.0
        %v5277 = vmax.f32 %v5276, -1.0
        %v5278 = vmul.f32 %v4037, %v4037
        %v5279 = vmin.f32 16.0, %v5278
        %v5280 = vmul.f32 %v5279, 2.1237322e-06
        %v5281 = vadd.f32 %v5280, 0.00028619796
        %v5282 = vmul.f32 %v5279, %v5281
        %v5283 = vadd.f32 %v5282, 0.0036580483
        %v5284 = vmul.f32 %v5279, %v5283
        %v5285 = vadd.f32 %v5284, 0.05243302
        %v5286 = vmul.f32 %v5279, %v5285
        %v5287 = vadd.f32 %v5286, 0.18741608
        %v5288 = vmul.f32 %v5279, %v5287
        %v5289 = vadd.f32 %v5288, 1.1283791
        %v5290 = vmul.f32 %v4037, %v5289
        %v5291 = vmul.f32 %v5279, 3.8918573e-05
        %v5292 = vadd.f32 %v5291, 0.001143296
        %v5293 = vmul.f32 %v5279, %v5292
        %v5294 = vadd.f32 %v5293, 0.014752088
        %v5295 = vmul.f32 %v5279, %v5294
        %v5296 = vadd.f32 %v5295, 0.112945676
        %v5297 = vmul.f32 %v5279, %v5296
        %v5298 = vadd.f32 %v5297, 0.4994258
        %v5299 = vmul.f32 %v5279, %v5298
        %v5300 = vadd.f32 %v5299, 1.0
        %v5301 = vrcp.pop %v5300
        %v5302 = vmul.f32 %v5300, %v5301
        %v5303 = vsub.f32 1.0, %v5302
        %v5304 = vmul.f32 %v5301, %v5303
        %v5305 = vadd.f32 %v5301, %v5304
        %vm5306 = vweird.f32 %v5300
        %vm5307 = vweird.f32 %v5301
        %vm5308 = vmor %vm5306, %vm5307
        %v5309 = vsel %vm5308, %v5301, %v5305
        %v5310 = vand.u32 2147483647, %v5300
        %vm5311 = vcmp.eq.f32.partialorder %v5310, 8.507059e+37
        %v5312 = vand.u32 %v5300, 2147483648
        %v5313 = vor.u32 1.1754944e-38, %v5312
        %v5314 = vsel %vm5311, %v5313, %v5309
        %v5315 = vmul.f32 %v5290, %v5314
        %v5316 = vmin.f32 %v5315, 1.0
        %v5317 = vmax.f32 %v5316, -1.0
        %v5318 = vadd.f32 %v4077, 1.0
        %v5319 = vadd.f32 %v4117, 1.0
        %v5320 = vadd.f32 %v4157, 1.0
        %v5321 = vadd.f32 %v4197, 1.0
        %v5322 = vadd.f32 %v4237, 1.0
        %v5323 = vadd.f32 %v4277, 1.0
        %v5324 = vadd.f32 %v4317, 1.0
        %v5325 = vadd.f32 %v4357, 1.0
        %v5326 = vadd.f32 %v4397, 1.0
        %v5327 = vadd.f32 %v4437, 1.0
        %v5328 = vadd.f32 %v4477, 1.0
        %v5329 = vadd.f32 %v4517, 1.0
        %v5330 = vadd.f32 %v4557, 1.0
        %v5331 = vadd.f32 %v4597, 1.0
        %v5332 = vadd.f32 %v4637, 1.0
        %v5333 = vadd.f32 %v4677, 1.0
        %v5334 = vadd.f32 %v4717, 1.0
        %v5335 = vadd.f32 %v4757, 1.0
        %v5336 = vadd.f32 %v4797, 1.0
        %v5337 = vadd.f32 %v4837, 1.0
        %v5338 = vadd.f32 %v4877, 1.0
        %v5339 = vadd.f32 %v4917, 1.0
        %v5340 = vadd.f32 %v4957, 1.0
        %v5341 = vadd.f32 %v4997, 1.0
        %v5342 = vadd.f32 %v5037, 1.0
        %v5343 = vadd.f32 %v5077, 1.0
        %v5344 = vadd.f32 %v5117, 1.0
        %v5345 = vadd.f32 %v5157, 1.0
        %v5346 = vadd.f32 %v5197, 1.0
        %v5347 = vadd.f32 %v5237, 1.0
        %v5348 = vadd.f32 %v5277, 1.0
        %v5349 = vadd.f32 %v5317, 1.0
        %v5350 = vmul.f32 %v3974, %v5318
        %v5351 = vmul.f32 %v3975, %v5319
        %v5352 = vmul.f32 %v3976, %v5320
        %v5353 = vmul.f32 %v3977, %v5321
        %v5354 = vmul.f32 %v3978, %v5322
        %v5355 = vmul.f32 %v3979, %v5323
        %v5356 = vmul.f32 %v3980, %v5324
        %v5357 = vmul.f32 %v3981, %v5325
        %v5358 = vmul.f32 %v3982, %v5326
        %v5359 = vmul.f32 %v3983, %v5327
        %v5360 = vmul.f32 %v3984, %v5328
        %v5361 = vmul.f32 %v3985, %v5329
        %v5362 = vmul.f32 %v3986, %v5330
        %v5363 = vmul.f32 %v3987, %v5331
        %v5364 = vmul.f32 %v3988, %v5332
        %v5365 = vmul.f32 %v3989, %v5333
        %v5366 = vmul.f32 %v3990, %v5334
        %v5367 = vmul.f32 %v3991, %v5335
        %v5368 = vmul.f32 %v3992, %v5336
        %v5369 = vmul.f32 %v3993, %v5337
        %v5370 = vmul.f32 %v3994, %v5338
        %v5371 = vmul.f32 %v3995, %v5339
        %v5372 = vmul.f32 %v3996, %v5340
        %v5373 = vmul.f32 %v3997, %v5341
        %v5374 = vmul.f32 %v3998, %v5342
        %v5375 = vmul.f32 %v3999, %v5343
        %v5376 = vmul.f32 %v4000, %v5344
        %v5377 = vmul.f32 %v4001, %v5345
        %v5378 = vmul.f32 %v4002, %v5346
        %v5379 = vmul.f32 %v4003, %v5347
        %v5380 = vmul.f32 %v4004, %v5348
        %v5381 = vmul.f32 %v4005, %v5349
        %v5382 = vpack.c.bf16 %v5351, %v5350
        %v5383 = vpack.c.bf16 %v5353, %v5352
        %v5384 = vpack.c.bf16 %v5355, %v5354
        %v5385 = vpack.c.bf16 %v5357, %v5356
        %v5386 = vpack.c.bf16 %v5359, %v5358
        %v5387 = vpack.c.bf16 %v5361, %v5360
        %v5388 = vpack.c.bf16 %v5363, %v5362
        %v5389 = vpack.c.bf16 %v5365, %v5364
        %v5390 = vpack.c.bf16 %v5367, %v5366
        %v5391 = vpack.c.bf16 %v5369, %v5368
        %v5392 = vpack.c.bf16 %v5371, %v5370
        %v5393 = vpack.c.bf16 %v5373, %v5372
        %v5394 = vpack.c.bf16 %v5375, %v5374
        %v5395 = vpack.c.bf16 %v5377, %v5376
        %v5396 = vpack.c.bf16 %v5379, %v5378
        %v5397 = vpack.c.bf16 %v5381, %v5380
        %v5398 = vld [vmem:[%s7] sm:$0xff]
        %v5399 = vld [vmem:[%s7 + $0x8] sm:$0xff]
        %v5400 = vld [vmem:[%s7 + $0x10] sm:$0xff]
        %v5401 = vld [vmem:[%s7 + $0x18] sm:$0xff]
        %v5402 = vld [vmem:[%s7 + $0x20] sm:$0xff]
        %v5403 = vld [vmem:[%s7 + $0x28] sm:$0xff]
        %v5404 = vld [vmem:[%s7 + $0x30] sm:$0xff]
        %v5405 = vld [vmem:[%s7 + $0x38] sm:$0xff]
        %v5406 = vld [vmem:[%s7 + $0x40] sm:$0xff]
        %v5407 = vld [vmem:[%s7 + $0x48] sm:$0xff]
        %v5408 = vld [vmem:[%s7 + $0x50] sm:$0xff]
        %v5409 = vld [vmem:[%s7 + $0x58] sm:$0xff]
        %v5410 = vld [vmem:[%s7 + $0x60] sm:$0xff]
        %v5411 = vld [vmem:[%s7 + $0x68] sm:$0xff]
        %v5412 = vld [vmem:[%s7 + $0x70] sm:$0xff]
        %v5413 = vld [vmem:[%s7 + $0x78] sm:$0xff]
        %v5414 = vpack.c.bf16 %v5399, %v5398
        %v5415 = vpack.c.bf16 %v5401, %v5400
        %v5416 = vpack.c.bf16 %v5403, %v5402
        %v5417 = vpack.c.bf16 %v5405, %v5404
        %v5418 = vpack.c.bf16 %v5407, %v5406
        %v5419 = vpack.c.bf16 %v5409, %v5408
        %v5420 = vpack.c.bf16 %v5411, %v5410
        %v5421 = vpack.c.bf16 %v5413, %v5412
        %5422 = vmatpush.bf16.msra.mxu0 %v5421
        %5423 = vmatpush.bf16.msra.mxu0 %v5420
        %5424 = vmatpush.bf16.msra.mxu0 %v5419
        %5425 = vmatpush.bf16.msra.mxu0 %v5418
        %5426 = vmatpush.bf16.msra.mxu0 %v5417
        %5427 = vmatpush.bf16.msra.mxu0 %v5416
        %5428 = vmatpush.bf16.msra.mxu0 %v5415
        %5429 = vmatpush.bf16.msra.mxu0 %v5414
        %5430 = vmatmul.bf16.gmra.mxu0 %v5382
        %v5431 = vpop.f32.mrf.mxu0
        %v5432 = vadd.f32 0.0, %v5431
        %v5433 = vpop.f32.mrf.mxu0
        %v5434 = vadd.f32 0.0, %v5433
        %5435 = vmatmul.bf16.gmra.mxu0 %v5383
        %v5436 = vpop.f32.mrf.mxu0
        %v5437 = vadd.f32 0.0, %v5436
        %v5438 = vpop.f32.mrf.mxu0
        %v5439 = vadd.f32 0.0, %v5438
        %5440 = vmatmul.bf16.gmra.mxu0 %v5384
        %v5441 = vpop.f32.mrf.mxu0
        %v5442 = vadd.f32 0.0, %v5441
        %v5443 = vpop.f32.mrf.mxu0
        %v5444 = vadd.f32 0.0, %v5443
        %5445 = vmatmul.bf16.gmra.mxu0 %v5385
        %v5446 = vpop.f32.mrf.mxu0
        %v5447 = vadd.f32 0.0, %v5446
        %v5448 = vpop.f32.mrf.mxu0
        %v5449 = vadd.f32 0.0, %v5448
        %5450 = vmatmul.bf16.gmra.mxu0 %v5386
        %v5451 = vpop.f32.mrf.mxu0
        %v5452 = vadd.f32 0.0, %v5451
        %v5453 = vpop.f32.mrf.mxu0
        %v5454 = vadd.f32 0.0, %v5453
        %5455 = vmatmul.bf16.gmra.mxu0 %v5387
        %v5456 = vpop.f32.mrf.mxu0
        %v5457 = vadd.f32 0.0, %v5456
        %v5458 = vpop.f32.mrf.mxu0
        %v5459 = vadd.f32 0.0, %v5458
        %5460 = vmatmul.bf16.gmra.mxu0 %v5388
        %v5461 = vpop.f32.mrf.mxu0
        %v5462 = vadd.f32 0.0, %v5461
        %v5463 = vpop.f32.mrf.mxu0
        %v5464 = vadd.f32 0.0, %v5463
        %5465 = vmatmul.bf16.gmra.mxu0 %v5389
        %v5466 = vpop.f32.mrf.mxu0
        %v5467 = vadd.f32 0.0, %v5466
        %v5468 = vpop.f32.mrf.mxu0
        %v5469 = vadd.f32 0.0, %v5468
        %5470 = vmatmul.bf16.gmra.mxu0 %v5390
        %v5471 = vpop.f32.mrf.mxu0
        %v5472 = vadd.f32 0.0, %v5471
        %v5473 = vpop.f32.mrf.mxu0
        %v5474 = vadd.f32 0.0, %v5473
        %5475 = vmatmul.bf16.gmra.mxu0 %v5391
        %v5476 = vpop.f32.mrf.mxu0
        %v5477 = vadd.f32 0.0, %v5476
        %v5478 = vpop.f32.mrf.mxu0
        %v5479 = vadd.f32 0.0, %v5478
        %5480 = vmatmul.bf16.gmra.mxu0 %v5392
        %v5481 = vpop.f32.mrf.mxu0
        %v5482 = vadd.f32 0.0, %v5481
        %v5483 = vpop.f32.mrf.mxu0
        %v5484 = vadd.f32 0.0, %v5483
        %5485 = vmatmul.bf16.gmra.mxu0 %v5393
        %v5486 = vpop.f32.mrf.mxu0
        %v5487 = vadd.f32 0.0, %v5486
        %v5488 = vpop.f32.mrf.mxu0
        %v5489 = vadd.f32 0.0, %v5488
        %5490 = vmatmul.bf16.gmra.mxu0 %v5394
        %v5491 = vpop.f32.mrf.mxu0
        %v5492 = vadd.f32 0.0, %v5491
        %v5493 = vpop.f32.mrf.mxu0
        %v5494 = vadd.f32 0.0, %v5493
        %5495 = vmatmul.bf16.gmra.mxu0 %v5395
        %v5496 = vpop.f32.mrf.mxu0
        %v5497 = vadd.f32 0.0, %v5496
        %v5498 = vpop.f32.mrf.mxu0
        %v5499 = vadd.f32 0.0, %v5498
        %5500 = vmatmul.bf16.gmra.mxu0 %v5396
        %v5501 = vpop.f32.mrf.mxu0
        %v5502 = vadd.f32 0.0, %v5501
        %v5503 = vpop.f32.mrf.mxu0
        %v5504 = vadd.f32 0.0, %v5503
        %5505 = vmatmul.bf16.gmra.mxu0 %v5397
        %v5506 = vpop.f32.mrf.mxu0
        %v5507 = vadd.f32 0.0, %v5506
        %v5508 = vpop.f32.mrf.mxu0
        %v5509 = vadd.f32 0.0, %v5508
        %5510 = vdwg.mxu0
        %v5511 = vld [vmem:[%s8] sm:$0x1]
        %v5513 = vperm.slane %v5511, 0
        %v5515 = vmul.f32 %v5432, %v5513
        %v5516 = vmul.f32 %v5434, %v5513
        %v5517 = vmul.f32 %v5437, %v5513
        %v5518 = vmul.f32 %v5439, %v5513
        %v5519 = vmul.f32 %v5442, %v5513
        %v5520 = vmul.f32 %v5444, %v5513
        %v5521 = vmul.f32 %v5447, %v5513
        %v5522 = vmul.f32 %v5449, %v5513
        %v5523 = vmul.f32 %v5452, %v5513
        %v5524 = vmul.f32 %v5454, %v5513
        %v5525 = vmul.f32 %v5457, %v5513
        %v5526 = vmul.f32 %v5459, %v5513
        %v5527 = vmul.f32 %v5462, %v5513
        %v5528 = vmul.f32 %v5464, %v5513
        %v5529 = vmul.f32 %v5467, %v5513
        %v5530 = vmul.f32 %v5469, %v5513
        %v5531 = vmul.f32 %v5472, %v5513
        %v5532 = vmul.f32 %v5474, %v5513
        %v5533 = vmul.f32 %v5477, %v5513
        %v5534 = vmul.f32 %v5479, %v5513
        %v5535 = vmul.f32 %v5482, %v5513
        %v5536 = vmul.f32 %v5484, %v5513
        %v5537 = vmul.f32 %v5487, %v5513
        %v5538 = vmul.f32 %v5489, %v5513
        %v5539 = vmul.f32 %v5492, %v5513
        %v5540 = vmul.f32 %v5494, %v5513
        %v5541 = vmul.f32 %v5497, %v5513
        %v5542 = vmul.f32 %v5499, %v5513
        %v5543 = vmul.f32 %v5502, %v5513
        %v5544 = vmul.f32 %v5504, %v5513
        %v5545 = vmul.f32 %v5507, %v5513
        %v5546 = vmul.f32 %v5509, %v5513
        %v5547 = vld [vmem:[%s9] sm:$0x1]
        %v5549 = vperm.slane %v5547, 0
        %v5551 = vadd.f32 %v5515, %v5549
        %v5552 = vadd.f32 %v5516, %v5549
        %v5553 = vadd.f32 %v5517, %v5549
        %v5554 = vadd.f32 %v5518, %v5549
        %v5555 = vadd.f32 %v5519, %v5549
        %v5556 = vadd.f32 %v5520, %v5549
        %v5557 = vadd.f32 %v5521, %v5549
        %v5558 = vadd.f32 %v5522, %v5549
        %v5559 = vadd.f32 %v5523, %v5549
        %v5560 = vadd.f32 %v5524, %v5549
        %v5561 = vadd.f32 %v5525, %v5549
        %v5562 = vadd.f32 %v5526, %v5549
        %v5563 = vadd.f32 %v5527, %v5549
        %v5564 = vadd.f32 %v5528, %v5549
        %v5565 = vadd.f32 %v5529, %v5549
        %v5566 = vadd.f32 %v5530, %v5549
        %v5567 = vadd.f32 %v5531, %v5549
        %v5568 = vadd.f32 %v5532, %v5549
        %v5569 = vadd.f32 %v5533, %v5549
        %v5570 = vadd.f32 %v5534, %v5549
        %v5571 = vadd.f32 %v5535, %v5549
        %v5572 = vadd.f32 %v5536, %v5549
        %v5573 = vadd.f32 %v5537, %v5549
        %v5574 = vadd.f32 %v5538, %v5549
        %v5575 = vadd.f32 %v5539, %v5549
        %v5576 = vadd.f32 %v5540, %v5549
        %v5577 = vadd.f32 %v5541, %v5549
        %v5578 = vadd.f32 %v5542, %v5549
        %v5579 = vadd.f32 %v5543, %v5549
        %v5580 = vadd.f32 %v5544, %v5549
        %v5581 = vadd.f32 %v5545, %v5549
        %v5582 = vadd.f32 %v5546, %v5549
        %v5583 = vld [vmem:[%s10] sm:$0xff]
        %v5584 = vld [vmem:[%s10 + $0x8] sm:$0xff]
        %v5585 = vld [vmem:[%s10 + $0x10] sm:$0xff]
        %v5586 = vld [vmem:[%s10 + $0x18] sm:$0xff]
        %v5587 = vpack.c.bf16 %v5584, %v5583
        %v5588 = vpack.c.bf16 %v5586, %v5585
        %5589 = vmatpush.bf16.msra.mxu0 0
        %5590 = vmatpush.bf16.msra.mxu0 0
        %5591 = vmatpush.bf16.msra.mxu0 0
        %5592 = vmatpush.bf16.msra.mxu0 0
        %5593 = vmatpush.bf16.msra.mxu0 0
        %5594 = vmatpush.bf16.msra.mxu0 0
        %5595 = vmatpush.bf16.msra.mxu0 %v5588
        %5596 = vmatpush.bf16.msra.mxu0 %v5587
        %5597 = vmatmul.bf16.gmra.mxu0 %v464
        %v5598 = vpop.f32.mrf.mxu0
        %v5599 = vadd.f32 %v5551, %v5598
        %v5600 = vpop.f32.mrf.mxu0
        %v5601 = vadd.f32 %v5552, %v5600
        %5602 = vmatmul.bf16.gmra.mxu0 %v467
        %v5603 = vpop.f32.mrf.mxu0
        %v5604 = vadd.f32 %v5553, %v5603
        %v5605 = vpop.f32.mrf.mxu0
        %v5606 = vadd.f32 %v5554, %v5605
        %5607 = vmatmul.bf16.gmra.mxu0 %v470
        %v5608 = vpop.f32.mrf.mxu0
        %v5609 = vadd.f32 %v5555, %v5608
        %v5610 = vpop.f32.mrf.mxu0
        %v5611 = vadd.f32 %v5556, %v5610
        %5612 = vmatmul.bf16.gmra.mxu0 %v473
        %v5613 = vpop.f32.mrf.mxu0
        %v5614 = vadd.f32 %v5557, %v5613
        %v5615 = vpop.f32.mrf.mxu0
        %v5616 = vadd.f32 %v5558, %v5615
        %5617 = vmatmul.bf16.gmra.mxu0 %v476
        %v5618 = vpop.f32.mrf.mxu0
        %v5619 = vadd.f32 %v5559, %v5618
        %v5620 = vpop.f32.mrf.mxu0
        %v5621 = vadd.f32 %v5560, %v5620
        %5622 = vmatmul.bf16.gmra.mxu0 %v479
        %v5623 = vpop.f32.mrf.mxu0
        %v5624 = vadd.f32 %v5561, %v5623
        %v5625 = vpop.f32.mrf.mxu0
        %v5626 = vadd.f32 %v5562, %v5625
        %5627 = vmatmul.bf16.gmra.mxu0 %v482
        %v5628 = vpop.f32.mrf.mxu0
        %v5629 = vadd.f32 %v5563, %v5628
        %v5630 = vpop.f32.mrf.mxu0
        %v5631 = vadd.f32 %v5564, %v5630
        %5632 = vmatmul.bf16.gmra.mxu0 %v485
        %v5633 = vpop.f32.mrf.mxu0
        %v5634 = vadd.f32 %v5565, %v5633
        %v5635 = vpop.f32.mrf.mxu0
        %v5636 = vadd.f32 %v5566, %v5635
        %5637 = vmatmul.bf16.gmra.mxu0 %v488
        %v5638 = vpop.f32.mrf.mxu0
        %v5639 = vadd.f32 %v5567, %v5638
        %v5640 = vpop.f32.mrf.mxu0
        %v5641 = vadd.f32 %v5568, %v5640
        %5642 = vmatmul.bf16.gmra.mxu0 %v491
        %v5643 = vpop.f32.mrf.mxu0
        %v5644 = vadd.f32 %v5569, %v5643
        %v5645 = vpop.f32.mrf.mxu0
        %v5646 = vadd.f32 %v5570, %v5645
        %5647 = vmatmul.bf16.gmra.mxu0 %v494
        %v5648 = vpop.f32.mrf.mxu0
        %v5649 = vadd.f32 %v5571, %v5648
        %v5650 = vpop.f32.mrf.mxu0
        %v5651 = vadd.f32 %v5572, %v5650
        %5652 = vmatmul.bf16.gmra.mxu0 %v497
        %v5653 = vpop.f32.mrf.mxu0
        %v5654 = vadd.f32 %v5573, %v5653
        %v5655 = vpop.f32.mrf.mxu0
        %v5656 = vadd.f32 %v5574, %v5655
        %5657 = vmatmul.bf16.gmra.mxu0 %v500
        %v5658 = vpop.f32.mrf.mxu0
        %v5659 = vadd.f32 %v5575, %v5658
        %v5660 = vpop.f32.mrf.mxu0
        %v5661 = vadd.f32 %v5576, %v5660
        %5662 = vmatmul.bf16.gmra.mxu0 %v503
        %v5663 = vpop.f32.mrf.mxu0
        %v5664 = vadd.f32 %v5577, %v5663
        %v5665 = vpop.f32.mrf.mxu0
        %v5666 = vadd.f32 %v5578, %v5665
        %5667 = vmatmul.bf16.gmra.mxu0 %v506
        %v5668 = vpop.f32.mrf.mxu0
        %v5669 = vadd.f32 %v5579, %v5668
        %v5670 = vpop.f32.mrf.mxu0
        %v5671 = vadd.f32 %v5580, %v5670
        %5672 = vmatmul.bf16.gmra.mxu0 %v509
        %v5673 = vpop.f32.mrf.mxu0
        %v5674 = vadd.f32 %v5581, %v5673
        %v5675 = vpop.f32.mrf.mxu0
        %v5676 = vadd.f32 %v5582, %v5675
        %5677 = vdwg.mxu0
        %vm5678 = vcmask 523264
        %5679 = vst.msk [vmem:[%s406] sm:$0xff] %vm5678, %v5599
        %5680 = vst.msk [vmem:[%s406 + $0x8] sm:$0xff] %vm5678, %v5601
        %5681 = vst.msk [vmem:[%s406 + $0x10] sm:$0xff] %vm5678, %v5604
        %5682 = vst.msk [vmem:[%s406 + $0x18] sm:$0xff] %vm5678, %v5606
        %5683 = vst.msk [vmem:[%s406 + $0x20] sm:$0xff] %vm5678, %v5609
        %5684 = vst.msk [vmem:[%s406 + $0x28] sm:$0xff] %vm5678, %v5611
        %5685 = vst.msk [vmem:[%s406 + $0x30] sm:$0xff] %vm5678, %v5614
        %5686 = vst.msk [vmem:[%s406 + $0x38] sm:$0xff] %vm5678, %v5616
        %5687 = vst.msk [vmem:[%s406 + $0x40] sm:$0xff] %vm5678, %v5619
        %5688 = vst.msk [vmem:[%s406 + $0x48] sm:$0xff] %vm5678, %v5621
        %5689 = vst.msk [vmem:[%s406 + $0x50] sm:$0xff] %vm5678, %v5624
        %5690 = vst.msk [vmem:[%s406 + $0x58] sm:$0xff] %vm5678, %v5626
        %5691 = vst.msk [vmem:[%s406 + $0x60] sm:$0xff] %vm5678, %v5629
        %5692 = vst.msk [vmem:[%s406 + $0x68] sm:$0xff] %vm5678, %v5631
        %5693 = vst.msk [vmem:[%s406 + $0x70] sm:$0xff] %vm5678, %v5634
        %5694 = vst.msk [vmem:[%s406 + $0x78] sm:$0xff] %vm5678, %v5636
        %5695 = vst.msk [vmem:[%s406 + $0x80] sm:$0xff] %vm5678, %v5639
        %5696 = vst.msk [vmem:[%s406 + $0x88] sm:$0xff] %vm5678, %v5641
        %5697 = vst.msk [vmem:[%s406 + $0x90] sm:$0xff] %vm5678, %v5644
        %5698 = vst.msk [vmem:[%s406 + $0x98] sm:$0xff] %vm5678, %v5646
        %5699 = vst.msk [vmem:[%s406 + $0xa0] sm:$0xff] %vm5678, %v5649
        %5700 = vst.msk [vmem:[%s406 + $0xa8] sm:$0xff] %vm5678, %v5651
        %5701 = vst.msk [vmem:[%s406 + $0xb0] sm:$0xff] %vm5678, %v5654
        %5702 = vst.msk [vmem:[%s406 + $0xb8] sm:$0xff] %vm5678, %v5656
        %5703 = vst.msk [vmem:[%s406 + $0xc0] sm:$0xff] %vm5678, %v5659
        %5704 = vst.msk [vmem:[%s406 + $0xc8] sm:$0xff] %vm5678, %v5661
        %5705 = vst.msk [vmem:[%s406 + $0xd0] sm:$0xff] %vm5678, %v5664
        %5706 = vst.msk [vmem:[%s406 + $0xd8] sm:$0xff] %vm5678, %v5666
        %5707 = vst.msk [vmem:[%s406 + $0xe0] sm:$0xff] %vm5678, %v5669
        %5708 = vst.msk [vmem:[%s406 + $0xe8] sm:$0xff] %vm5678, %v5671
        %5709 = vst.msk [vmem:[%s406 + $0xf0] sm:$0xff] %vm5678, %v5674
        %5710 = vst.msk [vmem:[%s406 + $0xf8] sm:$0xff] %vm5678, %v5676
        %s5711 = sand.u32 %s272, 1
        %s5712 = scalar_lea.sflag [#allocation4], %s5711
        %s5713 = sand.u32 %s272, 1
        %s5714 = smul.addr %s5713, 256
        %s5715 = scalar_lea.vmem [#allocation5], %s5714
        // Predicated region
        $region69: #{tpu_custom_call.1} parent=63 // pred_check
          %p5716 = pneg %p282
        $region70: #{tpu_custom_call.1} parent=63 // pred_check_branch
          %5718 = sbr.rel (%p5716) target = $region72
        $region71: #{tpu_custom_call.1} parent=63 // pred_region
          %5720 = vsyncadd %s5712, 0
          %s5721 = smul.addr %s28, 32
          %s5722 = smul.addr %s5721, 8
          %s5723 = scalar_lea.hbm %s11, %s5722
          %s5724 = sshll.u32 %s5715, 4
          %s5725 = int_to_ptr.vmem [resolvable:$true] %s5724
          %s5726 = sshll.u32 %s5723, 4
          %s5727 = int_to_ptr.hbm [resolvable:$true] %s5726
          %5732 = dma.vmem_to_hbm [thread:$0]  %s5725, 4096, %s5727, %s5712, 128, 128, 8
        $region72: #{tpu_custom_call.1} parent=63 // pred_fallthru
          _
      $region64: #{tpu_custom_call.1} parent=5 // pred_fallthru
        _
      %p5733 = scmp.le.s32.totalorder 2, %s23
      // Predicated region
      $region73: #{tpu_custom_call.1} parent=5 // pred_check
        %p5734 = pneg %p5733
      $region74: #{tpu_custom_call.1} parent=5 // pred_check_branch
        %5736 = sbr.rel (%p5734) target = $region76
      $region75: #{tpu_custom_call.1} parent=5 // pred_region
        %s5737 = ssub.s32 %s23, 2
        // Predicated region
        $region77: #{tpu_custom_call.1} parent=75 // pred_check
          %p5738 = pneg %p288
        $region78: #{tpu_custom_call.1} parent=75 // pred_check_branch
          %5740 = sbr.rel (%p5738) target = $region80
        $region79: #{tpu_custom_call.1} parent=75 // pred_region
          %s5741 = sand.u32 %s273, 1
          %s5742 = scalar_lea.sflag [#allocation4], %s5741
          %s5743 = sand.u32 %s273, 1
          %s5744 = smul.addr %s5743, 256
          %s5745 = scalar_lea.vmem [#allocation5], %s5744
          %5747 = dma.done %s5742, 4096
        $region80: #{tpu_custom_call.1} parent=75 // pred_fallthru
          _
      $region76: #{tpu_custom_call.1} parent=5 // pred_fallthru
        _
    $region6: #{tpu_custom_call.1} parent=1 // loop_footer
      %s27 = sadd.s32 1, %s23
    $region7: #{tpu_custom_call.1} parent=1 // loop_footer_branch
      %22 = sbr.rel target = $region3
    $region8: #{tpu_custom_call.1} parent=1 // loop_exit
      _
    %5748 = vsyncpa [#allocation3], 1
    %s5749 = scalar_lea.sflag [#allocation3], 1
    %5750 = vsyncpa %s5749, 1
    %5751 = vsyncpa [#allocation4], 1
    %s5752 = scalar_lea.sflag [#allocation4], 1
    %5753 = vsyncpa %s5752, 1

</llo_original>
